<compile_context>
chip_gen: v7x
topology: tpu7x:2x2x1
jax: 0.10.0
libtpu: 0.0.40
codegen_flags: <defaults>
</compile_context>

<pallas_src>
import functools

import jax
import jax.numpy as jnp
import numpy as np
from jax.experimental import pallas as pl
from jax.experimental.pallas import tpu as pltpu


# ------------------------------ Pallas kernel -------------------------------

def _resblock_kernel(mask_ref, w1_ref, w2_ref, b1_ref, b2_ref, x_ref, o_ref,
                     *, width):
    """Fused residual block for a block of `nb` images.

    mask_ref: (9, 1, HW)  f32  per-tap validity mask (0 where the shifted
                               source pixel lies outside the image).
    w1_ref  : (9, C, C)   f32  conv1 taps, w1_ref[kh*3+kw][o, i] = W1[o, i, kh, kw]
    w2_ref  : (9, C, C)   f32  conv2 taps (same layout)
    b1_ref  : (C, 1)      f32
    b2_ref  : (C, 1)      f32
    x_ref   : (nb, C, HW) f32  channels on sublanes, pixels on lanes
    o_ref   : (nb, C, HW) f32
    """
    nb, _, hw = x_ref.shape

    def conv9(src, w_ref, acc):
        # acc[o, p] += sum_{kh,kw,i} W[o, i, kh, kw] * src[i, p + dh*width + dw]
        for t in range(9):
            dh = t // 3 - 1
            dw = t % 3 - 1
            d = dh * width + dw
            if d == 0:
                tap = src                       # centre tap: no shift, mask == 1
            else:
                # pltpu.roll follows jnp.roll semantics (out[p] = in[p - shift]),
                # so shift = (-d) mod HW gives out[p] = in[p + d]; the mask zeros
                # pixels whose source left the image (== conv zero padding).
                tap = pltpu.roll(src, (-d) % hw, axis=1) * mask_ref[t]
            acc = acc + jnp.dot(w_ref[t], tap,
                                preferred_element_type=jnp.float32)
        return acc

    b1 = b1_ref[...]                            # hoisted out of the image loop
    b2 = b2_ref[...]

    for img in range(nb):                       # short static unroll (nb <= 8)
        x = x_ref[img]                          # (C, HW), pre-relu (residual)
        xr = jnp.maximum(x, 0.0)                # relu(x)

        # conv1(relu(x)) + b1, then relu -- stays entirely in VMEM / vregs.
        y1 = conv9(xr, w1_ref, jnp.zeros_like(xr))
        y1 = jnp.maximum(y1 + b1, 0.0)

        # conv2(y1) + b2 + x   (residual uses the *pre-relu* input)
        out = conv9(y1, w2_ref, x + b2)
        o_ref[img] = out.astype(o_ref.dtype)


# ------------------------------- JAX wrapper ---------------------------------

def _tap_masks(height, width):
    """(9, 1, H*W) f32: mask[kh*3+kw, 0, h*W+w] = 1 iff pixel (h+kh-1, w+kw-1)
    lies inside the image (the tap reads a real pixel, not zero padding)."""
    h = np.arange(height).repeat(width)          # flattened row index
    w = np.tile(np.arange(width), height)        # flattened col index
    masks = []
    for dh in (-1, 0, 1):
        for dw in (-1, 0, 1):
            ok = ((h + dh >= 0) & (h + dh < height) &
                  (w + dw >= 0) & (w + dw < width))
            masks.append(ok.astype(np.float32))
    return jnp.asarray(np.stack(masks)[:, None, :])          # (9, 1, H*W)


def _pick_images_per_block(n, c, hw, budget_bytes=1 << 20, max_unroll=8):
    """Largest divisor of n that keeps the double-buffered in+out activation
    blocks under `budget_bytes` of VMEM and the in-kernel unroll short."""
    per_image = 2 * 2 * c * hw * 4              # (in + out) x double-buffer, f32
    cap = max(1, min(max_unroll, budget_bytes // per_image))
    nb = 1
    for d in range(1, n + 1):
        if n % d == 0 and d <= cap:
            nb = d
    return nb


def residual_block(x_nchw, params, *, images_per_block=None):
    """Forward pass of the PyTorch ResidualBlock. x: (N, C, H, W) float32."""
    w1, b1, w2, b2 = params                      # torch layout: w = (O, I, 3, 3)
    N, C, H, W = x_nchw.shape
    HW = H * W

    nb = images_per_block or _pick_images_per_block(N, C, HW)
    assert N % nb == 0

    x_flat = x_nchw.reshape(N, C, HW)            # free reshape, no transpose
    # (O, I, kh, kw) -> (kh*3+kw, O, I)
    w1t = jnp.transpose(w1, (2, 3, 0, 1)).reshape(9, C, C)
    w2t = jnp.transpose(w2, (2, 3, 0, 1)).reshape(9, C, C)
    b1c = b1.reshape(C, 1)
    b2c = b2.reshape(C, 1)
    masks = _tap_masks(H, W)

    flops = N * 2 * 9 * 2 * C * C * HW           # two convs, 9 taps each
    bytes_accessed = 4 * (2 * N * C * HW + 2 * 9 * C * C + 2 * C + 9 * HW)

    out = pl.pallas_call(
        functools.partial(_resblock_kernel, width=W),
        out_shape=jax.ShapeDtypeStruct((N, C, HW), jnp.float32),
        grid=(N // nb,),
        in_specs=[
            pl.BlockSpec((9, 1, HW), lambda n: (0, 0, 0)),   # tap masks (resident)
            pl.BlockSpec((9, C, C), lambda n: (0, 0, 0)),    # conv1 taps (resident)
            pl.BlockSpec((9, C, C), lambda n: (0, 0, 0)),    # conv2 taps (resident)
            pl.BlockSpec((C, 1), lambda n: (0, 0)),          # b1
            pl.BlockSpec((C, 1), lambda n: (0, 0)),          # b2
            pl.BlockSpec((nb, C, HW), lambda n: (n, 0, 0)),  # nb images
        ],
        out_specs=pl.BlockSpec((nb, C, HW), lambda n: (n, 0, 0)),
        compiler_params=pltpu.CompilerParams(
            dimension_semantics=("parallel",),               # batch across cores
            vmem_limit_bytes=32 * 1024 * 1024),              # ample on v5e..v7x
        cost_estimate=pl.CostEstimate(flops=flops, transcendentals=0,
                                      bytes_accessed=bytes_accessed),
    )(masks, w1t, w2t, b1c, b2c, x_flat)

    return out.reshape(N, C, H, W)


# --------------------------- pure-JAX reference ------------------------------

def _ref_block(x_nchw, w1, b1, w2, b2):
    dn = ('NCHW', 'OIHW', 'NCHW')
    h = jnp.maximum(x_nchw, 0.0)
    h = jax.lax.conv_general_dilated(h, w1, (1, 1), ((1, 1), (1, 1)),
                                     dimension_numbers=dn) + b1.reshape(1, -1, 1, 1)
    h = jnp.maximum(h, 0.0)
    h = jax.lax.conv_general_dilated(h, w2, (1, 1), ((1, 1), (1, 1)),
                                     dimension_numbers=dn) + b2.reshape(1, -1, 1, 1)
    return h + x_nchw


# ---------------------------------- main -------------------------------------

def _run_case(key, N, C, H, W):
    k_x, k_w1, k_b1, k_w2, k_b2 = jax.random.split(key, 5)
    x = jax.random.normal(k_x, (N, C, H, W), jnp.float32)

    # Deterministic parameter init (shapes match nn.Conv2d(C, C, 3, 1, 1)).
    fan_in = C * 3 * 3
    bound = 1.0 / np.sqrt(fan_in)
    w1 = jax.random.uniform(k_w1, (C, C, 3, 3), jnp.float32, -bound, bound)
    b1 = jax.random.uniform(k_b1, (C,), jnp.float32, -bound, bound)
    w2 = jax.random.uniform(k_w2, (C, C, 3, 3), jnp.float32, -bound, bound)
    b2 = jax.random.uniform(k_b2, (C,), jnp.float32, -bound, bound)

    out = jax.jit(residual_block)(x, (w1, b1, w2, b2))
    out = jax.block_until_ready(out)

    ref = _ref_block(x, w1, b1, w2, b2)
    assert out.shape == (N, C, H, W)
    np.testing.assert_allclose(np.asarray(out), np.asarray(ref),
                               rtol=1e-4, atol=1e-4)


if __name__ == "__main__":
    key = jax.random.PRNGKey(0)
    k1, k2 = jax.random.split(key)
    _run_case(k1, 2, 4, 16, 16)    # primary small config (whole batch in 1 step)
    _run_case(k2, 3, 8, 16, 16)    # exercises the batch-block picker (nb=3)
    print("KERNEL_OK")
</pallas_src>

<mosaic_0001>
module attributes {stable_mosaic.version = 11 : i64} {
  func.func @_resblock_kernel(%arg0: i32, %arg1: memref<9x1x256xf32, #tpu.memory_space<vmem>>, %arg2: memref<9x4x4xf32, #tpu.memory_space<vmem>>, %arg3: memref<9x4x4xf32, #tpu.memory_space<vmem>>, %arg4: memref<4x1xf32, #tpu.memory_space<vmem>>, %arg5: memref<4x1xf32, #tpu.memory_space<vmem>>, %arg6: memref<2x4x256xf32, #tpu.memory_space<vmem>>, %arg7: memref<2x4x256xf32, #tpu.memory_space<vmem>>) attributes {dimension_semantics = [#tpu.dimension_semantics<parallel>], iteration_bounds = array<i64: 1>, scalar_prefetch = 0 : i64, scratch_operands = 0 : i64, tpu.core_type = #tpu.core_type<tc>, window_params = [{pipeline_mode = #tpu.pipeline_mode<synchronous>, transform_indices = @transform_0, window_bounds = array<i64: 9, 1, 256>}, {pipeline_mode = #tpu.pipeline_mode<synchronous>, transform_indices = @transform_1, window_bounds = array<i64: 9, 4, 4>}, {pipeline_mode = #tpu.pipeline_mode<synchronous>, transform_indices = @transform_2, window_bounds = array<i64: 9, 4, 4>}, {pipeline_mode = #tpu.pipeline_mode<synchronous>, transform_indices = @transform_3, window_bounds = array<i64: 4, 1>}, {pipeline_mode = #tpu.pipeline_mode<synchronous>, transform_indices = @transform_4, window_bounds = array<i64: 4, 1>}, {transform_indices = @transform_5, window_bounds = array<i64: 2, 4, 256>}, {transform_indices = @transform_6, window_bounds = array<i64: 2, 4, 256>}]} {
    %c0 = arith.constant 0 : index
    %c0_0 = arith.constant 0 : index
    %0 = vector.load %arg4[%c0, %c0_0] : memref<4x1xf32, #tpu.memory_space<vmem>>, vector<4x1xf32>
    %c0_1 = arith.constant 0 : index
    %c0_2 = arith.constant 0 : index
    %1 = vector.load %arg5[%c0_1, %c0_2] : memref<4x1xf32, #tpu.memory_space<vmem>>, vector<4x1xf32>
    %c0_3 = arith.constant 0 : index
    %c0_4 = arith.constant 0 : index
    %c0_5 = arith.constant 0 : index
    %2 = vector.load %arg6[%c0_3, %c0_4, %c0_5] : memref<2x4x256xf32, #tpu.memory_space<vmem>>, vector<1x4x256xf32>
    %3 = vector.shape_cast %2 : vector<1x4x256xf32> to vector<4x256xf32>
    %cst = arith.constant 0.000000e+00 : f32
    %4 = vector.broadcast %cst : f32 to vector<4x256xf32>
    %5 = arith.maximumf %3, %4 : vector<4x256xf32>
    %cst_6 = arith.constant 0.000000e+00 : f32
    %6 = vector.broadcast %cst_6 : f32 to vector<4x256xf32>
    %c17_i32 = arith.constant 17 : i32
    %7 = tpu.dynamic_rotate %5 by %c17_i32 dim 1 : vector<4x256xf32>, i32 -> vector<4x256xf32>
    %c0_7 = arith.constant 0 : index
    %c0_8 = arith.constant 0 : index
    %c0_9 = arith.constant 0 : index
    %8 = vector.load %arg1[%c0_7, %c0_8, %c0_9] : memref<9x1x256xf32, #tpu.memory_space<vmem>>, vector<1x1x256xf32>
    %9 = vector.shape_cast %8 : vector<1x1x256xf32> to vector<1x256xf32>
    %10 = vector.broadcast %9 : vector<1x256xf32> to vector<4x256xf32>
    %11 = arith.mulf %7, %10 : vector<4x256xf32>
    %c0_10 = arith.constant 0 : index
    %c0_11 = arith.constant 0 : index
    %c0_12 = arith.constant 0 : index
    %12 = vector.load %arg2[%c0_10, %c0_11, %c0_12] : memref<9x4x4xf32, #tpu.memory_space<vmem>>, vector<1x4x4xf32>
    %13 = vector.shape_cast %12 : vector<1x4x4xf32> to vector<4x4xf32>
    %cst_13 = arith.constant dense<0.000000e+00> : vector<4x256xf32>
    %14 = tpu.matmul %13, %11, %cst_13 {dimension_numbers = #tpu.dot_dimension_numbers<[1], [0], [0], [1], [0, 0, 1, 1], [], []>} : vector<4x4xf32>, vector<4x256xf32>, vector<4x256xf32> -> vector<4x256xf32>
    %15 = arith.addf %6, %14 : vector<4x256xf32>
    %c16_i32 = arith.constant 16 : i32
    %16 = tpu.dynamic_rotate %5 by %c16_i32 dim 1 : vector<4x256xf32>, i32 -> vector<4x256xf32>
    %c1 = arith.constant 1 : index
    %c0_14 = arith.constant 0 : index
    %c0_15 = arith.constant 0 : index
    %17 = vector.load %arg1[%c1, %c0_14, %c0_15] : memref<9x1x256xf32, #tpu.memory_space<vmem>>, vector<1x1x256xf32>
    %18 = vector.shape_cast %17 : vector<1x1x256xf32> to vector<1x256xf32>
    %19 = vector.broadcast %18 : vector<1x256xf32> to vector<4x256xf32>
    %20 = arith.mulf %16, %19 : vector<4x256xf32>
    %c1_16 = arith.constant 1 : index
    %c0_17 = arith.constant 0 : index
    %c0_18 = arith.constant 0 : index
    %21 = vector.load %arg2[%c1_16, %c0_17, %c0_18] : memref<9x4x4xf32, #tpu.memory_space<vmem>>, vector<1x4x4xf32>
    %22 = vector.shape_cast %21 : vector<1x4x4xf32> to vector<4x4xf32>
    %cst_19 = arith.constant dense<0.000000e+00> : vector<4x256xf32>
    %23 = tpu.matmul %22, %20, %cst_19 {dimension_numbers = #tpu.dot_dimension_numbers<[1], [0], [0], [1], [0, 0, 1, 1], [], []>} : vector<4x4xf32>, vector<4x256xf32>, vector<4x256xf32> -> vector<4x256xf32>
    %24 = arith.addf %15, %23 : vector<4x256xf32>
    %c15_i32 = arith.constant 15 : i32
    %25 = tpu.dynamic_rotate %5 by %c15_i32 dim 1 : vector<4x256xf32>, i32 -> vector<4x256xf32>
    %c2 = arith.constant 2 : index
    %c0_20 = arith.constant 0 : index
    %c0_21 = arith.constant 0 : index
    %26 = vector.load %arg1[%c2, %c0_20, %c0_21] : memref<9x1x256xf32, #tpu.memory_space<vmem>>, vector<1x1x256xf32>
    %27 = vector.shape_cast %26 : vector<1x1x256xf32> to vector<1x256xf32>
    %28 = vector.broadcast %27 : vector<1x256xf32> to vector<4x256xf32>
    %29 = arith.mulf %25, %28 : vector<4x256xf32>
    %c2_22 = arith.constant 2 : index
    %c0_23 = arith.constant 0 : index
    %c0_24 = arith.constant 0 : index
    %30 = vector.load %arg2[%c2_22, %c0_23, %c0_24] : memref<9x4x4xf32, #tpu.memory_space<vmem>>, vector<1x4x4xf32>
    %31 = vector.shape_cast %30 : vector<1x4x4xf32> to vector<4x4xf32>
    %cst_25 = arith.constant dense<0.000000e+00> : vector<4x256xf32>
    %32 = tpu.matmul %31, %29, %cst_25 {dimension_numbers = #tpu.dot_dimension_numbers<[1], [0], [0], [1], [0, 0, 1, 1], [], []>} : vector<4x4xf32>, vector<4x256xf32>, vector<4x256xf32> -> vector<4x256xf32>
    %33 = arith.addf %24, %32 : vector<4x256xf32>
    %c1_i32 = arith.constant 1 : i32
    %34 = tpu.dynamic_rotate %5 by %c1_i32 dim 1 : vector<4x256xf32>, i32 -> vector<4x256xf32>
    %c3 = arith.constant 3 : index
    %c0_26 = arith.constant 0 : index
    %c0_27 = arith.constant 0 : index
    %35 = vector.load %arg1[%c3, %c0_26, %c0_27] : memref<9x1x256xf32, #tpu.memory_space<vmem>>, vector<1x1x256xf32>
    %36 = vector.shape_cast %35 : vector<1x1x256xf32> to vector<1x256xf32>
    %37 = vector.broadcast %36 : vector<1x256xf32> to vector<4x256xf32>
    %38 = arith.mulf %34, %37 : vector<4x256xf32>
    %c3_28 = arith.constant 3 : index
    %c0_29 = arith.constant 0 : index
    %c0_30 = arith.constant 0 : index
    %39 = vector.load %arg2[%c3_28, %c0_29, %c0_30] : memref<9x4x4xf32, #tpu.memory_space<vmem>>, vector<1x4x4xf32>
    %40 = vector.shape_cast %39 : vector<1x4x4xf32> to vector<4x4xf32>
    %cst_31 = arith.constant dense<0.000000e+00> : vector<4x256xf32>
    %41 = tpu.matmul %40, %38, %cst_31 {dimension_numbers = #tpu.dot_dimension_numbers<[1], [0], [0], [1], [0, 0, 1, 1], [], []>} : vector<4x4xf32>, vector<4x256xf32>, vector<4x256xf32> -> vector<4x256xf32>
    %42 = arith.addf %33, %41 : vector<4x256xf32>
    %c4 = arith.constant 4 : index
    %c0_32 = arith.constant 0 : index
    %c0_33 = arith.constant 0 : index
    %43 = vector.load %arg2[%c4, %c0_32, %c0_33] : memref<9x4x4xf32, #tpu.memory_space<vmem>>, vector<1x4x4xf32>
    %44 = vector.shape_cast %43 : vector<1x4x4xf32> to vector<4x4xf32>
    %cst_34 = arith.constant dense<0.000000e+00> : vector<4x256xf32>
    %45 = tpu.matmul %44, %5, %cst_34 {dimension_numbers = #tpu.dot_dimension_numbers<[1], [0], [0], [1], [0, 0, 1, 1], [], []>} : vector<4x4xf32>, vector<4x256xf32>, vector<4x256xf32> -> vector<4x256xf32>
    %46 = arith.addf %42, %45 : vector<4x256xf32>
    %c255_i32 = arith.constant 255 : i32
    %47 = tpu.dynamic_rotate %5 by %c255_i32 dim 1 : vector<4x256xf32>, i32 -> vector<4x256xf32>
    %c5 = arith.constant 5 : index
    %c0_35 = arith.constant 0 : index
    %c0_36 = arith.constant 0 : index
    %48 = vector.load %arg1[%c5, %c0_35, %c0_36] : memref<9x1x256xf32, #tpu.memory_space<vmem>>, vector<1x1x256xf32>
    %49 = vector.shape_cast %48 : vector<1x1x256xf32> to vector<1x256xf32>
    %50 = vector.broadcast %49 : vector<1x256xf32> to vector<4x256xf32>
    %51 = arith.mulf %47, %50 : vector<4x256xf32>
    %c5_37 = arith.constant 5 : index
    %c0_38 = arith.constant 0 : index
    %c0_39 = arith.constant 0 : index
    %52 = vector.load %arg2[%c5_37, %c0_38, %c0_39] : memref<9x4x4xf32, #tpu.memory_space<vmem>>, vector<1x4x4xf32>
    %53 = vector.shape_cast %52 : vector<1x4x4xf32> to vector<4x4xf32>
    %cst_40 = arith.constant dense<0.000000e+00> : vector<4x256xf32>
    %54 = tpu.matmul %53, %51, %cst_40 {dimension_numbers = #tpu.dot_dimension_numbers<[1], [0], [0], [1], [0, 0, 1, 1], [], []>} : vector<4x4xf32>, vector<4x256xf32>, vector<4x256xf32> -> vector<4x256xf32>
    %55 = arith.addf %46, %54 : vector<4x256xf32>
    %c241_i32 = arith.constant 241 : i32
    %56 = tpu.dynamic_rotate %5 by %c241_i32 dim 1 : vector<4x256xf32>, i32 -> vector<4x256xf32>
    %c6 = arith.constant 6 : index
    %c0_41 = arith.constant 0 : index
    %c0_42 = arith.constant 0 : index
    %57 = vector.load %arg1[%c6, %c0_41, %c0_42] : memref<9x1x256xf32, #tpu.memory_space<vmem>>, vector<1x1x256xf32>
    %58 = vector.shape_cast %57 : vector<1x1x256xf32> to vector<1x256xf32>
    %59 = vector.broadcast %58 : vector<1x256xf32> to vector<4x256xf32>
    %60 = arith.mulf %56, %59 : vector<4x256xf32>
    %c6_43 = arith.constant 6 : index
    %c0_44 = arith.constant 0 : index
    %c0_45 = arith.constant 0 : index
    %61 = vector.load %arg2[%c6_43, %c0_44, %c0_45] : memref<9x4x4xf32, #tpu.memory_space<vmem>>, vector<1x4x4xf32>
    %62 = vector.shape_cast %61 : vector<1x4x4xf32> to vector<4x4xf32>
    %cst_46 = arith.constant dense<0.000000e+00> : vector<4x256xf32>
    %63 = tpu.matmul %62, %60, %cst_46 {dimension_numbers = #tpu.dot_dimension_numbers<[1], [0], [0], [1], [0, 0, 1, 1], [], []>} : vector<4x4xf32>, vector<4x256xf32>, vector<4x256xf32> -> vector<4x256xf32>
    %64 = arith.addf %55, %63 : vector<4x256xf32>
    %c240_i32 = arith.constant 240 : i32
    %65 = tpu.dynamic_rotate %5 by %c240_i32 dim 1 : vector<4x256xf32>, i32 -> vector<4x256xf32>
    %c7 = arith.constant 7 : index
    %c0_47 = arith.constant 0 : index
    %c0_48 = arith.constant 0 : index
    %66 = vector.load %arg1[%c7, %c0_47, %c0_48] : memref<9x1x256xf32, #tpu.memory_space<vmem>>, vector<1x1x256xf32>
    %67 = vector.shape_cast %66 : vector<1x1x256xf32> to vector<1x256xf32>
    %68 = vector.broadcast %67 : vector<1x256xf32> to vector<4x256xf32>
    %69 = arith.mulf %65, %68 : vector<4x256xf32>
    %c7_49 = arith.constant 7 : index
    %c0_50 = arith.constant 0 : index
    %c0_51 = arith.constant 0 : index
    %70 = vector.load %arg2[%c7_49, %c0_50, %c0_51] : memref<9x4x4xf32, #tpu.memory_space<vmem>>, vector<1x4x4xf32>
    %71 = vector.shape_cast %70 : vector<1x4x4xf32> to vector<4x4xf32>
    %cst_52 = arith.constant dense<0.000000e+00> : vector<4x256xf32>
    %72 = tpu.matmul %71, %69, %cst_52 {dimension_numbers = #tpu.dot_dimension_numbers<[1], [0], [0], [1], [0, 0, 1, 1], [], []>} : vector<4x4xf32>, vector<4x256xf32>, vector<4x256xf32> -> vector<4x256xf32>
    %73 = arith.addf %64, %72 : vector<4x256xf32>
    %c239_i32 = arith.constant 239 : i32
    %74 = tpu.dynamic_rotate %5 by %c239_i32 dim 1 : vector<4x256xf32>, i32 -> vector<4x256xf32>
    %c8 = arith.constant 8 : index
    %c0_53 = arith.constant 0 : index
    %c0_54 = arith.constant 0 : index
    %75 = vector.load %arg1[%c8, %c0_53, %c0_54] : memref<9x1x256xf32, #tpu.memory_space<vmem>>, vector<1x1x256xf32>
    %76 = vector.shape_cast %75 : vector<1x1x256xf32> to vector<1x256xf32>
    %77 = vector.broadcast %76 : vector<1x256xf32> to vector<4x256xf32>
    %78 = arith.mulf %74, %77 : vector<4x256xf32>
    %c8_55 = arith.constant 8 : index
    %c0_56 = arith.constant 0 : index
    %c0_57 = arith.constant 0 : index
    %79 = vector.load %arg2[%c8_55, %c0_56, %c0_57] : memref<9x4x4xf32, #tpu.memory_space<vmem>>, vector<1x4x4xf32>
    %80 = vector.shape_cast %79 : vector<1x4x4xf32> to vector<4x4xf32>
    %cst_58 = arith.constant dense<0.000000e+00> : vector<4x256xf32>
    %81 = tpu.matmul %80, %78, %cst_58 {dimension_numbers = #tpu.dot_dimension_numbers<[1], [0], [0], [1], [0, 0, 1, 1], [], []>} : vector<4x4xf32>, vector<4x256xf32>, vector<4x256xf32> -> vector<4x256xf32>
    %82 = arith.addf %73, %81 : vector<4x256xf32>
    %83 = vector.broadcast %0 : vector<4x1xf32> to vector<4x256xf32>
    %84 = arith.addf %82, %83 : vector<4x256xf32>
    %cst_59 = arith.constant 0.000000e+00 : f32
    %85 = vector.broadcast %cst_59 : f32 to vector<4x256xf32>
    %86 = arith.maximumf %84, %85 : vector<4x256xf32>
    %87 = vector.broadcast %1 : vector<4x1xf32> to vector<4x256xf32>
    %88 = arith.addf %3, %87 : vector<4x256xf32>
    %c17_i32_60 = arith.constant 17 : i32
    %89 = tpu.dynamic_rotate %86 by %c17_i32_60 dim 1 : vector<4x256xf32>, i32 -> vector<4x256xf32>
    %c0_61 = arith.constant 0 : index
    %c0_62 = arith.constant 0 : index
    %c0_63 = arith.constant 0 : index
    %90 = vector.load %arg1[%c0_61, %c0_62, %c0_63] : memref<9x1x256xf32, #tpu.memory_space<vmem>>, vector<1x1x256xf32>
    %91 = vector.shape_cast %90 : vector<1x1x256xf32> to vector<1x256xf32>
    %92 = vector.broadcast %91 : vector<1x256xf32> to vector<4x256xf32>
    %93 = arith.mulf %89, %92 : vector<4x256xf32>
    %c0_64 = arith.constant 0 : index
    %c0_65 = arith.constant 0 : index
    %c0_66 = arith.constant 0 : index
    %94 = vector.load %arg3[%c0_64, %c0_65, %c0_66] : memref<9x4x4xf32, #tpu.memory_space<vmem>>, vector<1x4x4xf32>
    %95 = vector.shape_cast %94 : vector<1x4x4xf32> to vector<4x4xf32>
    %cst_67 = arith.constant dense<0.000000e+00> : vector<4x256xf32>
    %96 = tpu.matmul %95, %93, %cst_67 {dimension_numbers = #tpu.dot_dimension_numbers<[1], [0], [0], [1], [0, 0, 1, 1], [], []>} : vector<4x4xf32>, vector<4x256xf32>, vector<4x256xf32> -> vector<4x256xf32>
    %97 = arith.addf %88, %96 : vector<4x256xf32>
    %c16_i32_68 = arith.constant 16 : i32
    %98 = tpu.dynamic_rotate %86 by %c16_i32_68 dim 1 : vector<4x256xf32>, i32 -> vector<4x256xf32>
    %c1_69 = arith.constant 1 : index
    %c0_70 = arith.constant 0 : index
    %c0_71 = arith.constant 0 : index
    %99 = vector.load %arg1[%c1_69, %c0_70, %c0_71] : memref<9x1x256xf32, #tpu.memory_space<vmem>>, vector<1x1x256xf32>
    %100 = vector.shape_cast %99 : vector<1x1x256xf32> to vector<1x256xf32>
    %101 = vector.broadcast %100 : vector<1x256xf32> to vector<4x256xf32>
    %102 = arith.mulf %98, %101 : vector<4x256xf32>
    %c1_72 = arith.constant 1 : index
    %c0_73 = arith.constant 0 : index
    %c0_74 = arith.constant 0 : index
    %103 = vector.load %arg3[%c1_72, %c0_73, %c0_74] : memref<9x4x4xf32, #tpu.memory_space<vmem>>, vector<1x4x4xf32>
    %104 = vector.shape_cast %103 : vector<1x4x4xf32> to vector<4x4xf32>
    %cst_75 = arith.constant dense<0.000000e+00> : vector<4x256xf32>
    %105 = tpu.matmul %104, %102, %cst_75 {dimension_numbers = #tpu.dot_dimension_numbers<[1], [0], [0], [1], [0, 0, 1, 1], [], []>} : vector<4x4xf32>, vector<4x256xf32>, vector<4x256xf32> -> vector<4x256xf32>
    %106 = arith.addf %97, %105 : vector<4x256xf32>
    %c15_i32_76 = arith.constant 15 : i32
    %107 = tpu.dynamic_rotate %86 by %c15_i32_76 dim 1 : vector<4x256xf32>, i32 -> vector<4x256xf32>
    %c2_77 = arith.constant 2 : index
    %c0_78 = arith.constant 0 : index
    %c0_79 = arith.constant 0 : index
    %108 = vector.load %arg1[%c2_77, %c0_78, %c0_79] : memref<9x1x256xf32, #tpu.memory_space<vmem>>, vector<1x1x256xf32>
    %109 = vector.shape_cast %108 : vector<1x1x256xf32> to vector<1x256xf32>
    %110 = vector.broadcast %109 : vector<1x256xf32> to vector<4x256xf32>
    %111 = arith.mulf %107, %110 : vector<4x256xf32>
    %c2_80 = arith.constant 2 : index
    %c0_81 = arith.constant 0 : index
    %c0_82 = arith.constant 0 : index
    %112 = vector.load %arg3[%c2_80, %c0_81, %c0_82] : memref<9x4x4xf32, #tpu.memory_space<vmem>>, vector<1x4x4xf32>
    %113 = vector.shape_cast %112 : vector<1x4x4xf32> to vector<4x4xf32>
    %cst_83 = arith.constant dense<0.000000e+00> : vector<4x256xf32>
    %114 = tpu.matmul %113, %111, %cst_83 {dimension_numbers = #tpu.dot_dimension_numbers<[1], [0], [0], [1], [0, 0, 1, 1], [], []>} : vector<4x4xf32>, vector<4x256xf32>, vector<4x256xf32> -> vector<4x256xf32>
    %115 = arith.addf %106, %114 : vector<4x256xf32>
    %c1_i32_84 = arith.constant 1 : i32
    %116 = tpu.dynamic_rotate %86 by %c1_i32_84 dim 1 : vector<4x256xf32>, i32 -> vector<4x256xf32>
    %c3_85 = arith.constant 3 : index
    %c0_86 = arith.constant 0 : index
    %c0_87 = arith.constant 0 : index
    %117 = vector.load %arg1[%c3_85, %c0_86, %c0_87] : memref<9x1x256xf32, #tpu.memory_space<vmem>>, vector<1x1x256xf32>
    %118 = vector.shape_cast %117 : vector<1x1x256xf32> to vector<1x256xf32>
    %119 = vector.broadcast %118 : vector<1x256xf32> to vector<4x256xf32>
    %120 = arith.mulf %116, %119 : vector<4x256xf32>
    %c3_88 = arith.constant 3 : index
    %c0_89 = arith.constant 0 : index
    %c0_90 = arith.constant 0 : index
    %121 = vector.load %arg3[%c3_88, %c0_89, %c0_90] : memref<9x4x4xf32, #tpu.memory_space<vmem>>, vector<1x4x4xf32>
    %122 = vector.shape_cast %121 : vector<1x4x4xf32> to vector<4x4xf32>
    %cst_91 = arith.constant dense<0.000000e+00> : vector<4x256xf32>
    %123 = tpu.matmul %122, %120, %cst_91 {dimension_numbers = #tpu.dot_dimension_numbers<[1], [0], [0], [1], [0, 0, 1, 1], [], []>} : vector<4x4xf32>, vector<4x256xf32>, vector<4x256xf32> -> vector<4x256xf32>
    %124 = arith.addf %115, %123 : vector<4x256xf32>
    %c4_92 = arith.constant 4 : index
    %c0_93 = arith.constant 0 : index
    %c0_94 = arith.constant 0 : index
    %125 = vector.load %arg3[%c4_92, %c0_93, %c0_94] : memref<9x4x4xf32, #tpu.memory_space<vmem>>, vector<1x4x4xf32>
    %126 = vector.shape_cast %125 : vector<1x4x4xf32> to vector<4x4xf32>
    %cst_95 = arith.constant dense<0.000000e+00> : vector<4x256xf32>
    %127 = tpu.matmul %126, %86, %cst_95 {dimension_numbers = #tpu.dot_dimension_numbers<[1], [0], [0], [1], [0, 0, 1, 1], [], []>} : vector<4x4xf32>, vector<4x256xf32>, vector<4x256xf32> -> vector<4x256xf32>
    %128 = arith.addf %124, %127 : vector<4x256xf32>
    %c255_i32_96 = arith.constant 255 : i32
    %129 = tpu.dynamic_rotate %86 by %c255_i32_96 dim 1 : vector<4x256xf32>, i32 -> vector<4x256xf32>
    %c5_97 = arith.constant 5 : index
    %c0_98 = arith.constant 0 : index
    %c0_99 = arith.constant 0 : index
    %130 = vector.load %arg1[%c5_97, %c0_98, %c0_99] : memref<9x1x256xf32, #tpu.memory_space<vmem>>, vector<1x1x256xf32>
    %131 = vector.shape_cast %130 : vector<1x1x256xf32> to vector<1x256xf32>
    %132 = vector.broadcast %131 : vector<1x256xf32> to vector<4x256xf32>
    %133 = arith.mulf %129, %132 : vector<4x256xf32>
    %c5_100 = arith.constant 5 : index
    %c0_101 = arith.constant 0 : index
    %c0_102 = arith.constant 0 : index
    %134 = vector.load %arg3[%c5_100, %c0_101, %c0_102] : memref<9x4x4xf32, #tpu.memory_space<vmem>>, vector<1x4x4xf32>
    %135 = vector.shape_cast %134 : vector<1x4x4xf32> to vector<4x4xf32>
    %cst_103 = arith.constant dense<0.000000e+00> : vector<4x256xf32>
    %136 = tpu.matmul %135, %133, %cst_103 {dimension_numbers = #tpu.dot_dimension_numbers<[1], [0], [0], [1], [0, 0, 1, 1], [], []>} : vector<4x4xf32>, vector<4x256xf32>, vector<4x256xf32> -> vector<4x256xf32>
    %137 = arith.addf %128, %136 : vector<4x256xf32>
    %c241_i32_104 = arith.constant 241 : i32
    %138 = tpu.dynamic_rotate %86 by %c241_i32_104 dim 1 : vector<4x256xf32>, i32 -> vector<4x256xf32>
    %c6_105 = arith.constant 6 : index
    %c0_106 = arith.constant 0 : index
    %c0_107 = arith.constant 0 : index
    %139 = vector.load %arg1[%c6_105, %c0_106, %c0_107] : memref<9x1x256xf32, #tpu.memory_space<vmem>>, vector<1x1x256xf32>
    %140 = vector.shape_cast %139 : vector<1x1x256xf32> to vector<1x256xf32>
    %141 = vector.broadcast %140 : vector<1x256xf32> to vector<4x256xf32>
    %142 = arith.mulf %138, %141 : vector<4x256xf32>
    %c6_108 = arith.constant 6 : index
    %c0_109 = arith.constant 0 : index
    %c0_110 = arith.constant 0 : index
    %143 = vector.load %arg3[%c6_108, %c0_109, %c0_110] : memref<9x4x4xf32, #tpu.memory_space<vmem>>, vector<1x4x4xf32>
    %144 = vector.shape_cast %143 : vector<1x4x4xf32> to vector<4x4xf32>
    %cst_111 = arith.constant dense<0.000000e+00> : vector<4x256xf32>
    %145 = tpu.matmul %144, %142, %cst_111 {dimension_numbers = #tpu.dot_dimension_numbers<[1], [0], [0], [1], [0, 0, 1, 1], [], []>} : vector<4x4xf32>, vector<4x256xf32>, vector<4x256xf32> -> vector<4x256xf32>
    %146 = arith.addf %137, %145 : vector<4x256xf32>
    %c240_i32_112 = arith.constant 240 : i32
    %147 = tpu.dynamic_rotate %86 by %c240_i32_112 dim 1 : vector<4x256xf32>, i32 -> vector<4x256xf32>
    %c7_113 = arith.constant 7 : index
    %c0_114 = arith.constant 0 : index
    %c0_115 = arith.constant 0 : index
    %148 = vector.load %arg1[%c7_113, %c0_114, %c0_115] : memref<9x1x256xf32, #tpu.memory_space<vmem>>, vector<1x1x256xf32>
    %149 = vector.shape_cast %148 : vector<1x1x256xf32> to vector<1x256xf32>
    %150 = vector.broadcast %149 : vector<1x256xf32> to vector<4x256xf32>
    %151 = arith.mulf %147, %150 : vector<4x256xf32>
    %c7_116 = arith.constant 7 : index
    %c0_117 = arith.constant 0 : index
    %c0_118 = arith.constant 0 : index
    %152 = vector.load %arg3[%c7_116, %c0_117, %c0_118] : memref<9x4x4xf32, #tpu.memory_space<vmem>>, vector<1x4x4xf32>
    %153 = vector.shape_cast %152 : vector<1x4x4xf32> to vector<4x4xf32>
    %cst_119 = arith.constant dense<0.000000e+00> : vector<4x256xf32>
    %154 = tpu.matmul %153, %151, %cst_119 {dimension_numbers = #tpu.dot_dimension_numbers<[1], [0], [0], [1], [0, 0, 1, 1], [], []>} : vector<4x4xf32>, vector<4x256xf32>, vector<4x256xf32> -> vector<4x256xf32>
    %155 = arith.addf %146, %154 : vector<4x256xf32>
    %c239_i32_120 = arith.constant 239 : i32
    %156 = tpu.dynamic_rotate %86 by %c239_i32_120 dim 1 : vector<4x256xf32>, i32 -> vector<4x256xf32>
    %c8_121 = arith.constant 8 : index
    %c0_122 = arith.constant 0 : index
    %c0_123 = arith.constant 0 : index
    %157 = vector.load %arg1[%c8_121, %c0_122, %c0_123] : memref<9x1x256xf32, #tpu.memory_space<vmem>>, vector<1x1x256xf32>
    %158 = vector.shape_cast %157 : vector<1x1x256xf32> to vector<1x256xf32>
    %159 = vector.broadcast %158 : vector<1x256xf32> to vector<4x256xf32>
    %160 = arith.mulf %156, %159 : vector<4x256xf32>
    %c8_124 = arith.constant 8 : index
    %c0_125 = arith.constant 0 : index
    %c0_126 = arith.constant 0 : index
    %161 = vector.load %arg3[%c8_124, %c0_125, %c0_126] : memref<9x4x4xf32, #tpu.memory_space<vmem>>, vector<1x4x4xf32>
    %162 = vector.shape_cast %161 : vector<1x4x4xf32> to vector<4x4xf32>
    %cst_127 = arith.constant dense<0.000000e+00> : vector<4x256xf32>
    %163 = tpu.matmul %162, %160, %cst_127 {dimension_numbers = #tpu.dot_dimension_numbers<[1], [0], [0], [1], [0, 0, 1, 1], [], []>} : vector<4x4xf32>, vector<4x256xf32>, vector<4x256xf32> -> vector<4x256xf32>
    %164 = arith.addf %155, %163 : vector<4x256xf32>
    %c0_128 = arith.constant 0 : index
    %c0_129 = arith.constant 0 : index
    %c0_130 = arith.constant 0 : index
    %165 = vector.load %arg7[%c0_128, %c0_129, %c0_130] : memref<2x4x256xf32, #tpu.memory_space<vmem>>, vector<1x4x256xf32>
    %166 = vector.shape_cast %165 : vector<1x4x256xf32> to vector<4x256xf32>
    %167 = vector.shape_cast %164 : vector<4x256xf32> to vector<1x4x256xf32>
    tpu.vector_store %arg7[%c0_128, %c0_129, %c0_130], %167 {strides = array<i32>} : memref<2x4x256xf32, #tpu.memory_space<vmem>>, vector<1x4x256xf32>,
    %c1_131 = arith.constant 1 : index
    %c0_132 = arith.constant 0 : index
    %c0_133 = arith.constant 0 : index
    %168 = vector.load %arg6[%c1_131, %c0_132, %c0_133] : memref<2x4x256xf32, #tpu.memory_space<vmem>>, vector<1x4x256xf32>
    %169 = vector.shape_cast %168 : vector<1x4x256xf32> to vector<4x256xf32>
    %cst_134 = arith.constant 0.000000e+00 : f32
    %170 = vector.broadcast %cst_134 : f32 to vector<4x256xf32>
    %171 = arith.maximumf %169, %170 : vector<4x256xf32>
    %cst_135 = arith.constant 0.000000e+00 : f32
    %172 = vector.broadcast %cst_135 : f32 to vector<4x256xf32>
    %c17_i32_136 = arith.constant 17 : i32
    %173 = tpu.dynamic_rotate %171 by %c17_i32_136 dim 1 : vector<4x256xf32>, i32 -> vector<4x256xf32>
    %c0_137 = arith.constant 0 : index
    %c0_138 = arith.constant 0 : index
    %c0_139 = arith.constant 0 : index
    %174 = vector.load %arg1[%c0_137, %c0_138, %c0_139] : memref<9x1x256xf32, #tpu.memory_space<vmem>>, vector<1x1x256xf32>
    %175 = vector.shape_cast %174 : vector<1x1x256xf32> to vector<1x256xf32>
    %176 = vector.broadcast %175 : vector<1x256xf32> to vector<4x256xf32>
    %177 = arith.mulf %173, %176 : vector<4x256xf32>
    %c0_140 = arith.constant 0 : index
    %c0_141 = arith.constant 0 : index
    %c0_142 = arith.constant 0 : index
    %178 = vector.load %arg2[%c0_140, %c0_141, %c0_142] : memref<9x4x4xf32, #tpu.memory_space<vmem>>, vector<1x4x4xf32>
    %179 = vector.shape_cast %178 : vector<1x4x4xf32> to vector<4x4xf32>
    %cst_143 = arith.constant dense<0.000000e+00> : vector<4x256xf32>
    %180 = tpu.matmul %179, %177, %cst_143 {dimension_numbers = #tpu.dot_dimension_numbers<[1], [0], [0], [1], [0, 0, 1, 1], [], []>} : vector<4x4xf32>, vector<4x256xf32>, vector<4x256xf32> -> vector<4x256xf32>
    %181 = arith.addf %172, %180 : vector<4x256xf32>
    %c16_i32_144 = arith.constant 16 : i32
    %182 = tpu.dynamic_rotate %171 by %c16_i32_144 dim 1 : vector<4x256xf32>, i32 -> vector<4x256xf32>
    %c1_145 = arith.constant 1 : index
    %c0_146 = arith.constant 0 : index
    %c0_147 = arith.constant 0 : index
    %183 = vector.load %arg1[%c1_145, %c0_146, %c0_147] : memref<9x1x256xf32, #tpu.memory_space<vmem>>, vector<1x1x256xf32>
    %184 = vector.shape_cast %183 : vector<1x1x256xf32> to vector<1x256xf32>
    %185 = vector.broadcast %184 : vector<1x256xf32> to vector<4x256xf32>
    %186 = arith.mulf %182, %185 : vector<4x256xf32>
    %c1_148 = arith.constant 1 : index
    %c0_149 = arith.constant 0 : index
    %c0_150 = arith.constant 0 : index
    %187 = vector.load %arg2[%c1_148, %c0_149, %c0_150] : memref<9x4x4xf32, #tpu.memory_space<vmem>>, vector<1x4x4xf32>
    %188 = vector.shape_cast %187 : vector<1x4x4xf32> to vector<4x4xf32>
    %cst_151 = arith.constant dense<0.000000e+00> : vector<4x256xf32>
    %189 = tpu.matmul %188, %186, %cst_151 {dimension_numbers = #tpu.dot_dimension_numbers<[1], [0], [0], [1], [0, 0, 1, 1], [], []>} : vector<4x4xf32>, vector<4x256xf32>, vector<4x256xf32> -> vector<4x256xf32>
    %190 = arith.addf %181, %189 : vector<4x256xf32>
    %c15_i32_152 = arith.constant 15 : i32
    %191 = tpu.dynamic_rotate %171 by %c15_i32_152 dim 1 : vector<4x256xf32>, i32 -> vector<4x256xf32>
    %c2_153 = arith.constant 2 : index
    %c0_154 = arith.constant 0 : index
    %c0_155 = arith.constant 0 : index
    %192 = vector.load %arg1[%c2_153, %c0_154, %c0_155] : memref<9x1x256xf32, #tpu.memory_space<vmem>>, vector<1x1x256xf32>
    %193 = vector.shape_cast %192 : vector<1x1x256xf32> to vector<1x256xf32>
    %194 = vector.broadcast %193 : vector<1x256xf32> to vector<4x256xf32>
    %195 = arith.mulf %191, %194 : vector<4x256xf32>
    %c2_156 = arith.constant 2 : index
    %c0_157 = arith.constant 0 : index
    %c0_158 = arith.constant 0 : index
    %196 = vector.load %arg2[%c2_156, %c0_157, %c0_158] : memref<9x4x4xf32, #tpu.memory_space<vmem>>, vector<1x4x4xf32>
    %197 = vector.shape_cast %196 : vector<1x4x4xf32> to vector<4x4xf32>
    %cst_159 = arith.constant dense<0.000000e+00> : vector<4x256xf32>
    %198 = tpu.matmul %197, %195, %cst_159 {dimension_numbers = #tpu.dot_dimension_numbers<[1], [0], [0], [1], [0, 0, 1, 1], [], []>} : vector<4x4xf32>, vector<4x256xf32>, vector<4x256xf32> -> vector<4x256xf32>
    %199 = arith.addf %190, %198 : vector<4x256xf32>
    %c1_i32_160 = arith.constant 1 : i32
    %200 = tpu.dynamic_rotate %171 by %c1_i32_160 dim 1 : vector<4x256xf32>, i32 -> vector<4x256xf32>
    %c3_161 = arith.constant 3 : index
    %c0_162 = arith.constant 0 : index
    %c0_163 = arith.constant 0 : index
    %201 = vector.load %arg1[%c3_161, %c0_162, %c0_163] : memref<9x1x256xf32, #tpu.memory_space<vmem>>, vector<1x1x256xf32>
    %202 = vector.shape_cast %201 : vector<1x1x256xf32> to vector<1x256xf32>
    %203 = vector.broadcast %202 : vector<1x256xf32> to vector<4x256xf32>
    %204 = arith.mulf %200, %203 : vector<4x256xf32>
    %c3_164 = arith.constant 3 : index
    %c0_165 = arith.constant 0 : index
    %c0_166 = arith.constant 0 : index
    %205 = vector.load %arg2[%c3_164, %c0_165, %c0_166] : memref<9x4x4xf32, #tpu.memory_space<vmem>>, vector<1x4x4xf32>
    %206 = vector.shape_cast %205 : vector<1x4x4xf32> to vector<4x4xf32>
    %cst_167 = arith.constant dense<0.000000e+00> : vector<4x256xf32>
    %207 = tpu.matmul %206, %204, %cst_167 {dimension_numbers = #tpu.dot_dimension_numbers<[1], [0], [0], [1], [0, 0, 1, 1], [], []>} : vector<4x4xf32>, vector<4x256xf32>, vector<4x256xf32> -> vector<4x256xf32>
    %208 = arith.addf %199, %207 : vector<4x256xf32>
    %c4_168 = arith.constant 4 : index
    %c0_169 = arith.constant 0 : index
    %c0_170 = arith.constant 0 : index
    %209 = vector.load %arg2[%c4_168, %c0_169, %c0_170] : memref<9x4x4xf32, #tpu.memory_space<vmem>>, vector<1x4x4xf32>
    %210 = vector.shape_cast %209 : vector<1x4x4xf32> to vector<4x4xf32>
    %cst_171 = arith.constant dense<0.000000e+00> : vector<4x256xf32>
    %211 = tpu.matmul %210, %171, %cst_171 {dimension_numbers = #tpu.dot_dimension_numbers<[1], [0], [0], [1], [0, 0, 1, 1], [], []>} : vector<4x4xf32>, vector<4x256xf32>, vector<4x256xf32> -> vector<4x256xf32>
    %212 = arith.addf %208, %211 : vector<4x256xf32>
    %c255_i32_172 = arith.constant 255 : i32
    %213 = tpu.dynamic_rotate %171 by %c255_i32_172 dim 1 : vector<4x256xf32>, i32 -> vector<4x256xf32>
    %c5_173 = arith.constant 5 : index
    %c0_174 = arith.constant 0 : index
    %c0_175 = arith.constant 0 : index
    %214 = vector.load %arg1[%c5_173, %c0_174, %c0_175] : memref<9x1x256xf32, #tpu.memory_space<vmem>>, vector<1x1x256xf32>
    %215 = vector.shape_cast %214 : vector<1x1x256xf32> to vector<1x256xf32>
    %216 = vector.broadcast %215 : vector<1x256xf32> to vector<4x256xf32>
    %217 = arith.mulf %213, %216 : vector<4x256xf32>
    %c5_176 = arith.constant 5 : index
    %c0_177 = arith.constant 0 : index
    %c0_178 = arith.constant 0 : index
    %218 = vector.load %arg2[%c5_176, %c0_177, %c0_178] : memref<9x4x4xf32, #tpu.memory_space<vmem>>, vector<1x4x4xf32>
    %219 = vector.shape_cast %218 : vector<1x4x4xf32> to vector<4x4xf32>
    %cst_179 = arith.constant dense<0.000000e+00> : vector<4x256xf32>
    %220 = tpu.matmul %219, %217, %cst_179 {dimension_numbers = #tpu.dot_dimension_numbers<[1], [0], [0], [1], [0, 0, 1, 1], [], []>} : vector<4x4xf32>, vector<4x256xf32>, vector<4x256xf32> -> vector<4x256xf32>
    %221 = arith.addf %212, %220 : vector<4x256xf32>
    %c241_i32_180 = arith.constant 241 : i32
    %222 = tpu.dynamic_rotate %171 by %c241_i32_180 dim 1 : vector<4x256xf32>, i32 -> vector<4x256xf32>
    %c6_181 = arith.constant 6 : index
    %c0_182 = arith.constant 0 : index
    %c0_183 = arith.constant 0 : index
    %223 = vector.load %arg1[%c6_181, %c0_182, %c0_183] : memref<9x1x256xf32, #tpu.memory_space<vmem>>, vector<1x1x256xf32>
    %224 = vector.shape_cast %223 : vector<1x1x256xf32> to vector<1x256xf32>
    %225 = vector.broadcast %224 : vector<1x256xf32> to vector<4x256xf32>
    %226 = arith.mulf %222, %225 : vector<4x256xf32>
    %c6_184 = arith.constant 6 : index
    %c0_185 = arith.constant 0 : index
    %c0_186 = arith.constant 0 : index
    %227 = vector.load %arg2[%c6_184, %c0_185, %c0_186] : memref<9x4x4xf32, #tpu.memory_space<vmem>>, vector<1x4x4xf32>
    %228 = vector.shape_cast %227 : vector<1x4x4xf32> to vector<4x4xf32>
    %cst_187 = arith.constant dense<0.000000e+00> : vector<4x256xf32>
    %229 = tpu.matmul %228, %226, %cst_187 {dimension_numbers = #tpu.dot_dimension_numbers<[1], [0], [0], [1], [0, 0, 1, 1], [], []>} : vector<4x4xf32>, vector<4x256xf32>, vector<4x256xf32> -> vector<4x256xf32>
    %230 = arith.addf %221, %229 : vector<4x256xf32>
    %c240_i32_188 = arith.constant 240 : i32
    %231 = tpu.dynamic_rotate %171 by %c240_i32_188 dim 1 : vector<4x256xf32>, i32 -> vector<4x256xf32>
    %c7_189 = arith.constant 7 : index
    %c0_190 = arith.constant 0 : index
    %c0_191 = arith.constant 0 : index
    %232 = vector.load %arg1[%c7_189, %c0_190, %c0_191] : memref<9x1x256xf32, #tpu.memory_space<vmem>>, vector<1x1x256xf32>
    %233 = vector.shape_cast %232 : vector<1x1x256xf32> to vector<1x256xf32>
    %234 = vector.broadcast %233 : vector<1x256xf32> to vector<4x256xf32>
    %235 = arith.mulf %231, %234 : vector<4x256xf32>
    %c7_192 = arith.constant 7 : index
    %c0_193 = arith.constant 0 : index
    %c0_194 = arith.constant 0 : index
    %236 = vector.load %arg2[%c7_192, %c0_193, %c0_194] : memref<9x4x4xf32, #tpu.memory_space<vmem>>, vector<1x4x4xf32>
    %237 = vector.shape_cast %236 : vector<1x4x4xf32> to vector<4x4xf32>
    %cst_195 = arith.constant dense<0.000000e+00> : vector<4x256xf32>
    %238 = tpu.matmul %237, %235, %cst_195 {dimension_numbers = #tpu.dot_dimension_numbers<[1], [0], [0], [1], [0, 0, 1, 1], [], []>} : vector<4x4xf32>, vector<4x256xf32>, vector<4x256xf32> -> vector<4x256xf32>
    %239 = arith.addf %230, %238 : vector<4x256xf32>
    %c239_i32_196 = arith.constant 239 : i32
    %240 = tpu.dynamic_rotate %171 by %c239_i32_196 dim 1 : vector<4x256xf32>, i32 -> vector<4x256xf32>
    %c8_197 = arith.constant 8 : index
    %c0_198 = arith.constant 0 : index
    %c0_199 = arith.constant 0 : index
    %241 = vector.load %arg1[%c8_197, %c0_198, %c0_199] : memref<9x1x256xf32, #tpu.memory_space<vmem>>, vector<1x1x256xf32>
    %242 = vector.shape_cast %241 : vector<1x1x256xf32> to vector<1x256xf32>
    %243 = vector.broadcast %242 : vector<1x256xf32> to vector<4x256xf32>
    %244 = arith.mulf %240, %243 : vector<4x256xf32>
    %c8_200 = arith.constant 8 : index
    %c0_201 = arith.constant 0 : index
    %c0_202 = arith.constant 0 : index
    %245 = vector.load %arg2[%c8_200, %c0_201, %c0_202] : memref<9x4x4xf32, #tpu.memory_space<vmem>>, vector<1x4x4xf32>
    %246 = vector.shape_cast %245 : vector<1x4x4xf32> to vector<4x4xf32>
    %cst_203 = arith.constant dense<0.000000e+00> : vector<4x256xf32>
    %247 = tpu.matmul %246, %244, %cst_203 {dimension_numbers = #tpu.dot_dimension_numbers<[1], [0], [0], [1], [0, 0, 1, 1], [], []>} : vector<4x4xf32>, vector<4x256xf32>, vector<4x256xf32> -> vector<4x256xf32>
    %248 = arith.addf %239, %247 : vector<4x256xf32>
    %249 = vector.broadcast %0 : vector<4x1xf32> to vector<4x256xf32>
    %250 = arith.addf %248, %249 : vector<4x256xf32>
    %cst_204 = arith.constant 0.000000e+00 : f32
    %251 = vector.broadcast %cst_204 : f32 to vector<4x256xf32>
    %252 = arith.maximumf %250, %251 : vector<4x256xf32>
    %253 = vector.broadcast %1 : vector<4x1xf32> to vector<4x256xf32>
    %254 = arith.addf %169, %253 : vector<4x256xf32>
    %c17_i32_205 = arith.constant 17 : i32
    %255 = tpu.dynamic_rotate %252 by %c17_i32_205 dim 1 : vector<4x256xf32>, i32 -> vector<4x256xf32>
    %c0_206 = arith.constant 0 : index
    %c0_207 = arith.constant 0 : index
    %c0_208 = arith.constant 0 : index
    %256 = vector.load %arg1[%c0_206, %c0_207, %c0_208] : memref<9x1x256xf32, #tpu.memory_space<vmem>>, vector<1x1x256xf32>
    %257 = vector.shape_cast %256 : vector<1x1x256xf32> to vector<1x256xf32>
    %258 = vector.broadcast %257 : vector<1x256xf32> to vector<4x256xf32>
    %259 = arith.mulf %255, %258 : vector<4x256xf32>
    %c0_209 = arith.constant 0 : index
    %c0_210 = arith.constant 0 : index
    %c0_211 = arith.constant 0 : index
    %260 = vector.load %arg3[%c0_209, %c0_210, %c0_211] : memref<9x4x4xf32, #tpu.memory_space<vmem>>, vector<1x4x4xf32>
    %261 = vector.shape_cast %260 : vector<1x4x4xf32> to vector<4x4xf32>
    %cst_212 = arith.constant dense<0.000000e+00> : vector<4x256xf32>
    %262 = tpu.matmul %261, %259, %cst_212 {dimension_numbers = #tpu.dot_dimension_numbers<[1], [0], [0], [1], [0, 0, 1, 1], [], []>} : vector<4x4xf32>, vector<4x256xf32>, vector<4x256xf32> -> vector<4x256xf32>
    %263 = arith.addf %254, %262 : vector<4x256xf32>
    %c16_i32_213 = arith.constant 16 : i32
    %264 = tpu.dynamic_rotate %252 by %c16_i32_213 dim 1 : vector<4x256xf32>, i32 -> vector<4x256xf32>
    %c1_214 = arith.constant 1 : index
    %c0_215 = arith.constant 0 : index
    %c0_216 = arith.constant 0 : index
    %265 = vector.load %arg1[%c1_214, %c0_215, %c0_216] : memref<9x1x256xf32, #tpu.memory_space<vmem>>, vector<1x1x256xf32>
    %266 = vector.shape_cast %265 : vector<1x1x256xf32> to vector<1x256xf32>
    %267 = vector.broadcast %266 : vector<1x256xf32> to vector<4x256xf32>
    %268 = arith.mulf %264, %267 : vector<4x256xf32>
    %c1_217 = arith.constant 1 : index
    %c0_218 = arith.constant 0 : index
    %c0_219 = arith.constant 0 : index
    %269 = vector.load %arg3[%c1_217, %c0_218, %c0_219] : memref<9x4x4xf32, #tpu.memory_space<vmem>>, vector<1x4x4xf32>
    %270 = vector.shape_cast %269 : vector<1x4x4xf32> to vector<4x4xf32>
    %cst_220 = arith.constant dense<0.000000e+00> : vector<4x256xf32>
    %271 = tpu.matmul %270, %268, %cst_220 {dimension_numbers = #tpu.dot_dimension_numbers<[1], [0], [0], [1], [0, 0, 1, 1], [], []>} : vector<4x4xf32>, vector<4x256xf32>, vector<4x256xf32> -> vector<4x256xf32>
    %272 = arith.addf %263, %271 : vector<4x256xf32>
    %c15_i32_221 = arith.constant 15 : i32
    %273 = tpu.dynamic_rotate %252 by %c15_i32_221 dim 1 : vector<4x256xf32>, i32 -> vector<4x256xf32>
    %c2_222 = arith.constant 2 : index
    %c0_223 = arith.constant 0 : index
    %c0_224 = arith.constant 0 : index
    %274 = vector.load %arg1[%c2_222, %c0_223, %c0_224] : memref<9x1x256xf32, #tpu.memory_space<vmem>>, vector<1x1x256xf32>
    %275 = vector.shape_cast %274 : vector<1x1x256xf32> to vector<1x256xf32>
    %276 = vector.broadcast %275 : vector<1x256xf32> to vector<4x256xf32>
    %277 = arith.mulf %273, %276 : vector<4x256xf32>
    %c2_225 = arith.constant 2 : index
    %c0_226 = arith.constant 0 : index
    %c0_227 = arith.constant 0 : index
    %278 = vector.load %arg3[%c2_225, %c0_226, %c0_227] : memref<9x4x4xf32, #tpu.memory_space<vmem>>, vector<1x4x4xf32>
    %279 = vector.shape_cast %278 : vector<1x4x4xf32> to vector<4x4xf32>
    %cst_228 = arith.constant dense<0.000000e+00> : vector<4x256xf32>
    %280 = tpu.matmul %279, %277, %cst_228 {dimension_numbers = #tpu.dot_dimension_numbers<[1], [0], [0], [1], [0, 0, 1, 1], [], []>} : vector<4x4xf32>, vector<4x256xf32>, vector<4x256xf32> -> vector<4x256xf32>
    %281 = arith.addf %272, %280 : vector<4x256xf32>
    %c1_i32_229 = arith.constant 1 : i32
    %282 = tpu.dynamic_rotate %252 by %c1_i32_229 dim 1 : vector<4x256xf32>, i32 -> vector<4x256xf32>
    %c3_230 = arith.constant 3 : index
    %c0_231 = arith.constant 0 : index
    %c0_232 = arith.constant 0 : index
    %283 = vector.load %arg1[%c3_230, %c0_231, %c0_232] : memref<9x1x256xf32, #tpu.memory_space<vmem>>, vector<1x1x256xf32>
    %284 = vector.shape_cast %283 : vector<1x1x256xf32> to vector<1x256xf32>
    %285 = vector.broadcast %284 : vector<1x256xf32> to vector<4x256xf32>
    %286 = arith.mulf %282, %285 : vector<4x256xf32>
    %c3_233 = arith.constant 3 : index
    %c0_234 = arith.constant 0 : index
    %c0_235 = arith.constant 0 : index
    %287 = vector.load %arg3[%c3_233, %c0_234, %c0_235] : memref<9x4x4xf32, #tpu.memory_space<vmem>>, vector<1x4x4xf32>
    %288 = vector.shape_cast %287 : vector<1x4x4xf32> to vector<4x4xf32>
    %cst_236 = arith.constant dense<0.000000e+00> : vector<4x256xf32>
    %289 = tpu.matmul %288, %286, %cst_236 {dimension_numbers = #tpu.dot_dimension_numbers<[1], [0], [0], [1], [0, 0, 1, 1], [], []>} : vector<4x4xf32>, vector<4x256xf32>, vector<4x256xf32> -> vector<4x256xf32>
    %290 = arith.addf %281, %289 : vector<4x256xf32>
    %c4_237 = arith.constant 4 : index
    %c0_238 = arith.constant 0 : index
    %c0_239 = arith.constant 0 : index
    %291 = vector.load %arg3[%c4_237, %c0_238, %c0_239] : memref<9x4x4xf32, #tpu.memory_space<vmem>>, vector<1x4x4xf32>
    %292 = vector.shape_cast %291 : vector<1x4x4xf32> to vector<4x4xf32>
    %cst_240 = arith.constant dense<0.000000e+00> : vector<4x256xf32>
    %293 = tpu.matmul %292, %252, %cst_240 {dimension_numbers = #tpu.dot_dimension_numbers<[1], [0], [0], [1], [0, 0, 1, 1], [], []>} : vector<4x4xf32>, vector<4x256xf32>, vector<4x256xf32> -> vector<4x256xf32>
    %294 = arith.addf %290, %293 : vector<4x256xf32>
    %c255_i32_241 = arith.constant 255 : i32
    %295 = tpu.dynamic_rotate %252 by %c255_i32_241 dim 1 : vector<4x256xf32>, i32 -> vector<4x256xf32>
    %c5_242 = arith.constant 5 : index
    %c0_243 = arith.constant 0 : index
    %c0_244 = arith.constant 0 : index
    %296 = vector.load %arg1[%c5_242, %c0_243, %c0_244] : memref<9x1x256xf32, #tpu.memory_space<vmem>>, vector<1x1x256xf32>
    %297 = vector.shape_cast %296 : vector<1x1x256xf32> to vector<1x256xf32>
    %298 = vector.broadcast %297 : vector<1x256xf32> to vector<4x256xf32>
    %299 = arith.mulf %295, %298 : vector<4x256xf32>
    %c5_245 = arith.constant 5 : index
    %c0_246 = arith.constant 0 : index
    %c0_247 = arith.constant 0 : index
    %300 = vector.load %arg3[%c5_245, %c0_246, %c0_247] : memref<9x4x4xf32, #tpu.memory_space<vmem>>, vector<1x4x4xf32>
    %301 = vector.shape_cast %300 : vector<1x4x4xf32> to vector<4x4xf32>
    %cst_248 = arith.constant dense<0.000000e+00> : vector<4x256xf32>
    %302 = tpu.matmul %301, %299, %cst_248 {dimension_numbers = #tpu.dot_dimension_numbers<[1], [0], [0], [1], [0, 0, 1, 1], [], []>} : vector<4x4xf32>, vector<4x256xf32>, vector<4x256xf32> -> vector<4x256xf32>
    %303 = arith.addf %294, %302 : vector<4x256xf32>
    %c241_i32_249 = arith.constant 241 : i32
    %304 = tpu.dynamic_rotate %252 by %c241_i32_249 dim 1 : vector<4x256xf32>, i32 -> vector<4x256xf32>
    %c6_250 = arith.constant 6 : index
    %c0_251 = arith.constant 0 : index
    %c0_252 = arith.constant 0 : index
    %305 = vector.load %arg1[%c6_250, %c0_251, %c0_252] : memref<9x1x256xf32, #tpu.memory_space<vmem>>, vector<1x1x256xf32>
    %306 = vector.shape_cast %305 : vector<1x1x256xf32> to vector<1x256xf32>
    %307 = vector.broadcast %306 : vector<1x256xf32> to vector<4x256xf32>
    %308 = arith.mulf %304, %307 : vector<4x256xf32>
    %c6_253 = arith.constant 6 : index
    %c0_254 = arith.constant 0 : index
    %c0_255 = arith.constant 0 : index
    %309 = vector.load %arg3[%c6_253, %c0_254, %c0_255] : memref<9x4x4xf32, #tpu.memory_space<vmem>>, vector<1x4x4xf32>
    %310 = vector.shape_cast %309 : vector<1x4x4xf32> to vector<4x4xf32>
    %cst_256 = arith.constant dense<0.000000e+00> : vector<4x256xf32>
    %311 = tpu.matmul %310, %308, %cst_256 {dimension_numbers = #tpu.dot_dimension_numbers<[1], [0], [0], [1], [0, 0, 1, 1], [], []>} : vector<4x4xf32>, vector<4x256xf32>, vector<4x256xf32> -> vector<4x256xf32>
    %312 = arith.addf %303, %311 : vector<4x256xf32>
    %c240_i32_257 = arith.constant 240 : i32
    %313 = tpu.dynamic_rotate %252 by %c240_i32_257 dim 1 : vector<4x256xf32>, i32 -> vector<4x256xf32>
    %c7_258 = arith.constant 7 : index
    %c0_259 = arith.constant 0 : index
    %c0_260 = arith.constant 0 : index
    %314 = vector.load %arg1[%c7_258, %c0_259, %c0_260] : memref<9x1x256xf32, #tpu.memory_space<vmem>>, vector<1x1x256xf32>
    %315 = vector.shape_cast %314 : vector<1x1x256xf32> to vector<1x256xf32>
    %316 = vector.broadcast %315 : vector<1x256xf32> to vector<4x256xf32>
    %317 = arith.mulf %313, %316 : vector<4x256xf32>
    %c7_261 = arith.constant 7 : index
    %c0_262 = arith.constant 0 : index
    %c0_263 = arith.constant 0 : index
    %318 = vector.load %arg3[%c7_261, %c0_262, %c0_263] : memref<9x4x4xf32, #tpu.memory_space<vmem>>, vector<1x4x4xf32>
    %319 = vector.shape_cast %318 : vector<1x4x4xf32> to vector<4x4xf32>
    %cst_264 = arith.constant dense<0.000000e+00> : vector<4x256xf32>
    %320 = tpu.matmul %319, %317, %cst_264 {dimension_numbers = #tpu.dot_dimension_numbers<[1], [0], [0], [1], [0, 0, 1, 1], [], []>} : vector<4x4xf32>, vector<4x256xf32>, vector<4x256xf32> -> vector<4x256xf32>
    %321 = arith.addf %312, %320 : vector<4x256xf32>
    %c239_i32_265 = arith.constant 239 : i32
    %322 = tpu.dynamic_rotate %252 by %c239_i32_265 dim 1 : vector<4x256xf32>, i32 -> vector<4x256xf32>
    %c8_266 = arith.constant 8 : index
    %c0_267 = arith.constant 0 : index
    %c0_268 = arith.constant 0 : index
    %323 = vector.load %arg1[%c8_266, %c0_267, %c0_268] : memref<9x1x256xf32, #tpu.memory_space<vmem>>, vector<1x1x256xf32>
    %324 = vector.shape_cast %323 : vector<1x1x256xf32> to vector<1x256xf32>
    %325 = vector.broadcast %324 : vector<1x256xf32> to vector<4x256xf32>
    %326 = arith.mulf %322, %325 : vector<4x256xf32>
    %c8_269 = arith.constant 8 : index
    %c0_270 = arith.constant 0 : index
    %c0_271 = arith.constant 0 : index
    %327 = vector.load %arg3[%c8_269, %c0_270, %c0_271] : memref<9x4x4xf32, #tpu.memory_space<vmem>>, vector<1x4x4xf32>
    %328 = vector.shape_cast %327 : vector<1x4x4xf32> to vector<4x4xf32>
    %cst_272 = arith.constant dense<0.000000e+00> : vector<4x256xf32>
    %329 = tpu.matmul %328, %326, %cst_272 {dimension_numbers = #tpu.dot_dimension_numbers<[1], [0], [0], [1], [0, 0, 1, 1], [], []>} : vector<4x4xf32>, vector<4x256xf32>, vector<4x256xf32> -> vector<4x256xf32>
    %330 = arith.addf %321, %329 : vector<4x256xf32>
    %c1_273 = arith.constant 1 : index
    %c0_274 = arith.constant 0 : index
    %c0_275 = arith.constant 0 : index
    %331 = vector.load %arg7[%c1_273, %c0_274, %c0_275] : memref<2x4x256xf32, #tpu.memory_space<vmem>>, vector<1x4x256xf32>
    %332 = vector.shape_cast %331 : vector<1x4x256xf32> to vector<4x256xf32>
    %333 = vector.shape_cast %330 : vector<4x256xf32> to vector<1x4x256xf32>
    tpu.vector_store %arg7[%c1_273, %c0_274, %c0_275], %333 {strides = array<i32>} : memref<2x4x256xf32, #tpu.memory_space<vmem>>, vector<1x4x256xf32>,
    return
  }
  func.func @transform_0(%arg0: i32) -> (i32, i32, i32) {
    %c0_i32 = arith.constant 0 : i32
    %c0_i32_0 = arith.constant 0 : i32
    %c0_i32_1 = arith.constant 0 : i32
    %c0_i32_2 = arith.constant 0 : i32
    return %c0_i32, %c0_i32_0, %c0_i32_1 : i32, i32, i32
  }
  func.func @transform_1(%arg0: i32) -> (i32, i32, i32) {
    %c0_i32 = arith.constant 0 : i32
    %c0_i32_0 = arith.constant 0 : i32
    %c0_i32_1 = arith.constant 0 : i32
    %c0_i32_2 = arith.constant 0 : i32
    return %c0_i32, %c0_i32_0, %c0_i32_1 : i32, i32, i32
  }
  func.func @transform_2(%arg0: i32) -> (i32, i32, i32) {
    %c0_i32 = arith.constant 0 : i32
    %c0_i32_0 = arith.constant 0 : i32
    %c0_i32_1 = arith.constant 0 : i32
    %c0_i32_2 = arith.constant 0 : i32
    return %c0_i32, %c0_i32_0, %c0_i32_1 : i32, i32, i32
  }
  func.func @transform_3(%arg0: i32) -> (i32, i32) {
    %c0_i32 = arith.constant 0 : i32
    %c0_i32_0 = arith.constant 0 : i32
    %c0_i32_1 = arith.constant 0 : i32
    return %c0_i32, %c0_i32_0 : i32, i32
  }
  func.func @transform_4(%arg0: i32) -> (i32, i32) {
    %c0_i32 = arith.constant 0 : i32
    %c0_i32_0 = arith.constant 0 : i32
    %c0_i32_1 = arith.constant 0 : i32
    return %c0_i32, %c0_i32_0 : i32, i32
  }
  func.func @transform_5(%arg0: i32) -> (i32, i32, i32) {
    %c0_i32 = arith.constant 0 : i32
    %c0_i32_0 = arith.constant 0 : i32
    %c0_i32_1 = arith.constant 0 : i32
    return %arg0, %c0_i32, %c0_i32_0 : i32, i32, i32
  }
  func.func @transform_6(%arg0: i32) -> (i32, i32, i32) {
    %c0_i32 = arith.constant 0 : i32
    %c0_i32_0 = arith.constant 0 : i32
    %c0_i32_1 = arith.constant 0 : i32
    return %arg0, %c0_i32, %c0_i32_0 : i32, i32, i32
  }
}

</mosaic_0001>

<llo_original>
// kernel: residual_block.1
$region0: #{residual_block.1}
  #allocation0 [shape = 'u32[]', space=smem, size = 0x4, offset = 0x4, fixed_abs, tag = 'smem constant byte address 0x4 - core index']
  #allocation1 [shape = 'u32[144,128]{1,0:T(1,128)}', space=vmem, size = 0x12000, scoped, tag = 'internal scratch']
  %s0 = inlined_call_operand.vmem [shape: f32[9,1,256], index: 0, kind: input, shape index: {}]
  %s1 = inlined_call_operand.vmem [shape: f32[9,4,4], index: 1, kind: input, shape index: {}]
  %s2 = inlined_call_operand.vmem [shape: f32[9,4,4], index: 2, kind: input, shape index: {}]
  %s3 = inlined_call_operand.vmem [shape: f32[4,1], index: 3, kind: input, shape index: {}]
  %s4 = inlined_call_operand.vmem [shape: f32[4,1], index: 4, kind: input, shape index: {}]
  %s5 = inlined_call_operand.vmem [shape: f32[2,4,256], index: 5, kind: input, shape index: {}]
  %s6 = inlined_call_operand.vmem [shape: f32[2,4,256], index: 6, kind: output, shape index: {}]
  %s7 = sld [smem:[#allocation0]]
  $region34: #{residual_block.1} parent=0
    _
  %s9 = ssub.s32 1, %s7
  %s10 = scalar_select 0, %s9, %s7
  // Predicated region
  $region2: #{residual_block.1} parent=0 // pred_check
    _
  $region3: #{residual_block.1} parent=0 // pred_check_branch
    %12 = sbr.rel (0) target = $region5
  $region4: #{residual_block.1} parent=0 // pred_region
    _
  $region5: #{residual_block.1} parent=0 // pred_fallthru
    _
  // Predicated region
  $region6: #{residual_block.1} parent=0 // pred_check
    _
  $region7: #{residual_block.1} parent=0 // pred_check_branch
    %14 = sbr.rel (0) target = $region9
  $region8: #{residual_block.1} parent=0 // pred_region
    _
  $region9: #{residual_block.1} parent=0 // pred_fallthru
    _
  // Predicated region
  $region10: #{residual_block.1} parent=0 // pred_check
    _
  $region11: #{residual_block.1} parent=0 // pred_check_branch
    %16 = sbr.rel (0) target = $region13
  $region12: #{residual_block.1} parent=0 // pred_region
    _
  $region13: #{residual_block.1} parent=0 // pred_fallthru
    _
  // Predicated region
  $region14: #{residual_block.1} parent=0 // pred_check
    _
  $region15: #{residual_block.1} parent=0 // pred_check_branch
    %18 = sbr.rel (0) target = $region17
  $region16: #{residual_block.1} parent=0 // pred_region
    _
  $region17: #{residual_block.1} parent=0 // pred_fallthru
    _
  // Predicated region
  $region18: #{residual_block.1} parent=0 // pred_check
    _
  $region19: #{residual_block.1} parent=0 // pred_check_branch
    %20 = sbr.rel (0) target = $region21
  $region20: #{residual_block.1} parent=0 // pred_region
    _
  $region21: #{residual_block.1} parent=0 // pred_fallthru
    _
  // Predicated region
  $region22: #{residual_block.1} parent=0 // pred_check
    _
  $region23: #{residual_block.1} parent=0 // pred_check_branch
    %22 = sbr.rel (0) target = $region25
  $region24: #{residual_block.1} parent=0 // pred_region
    _
  $region25: #{residual_block.1} parent=0 // pred_fallthru
    _
  %v23 = vld [vmem:[%s3] sm:$0xf]
  %v24 = vld [vmem:[%s4] sm:$0xf]
  %v25 = vld [vmem:[%s5] sm:$0xff]
  %v26 = vmax.f32 %v25, 0.0
  %v28 = vcombine.high %v26, %v26
  %30 = vrot.lane.b32.xlu0 %v26, 17
  %v31 = vpop.permute.xlu0 %30
  %32 = vrot.lane.b32.xlu0 %v28, 17
  %v33 = vpop.permute.xlu0 %32
  %v34 = vlaneseq
  %v35 = vand.u32 %v34, 127
  %vm36 = vcmp.lt.s32.totalorder %v35, 17
  %v37 = vsel %vm36, %v31, %v33
  %v38 = vsel %vm36, %v33, %v31
  %v39 = vld [vmem:[%s0] sm:$0x3]
  %v41 = vlaneseq
  %v42 = vshrl.u32 %v41, 7
  %v43 = vsub.s32 0, %v42
  %v44 = vrot.slane %v39, %v43
  %v45 = vlaneseq
  %v46 = vshrl.u32 %v45, 7
  %v47 = vsub.s32 1, %v46
  %v48 = vrot.slane %v39, %v47
  %v51 = vmul.f32 %v38, %v44
  %v52 = vmul.f32 %v37, %v48
  %v53 = vld [vmem:[%s1] sm:$0xf]
  %54 = vrot.lane.b32.xlu0 %v26, 16
  %v55 = vpop.permute.xlu0 %54
  %56 = vrot.lane.b32.xlu0 %v28, 16
  %v57 = vpop.permute.xlu0 %56
  %vm58 = vcmp.lt.s32.totalorder %v35, 16
  %v59 = vsel %vm58, %v55, %v57
  %v60 = vsel %vm58, %v57, %v55
  %s61 = scalar_lea.vmem %s0, 2
  %v62 = vld [vmem:[%s61] sm:$0x3]
  %v64 = vlaneseq
  %v65 = vshrl.u32 %v64, 7
  %v66 = vsub.s32 0, %v65
  %v67 = vrot.slane %v62, %v66
  %v68 = vlaneseq
  %v69 = vshrl.u32 %v68, 7
  %v70 = vsub.s32 1, %v69
  %v71 = vrot.slane %v62, %v70
  %v74 = vmul.f32 %v60, %v67
  %v75 = vmul.f32 %v59, %v71
  %s76 = scalar_lea.vmem %s1, 4
  %v77 = vld [vmem:[%s76] sm:$0xf]
  %vm78 = vcmask 31744
  %v80 = vsel %vm78, %v77, 0
  %vm82 = vcmask 1043456
  %v84 = vsel %vm82, %v74, 0
  %v87 = vsel %vm82, %v75, 0
  %89 = vmatprep.subr.mxu0 %v87
  %90 = vmatpush1.msra.mxu0 %v84
  %91 = vmatprep.subr.mxu0 0.0
  %92 = vmatpush1.msra.mxu0 0.0
  %93 = vmatprep.subr.mxu0 0.0
  %94 = vmatpush1.msra.mxu0 0.0
  %95 = vmatprep.subr.mxu0 0.0
  %96 = vmatpush1.msra.mxu0 0.0
  %97 = vmatprep.subr.mxu0 0.0
  %98 = vmatpush1.msra.mxu0 0.0
  %99 = vmatprep.subr.mxu0 0.0
  %100 = vmatpush1.msra.mxu0 0.0
  %101 = vmatprep.subr.mxu0 0.0
  %102 = vmatpush1.msra.mxu0 0.0
  %103 = vmatprep.subr.mxu0 0.0
  %104 = vmatpush1.msra.mxu0 0.0
  %105 = vmatprep.subr.mxu0 0.0
  %106 = vmatpush1.msra.mxu0 0.0
  %107 = vmatprep.subr.mxu0 0.0
  %108 = vmatpush1.msra.mxu0 0.0
  %109 = vmatprep.subr.mxu0 0.0
  %110 = vmatpush1.msra.mxu0 0.0
  %111 = vmatprep.subr.mxu0 0.0
  %112 = vmatpush1.msra.mxu0 0.0
  %113 = vmatprep.subr.mxu0 0.0
  %114 = vmatpush1.msra.mxu0 0.0
  %115 = vmatprep.subr.mxu0 0.0
  %116 = vmatpush1.msra.mxu0 0.0
  %117 = vmatprep.subr.mxu0 0.0
  %118 = vmatpush1.msra.mxu0 0.0
  %119 = vmatprep.subr.mxu0 0.0
  %120 = vmatpush1.msra.mxu0 0.0
  %121 = vmatprep.subr.mxu0 0.0
  %122 = vmatpush1.msra.mxu0 0.0
  %123 = vmatprep.subr.mxu0 0.0
  %124 = vmatpush1.msra.mxu0 0.0
  %125 = vmatprep.subr.mxu0 0.0
  %126 = vmatpush1.msra.mxu0 0.0
  %127 = vmatprep.subr.mxu0 0.0
  %128 = vmatpush1.msra.mxu0 0.0
  %129 = vmatprep.subr.mxu0 0.0
  %130 = vmatpush1.msra.mxu0 0.0
  %131 = vmatprep.subr.mxu0 0.0
  %132 = vmatpush1.msra.mxu0 0.0
  %133 = vmatprep.subr.mxu0 0.0
  %134 = vmatpush1.msra.mxu0 0.0
  %135 = vmatprep.subr.mxu0 0.0
  %136 = vmatpush1.msra.mxu0 0.0
  %137 = vmatprep.subr.mxu0 0.0
  %138 = vmatpush1.msra.mxu0 0.0
  %139 = vmatprep.subr.mxu0 0.0
  %140 = vmatpush1.msra.mxu0 0.0
  %141 = vmatprep.subr.mxu0 0.0
  %142 = vmatpush1.msra.mxu0 0.0
  %143 = vmatprep.subr.mxu0 0.0
  %144 = vmatpush1.msra.mxu0 0.0
  %145 = vmatprep.subr.mxu0 0.0
  %146 = vmatpush1.msra.mxu0 0.0
  %147 = vmatprep.subr.mxu0 0.0
  %148 = vmatpush1.msra.mxu0 0.0
  %149 = vmatprep.subr.mxu0 0.0
  %150 = vmatpush1.msra.mxu0 0.0
  %151 = vmatprep.subr.mxu0 0.0
  %152 = vmatpush1.msra.mxu0 0.0
  %153 = vmatprep.mubr.f32.mxu0 0.0
  %154 = vmatmul.mubr.f32.gmra.mrb[0].mxu0 %v80
  %v155 = vpop.f32.mrb[0].mxu0
  %v156 = vadd.f32 0.0, %v155
  %v157 = vpop.f32.mrb[0].mxu0
  %v158 = vadd.f32 0.0, %v157
  %159 = vdwg.mxu0
  %v161 = vsel %vm78, %v53, 0
  %v164 = vsel %vm82, %v51, 0
  %v167 = vsel %vm82, %v52, 0
  %169 = vmatprep.subr.mxu0 %v167
  %170 = vmatpush1.msra.mxu0 %v164
  %171 = vmatprep.subr.mxu0 0.0
  %172 = vmatpush1.msra.mxu0 0.0
  %173 = vmatprep.subr.mxu0 0.0
  %174 = vmatpush1.msra.mxu0 0.0
  %175 = vmatprep.subr.mxu0 0.0
  %176 = vmatpush1.msra.mxu0 0.0
  %177 = vmatprep.subr.mxu0 0.0
  %178 = vmatpush1.msra.mxu0 0.0
  %179 = vmatprep.subr.mxu0 0.0
  %180 = vmatpush1.msra.mxu0 0.0
  %181 = vmatprep.subr.mxu0 0.0
  %182 = vmatpush1.msra.mxu0 0.0
  %183 = vmatprep.subr.mxu0 0.0
  %184 = vmatpush1.msra.mxu0 0.0
  %185 = vmatprep.subr.mxu0 0.0
  %186 = vmatpush1.msra.mxu0 0.0
  %187 = vmatprep.subr.mxu0 0.0
  %188 = vmatpush1.msra.mxu0 0.0
  %189 = vmatprep.subr.mxu0 0.0
  %190 = vmatpush1.msra.mxu0 0.0
  %191 = vmatprep.subr.mxu0 0.0
  %192 = vmatpush1.msra.mxu0 0.0
  %193 = vmatprep.subr.mxu0 0.0
  %194 = vmatpush1.msra.mxu0 0.0
  %195 = vmatprep.subr.mxu0 0.0
  %196 = vmatpush1.msra.mxu0 0.0
  %197 = vmatprep.subr.mxu0 0.0
  %198 = vmatpush1.msra.mxu0 0.0
  %199 = vmatprep.subr.mxu0 0.0
  %200 = vmatpush1.msra.mxu0 0.0
  %201 = vmatprep.subr.mxu0 0.0
  %202 = vmatpush1.msra.mxu0 0.0
  %203 = vmatprep.subr.mxu0 0.0
  %204 = vmatpush1.msra.mxu0 0.0
  %205 = vmatprep.subr.mxu0 0.0
  %206 = vmatpush1.msra.mxu0 0.0
  %207 = vmatprep.subr.mxu0 0.0
  %208 = vmatpush1.msra.mxu0 0.0
  %209 = vmatprep.subr.mxu0 0.0
  %210 = vmatpush1.msra.mxu0 0.0
  %211 = vmatprep.subr.mxu0 0.0
  %212 = vmatpush1.msra.mxu0 0.0
  %213 = vmatprep.subr.mxu0 0.0
  %214 = vmatpush1.msra.mxu0 0.0
  %215 = vmatprep.subr.mxu0 0.0
  %216 = vmatpush1.msra.mxu0 0.0
  %217 = vmatprep.subr.mxu0 0.0
  %218 = vmatpush1.msra.mxu0 0.0
  %219 = vmatprep.subr.mxu0 0.0
  %220 = vmatpush1.msra.mxu0 0.0
  %221 = vmatprep.subr.mxu0 0.0
  %222 = vmatpush1.msra.mxu0 0.0
  %223 = vmatprep.subr.mxu0 0.0
  %224 = vmatpush1.msra.mxu0 0.0
  %225 = vmatprep.subr.mxu0 0.0
  %226 = vmatpush1.msra.mxu0 0.0
  %227 = vmatprep.subr.mxu0 0.0
  %228 = vmatpush1.msra.mxu0 0.0
  %229 = vmatprep.subr.mxu0 0.0
  %230 = vmatpush1.msra.mxu0 0.0
  %231 = vmatprep.subr.mxu0 0.0
  %232 = vmatpush1.msra.mxu0 0.0
  %233 = vmatprep.mubr.f32.mxu0 0.0
  %234 = vmatmul.mubr.f32.gmra.mrb[0].mxu0 %v161
  %v235 = vpop.f32.mrb[0].mxu0
  %v236 = vadd.f32 %v156, %v235
  %v237 = vpop.f32.mrb[0].mxu0
  %v238 = vadd.f32 %v158, %v237
  %239 = vdwg.mxu0
  %240 = vrot.lane.b32.xlu0 %v26, 15
  %v241 = vpop.permute.xlu0 %240
  %242 = vrot.lane.b32.xlu0 %v28, 15
  %v243 = vpop.permute.xlu0 %242
  %vm244 = vcmp.lt.s32.totalorder %v35, 15
  %v245 = vsel %vm244, %v241, %v243
  %v246 = vsel %vm244, %v243, %v241
  %s247 = scalar_lea.vmem %s0, 4
  %v248 = vld [vmem:[%s247] sm:$0x3]
  %v250 = vlaneseq
  %v251 = vshrl.u32 %v250, 7
  %v252 = vsub.s32 0, %v251
  %v253 = vrot.slane %v248, %v252
  %v254 = vlaneseq
  %v255 = vshrl.u32 %v254, 7
  %v256 = vsub.s32 1, %v255
  %v257 = vrot.slane %v248, %v256
  %v260 = vmul.f32 %v246, %v253
  %v261 = vmul.f32 %v245, %v257
  %s262 = scalar_lea.vmem %s1, 8
  %v263 = vld [vmem:[%s262] sm:$0xf]
  %v265 = vsel %vm78, %v263, 0
  %v268 = vsel %vm82, %v260, 0
  %v271 = vsel %vm82, %v261, 0
  %273 = vmatprep.subr.mxu0 %v271
  %274 = vmatpush1.msra.mxu0 %v268
  %275 = vmatprep.subr.mxu0 0.0
  %276 = vmatpush1.msra.mxu0 0.0
  %277 = vmatprep.subr.mxu0 0.0
  %278 = vmatpush1.msra.mxu0 0.0
  %279 = vmatprep.subr.mxu0 0.0
  %280 = vmatpush1.msra.mxu0 0.0
  %281 = vmatprep.subr.mxu0 0.0
  %282 = vmatpush1.msra.mxu0 0.0
  %283 = vmatprep.subr.mxu0 0.0
  %284 = vmatpush1.msra.mxu0 0.0
  %285 = vmatprep.subr.mxu0 0.0
  %286 = vmatpush1.msra.mxu0 0.0
  %287 = vmatprep.subr.mxu0 0.0
  %288 = vmatpush1.msra.mxu0 0.0
  %289 = vmatprep.subr.mxu0 0.0
  %290 = vmatpush1.msra.mxu0 0.0
  %291 = vmatprep.subr.mxu0 0.0
  %292 = vmatpush1.msra.mxu0 0.0
  %293 = vmatprep.subr.mxu0 0.0
  %294 = vmatpush1.msra.mxu0 0.0
  %295 = vmatprep.subr.mxu0 0.0
  %296 = vmatpush1.msra.mxu0 0.0
  %297 = vmatprep.subr.mxu0 0.0
  %298 = vmatpush1.msra.mxu0 0.0
  %299 = vmatprep.subr.mxu0 0.0
  %300 = vmatpush1.msra.mxu0 0.0
  %301 = vmatprep.subr.mxu0 0.0
  %302 = vmatpush1.msra.mxu0 0.0
  %303 = vmatprep.subr.mxu0 0.0
  %304 = vmatpush1.msra.mxu0 0.0
  %305 = vmatprep.subr.mxu0 0.0
  %306 = vmatpush1.msra.mxu0 0.0
  %307 = vmatprep.subr.mxu0 0.0
  %308 = vmatpush1.msra.mxu0 0.0
  %309 = vmatprep.subr.mxu0 0.0
  %310 = vmatpush1.msra.mxu0 0.0
  %311 = vmatprep.subr.mxu0 0.0
  %312 = vmatpush1.msra.mxu0 0.0
  %313 = vmatprep.subr.mxu0 0.0
  %314 = vmatpush1.msra.mxu0 0.0
  %315 = vmatprep.subr.mxu0 0.0
  %316 = vmatpush1.msra.mxu0 0.0
  %317 = vmatprep.subr.mxu0 0.0
  %318 = vmatpush1.msra.mxu0 0.0
  %319 = vmatprep.subr.mxu0 0.0
  %320 = vmatpush1.msra.mxu0 0.0
  %321 = vmatprep.subr.mxu0 0.0
  %322 = vmatpush1.msra.mxu0 0.0
  %323 = vmatprep.subr.mxu0 0.0
  %324 = vmatpush1.msra.mxu0 0.0
  %325 = vmatprep.subr.mxu0 0.0
  %326 = vmatpush1.msra.mxu0 0.0
  %327 = vmatprep.subr.mxu0 0.0
  %328 = vmatpush1.msra.mxu0 0.0
  %329 = vmatprep.subr.mxu0 0.0
  %330 = vmatpush1.msra.mxu0 0.0
  %331 = vmatprep.subr.mxu0 0.0
  %332 = vmatpush1.msra.mxu0 0.0
  %333 = vmatprep.subr.mxu0 0.0
  %334 = vmatpush1.msra.mxu0 0.0
  %335 = vmatprep.subr.mxu0 0.0
  %336 = vmatpush1.msra.mxu0 0.0
  %337 = vmatprep.mubr.f32.mxu0 0.0
  %338 = vmatmul.mubr.f32.gmra.mrb[0].mxu0 %v265
  %v339 = vpop.f32.mrb[0].mxu0
  %v340 = vadd.f32 0.0, %v339
  %v341 = vpop.f32.mrb[0].mxu0
  %v342 = vadd.f32 0.0, %v341
  %343 = vdwg.mxu0
  %v344 = vadd.f32 %v236, %v340
  %v345 = vadd.f32 %v238, %v342
  %346 = vrot.lane.b32.xlu0 %v26, 1
  %v347 = vpop.permute.xlu0 %346
  %348 = vrot.lane.b32.xlu0 %v28, 1
  %v349 = vpop.permute.xlu0 %348
  %vm350 = vcmp.lt.s32.totalorder %v35, 1
  %v351 = vsel %vm350, %v347, %v349
  %v352 = vsel %vm350, %v349, %v347
  %s353 = scalar_lea.vmem %s0, 6
  %v354 = vld [vmem:[%s353] sm:$0x3]
  %v356 = vlaneseq
  %v357 = vshrl.u32 %v356, 7
  %v358 = vsub.s32 0, %v357
  %v359 = vrot.slane %v354, %v358
  %v360 = vlaneseq
  %v361 = vshrl.u32 %v360, 7
  %v362 = vsub.s32 1, %v361
  %v363 = vrot.slane %v354, %v362
  %v366 = vmul.f32 %v352, %v359
  %v367 = vmul.f32 %v351, %v363
  %s368 = scalar_lea.vmem %s1, 12
  %v369 = vld [vmem:[%s368] sm:$0xf]
  %v371 = vsel %vm78, %v369, 0
  %v374 = vsel %vm82, %v366, 0
  %v377 = vsel %vm82, %v367, 0
  %379 = vmatprep.subr.mxu0 %v377
  %380 = vmatpush1.msra.mxu0 %v374
  %381 = vmatprep.subr.mxu0 0.0
  %382 = vmatpush1.msra.mxu0 0.0
  %383 = vmatprep.subr.mxu0 0.0
  %384 = vmatpush1.msra.mxu0 0.0
  %385 = vmatprep.subr.mxu0 0.0
  %386 = vmatpush1.msra.mxu0 0.0
  %387 = vmatprep.subr.mxu0 0.0
  %388 = vmatpush1.msra.mxu0 0.0
  %389 = vmatprep.subr.mxu0 0.0
  %390 = vmatpush1.msra.mxu0 0.0
  %391 = vmatprep.subr.mxu0 0.0
  %392 = vmatpush1.msra.mxu0 0.0
  %393 = vmatprep.subr.mxu0 0.0
  %394 = vmatpush1.msra.mxu0 0.0
  %395 = vmatprep.subr.mxu0 0.0
  %396 = vmatpush1.msra.mxu0 0.0
  %397 = vmatprep.subr.mxu0 0.0
  %398 = vmatpush1.msra.mxu0 0.0
  %399 = vmatprep.subr.mxu0 0.0
  %400 = vmatpush1.msra.mxu0 0.0
  %401 = vmatprep.subr.mxu0 0.0
  %402 = vmatpush1.msra.mxu0 0.0
  %403 = vmatprep.subr.mxu0 0.0
  %404 = vmatpush1.msra.mxu0 0.0
  %405 = vmatprep.subr.mxu0 0.0
  %406 = vmatpush1.msra.mxu0 0.0
  %407 = vmatprep.subr.mxu0 0.0
  %408 = vmatpush1.msra.mxu0 0.0
  %409 = vmatprep.subr.mxu0 0.0
  %410 = vmatpush1.msra.mxu0 0.0
  %411 = vmatprep.subr.mxu0 0.0
  %412 = vmatpush1.msra.mxu0 0.0
  %413 = vmatprep.subr.mxu0 0.0
  %414 = vmatpush1.msra.mxu0 0.0
  %415 = vmatprep.subr.mxu0 0.0
  %416 = vmatpush1.msra.mxu0 0.0
  %417 = vmatprep.subr.mxu0 0.0
  %418 = vmatpush1.msra.mxu0 0.0
  %419 = vmatprep.subr.mxu0 0.0
  %420 = vmatpush1.msra.mxu0 0.0
  %421 = vmatprep.subr.mxu0 0.0
  %422 = vmatpush1.msra.mxu0 0.0
  %423 = vmatprep.subr.mxu0 0.0
  %424 = vmatpush1.msra.mxu0 0.0
  %425 = vmatprep.subr.mxu0 0.0
  %426 = vmatpush1.msra.mxu0 0.0
  %427 = vmatprep.subr.mxu0 0.0
  %428 = vmatpush1.msra.mxu0 0.0
  %429 = vmatprep.subr.mxu0 0.0
  %430 = vmatpush1.msra.mxu0 0.0
  %431 = vmatprep.subr.mxu0 0.0
  %432 = vmatpush1.msra.mxu0 0.0
  %433 = vmatprep.subr.mxu0 0.0
  %434 = vmatpush1.msra.mxu0 0.0
  %435 = vmatprep.subr.mxu0 0.0
  %436 = vmatpush1.msra.mxu0 0.0
  %437 = vmatprep.subr.mxu0 0.0
  %438 = vmatpush1.msra.mxu0 0.0
  %439 = vmatprep.subr.mxu0 0.0
  %440 = vmatpush1.msra.mxu0 0.0
  %441 = vmatprep.subr.mxu0 0.0
  %442 = vmatpush1.msra.mxu0 0.0
  %443 = vmatprep.mubr.f32.mxu0 0.0
  %444 = vmatmul.mubr.f32.gmra.mrb[0].mxu0 %v371
  %v445 = vpop.f32.mrb[0].mxu0
  %v446 = vadd.f32 0.0, %v445
  %v447 = vpop.f32.mrb[0].mxu0
  %v448 = vadd.f32 0.0, %v447
  %449 = vdwg.mxu0
  %v450 = vadd.f32 %v344, %v446
  %v451 = vadd.f32 %v345, %v448
  %s452 = scalar_lea.vmem %s1, 16
  %v453 = vld [vmem:[%s452] sm:$0xf]
  %v455 = vsel %vm78, %v453, 0
  %v457 = vsel %vm82, %v26, 0
  %v459 = vsel %vm82, %v28, 0
  %461 = vmatprep.subr.mxu0 %v459
  %462 = vmatpush1.msra.mxu0 %v457
  %463 = vmatprep.subr.mxu0 0.0
  %464 = vmatpush1.msra.mxu0 0.0
  %465 = vmatprep.subr.mxu0 0.0
  %466 = vmatpush1.msra.mxu0 0.0
  %467 = vmatprep.subr.mxu0 0.0
  %468 = vmatpush1.msra.mxu0 0.0
  %469 = vmatprep.subr.mxu0 0.0
  %470 = vmatpush1.msra.mxu0 0.0
  %471 = vmatprep.subr.mxu0 0.0
  %472 = vmatpush1.msra.mxu0 0.0
  %473 = vmatprep.subr.mxu0 0.0
  %474 = vmatpush1.msra.mxu0 0.0
  %475 = vmatprep.subr.mxu0 0.0
  %476 = vmatpush1.msra.mxu0 0.0
  %477 = vmatprep.subr.mxu0 0.0
  %478 = vmatpush1.msra.mxu0 0.0
  %479 = vmatprep.subr.mxu0 0.0
  %480 = vmatpush1.msra.mxu0 0.0
  %481 = vmatprep.subr.mxu0 0.0
  %482 = vmatpush1.msra.mxu0 0.0
  %483 = vmatprep.subr.mxu0 0.0
  %484 = vmatpush1.msra.mxu0 0.0
  %485 = vmatprep.subr.mxu0 0.0
  %486 = vmatpush1.msra.mxu0 0.0
  %487 = vmatprep.subr.mxu0 0.0
  %488 = vmatpush1.msra.mxu0 0.0
  %489 = vmatprep.subr.mxu0 0.0
  %490 = vmatpush1.msra.mxu0 0.0
  %491 = vmatprep.subr.mxu0 0.0
  %492 = vmatpush1.msra.mxu0 0.0
  %493 = vmatprep.subr.mxu0 0.0
  %494 = vmatpush1.msra.mxu0 0.0
  %495 = vmatprep.subr.mxu0 0.0
  %496 = vmatpush1.msra.mxu0 0.0
  %497 = vmatprep.subr.mxu0 0.0
  %498 = vmatpush1.msra.mxu0 0.0
  %499 = vmatprep.subr.mxu0 0.0
  %500 = vmatpush1.msra.mxu0 0.0
  %501 = vmatprep.subr.mxu0 0.0
  %502 = vmatpush1.msra.mxu0 0.0
  %503 = vmatprep.subr.mxu0 0.0
  %504 = vmatpush1.msra.mxu0 0.0
  %505 = vmatprep.subr.mxu0 0.0
  %506 = vmatpush1.msra.mxu0 0.0
  %507 = vmatprep.subr.mxu0 0.0
  %508 = vmatpush1.msra.mxu0 0.0
  %509 = vmatprep.subr.mxu0 0.0
  %510 = vmatpush1.msra.mxu0 0.0
  %511 = vmatprep.subr.mxu0 0.0
  %512 = vmatpush1.msra.mxu0 0.0
  %513 = vmatprep.subr.mxu0 0.0
  %514 = vmatpush1.msra.mxu0 0.0
  %515 = vmatprep.subr.mxu0 0.0
  %516 = vmatpush1.msra.mxu0 0.0
  %517 = vmatprep.subr.mxu0 0.0
  %518 = vmatpush1.msra.mxu0 0.0
  %519 = vmatprep.subr.mxu0 0.0
  %520 = vmatpush1.msra.mxu0 0.0
  %521 = vmatprep.subr.mxu0 0.0
  %522 = vmatpush1.msra.mxu0 0.0
  %523 = vmatprep.subr.mxu0 0.0
  %524 = vmatpush1.msra.mxu0 0.0
  %525 = vmatprep.mubr.f32.mxu0 0.0
  %526 = vmatmul.mubr.f32.gmra.mrb[0].mxu0 %v455
  %v527 = vpop.f32.mrb[0].mxu0
  %v528 = vadd.f32 0.0, %v527
  %v529 = vpop.f32.mrb[0].mxu0
  %v530 = vadd.f32 0.0, %v529
  %531 = vdwg.mxu0
  %v532 = vadd.f32 %v450, %v528
  %v533 = vadd.f32 %v451, %v530
  %534 = vrot.lane.b32.xlu0 %v26, 127
  %v535 = vpop.permute.xlu0 %534
  %536 = vrot.lane.b32.xlu0 %v28, 127
  %v537 = vpop.permute.xlu0 %536
  %vm538 = vcmp.lt.s32.totalorder %v35, 127
  %v539 = vsel %vm538, %v535, %v537
  %v540 = vsel %vm538, %v537, %v535
  %s541 = scalar_lea.vmem %s0, 10
  %v542 = vld [vmem:[%s541] sm:$0x3]
  %v544 = vlaneseq
  %v545 = vshrl.u32 %v544, 7
  %v546 = vsub.s32 0, %v545
  %v547 = vrot.slane %v542, %v546
  %v548 = vlaneseq
  %v549 = vshrl.u32 %v548, 7
  %v550 = vsub.s32 1, %v549
  %v551 = vrot.slane %v542, %v550
  %v554 = vmul.f32 %v539, %v547
  %v555 = vmul.f32 %v540, %v551
  %s556 = scalar_lea.vmem %s1, 20
  %v557 = vld [vmem:[%s556] sm:$0xf]
  %v559 = vsel %vm78, %v557, 0
  %v562 = vsel %vm82, %v554, 0
  %v565 = vsel %vm82, %v555, 0
  %567 = vmatprep.subr.mxu0 %v565
  %568 = vmatpush1.msra.mxu0 %v562
  %569 = vmatprep.subr.mxu0 0.0
  %570 = vmatpush1.msra.mxu0 0.0
  %571 = vmatprep.subr.mxu0 0.0
  %572 = vmatpush1.msra.mxu0 0.0
  %573 = vmatprep.subr.mxu0 0.0
  %574 = vmatpush1.msra.mxu0 0.0
  %575 = vmatprep.subr.mxu0 0.0
  %576 = vmatpush1.msra.mxu0 0.0
  %577 = vmatprep.subr.mxu0 0.0
  %578 = vmatpush1.msra.mxu0 0.0
  %579 = vmatprep.subr.mxu0 0.0
  %580 = vmatpush1.msra.mxu0 0.0
  %581 = vmatprep.subr.mxu0 0.0
  %582 = vmatpush1.msra.mxu0 0.0
  %583 = vmatprep.subr.mxu0 0.0
  %584 = vmatpush1.msra.mxu0 0.0
  %585 = vmatprep.subr.mxu0 0.0
  %586 = vmatpush1.msra.mxu0 0.0
  %587 = vmatprep.subr.mxu0 0.0
  %588 = vmatpush1.msra.mxu0 0.0
  %589 = vmatprep.subr.mxu0 0.0
  %590 = vmatpush1.msra.mxu0 0.0
  %591 = vmatprep.subr.mxu0 0.0
  %592 = vmatpush1.msra.mxu0 0.0
  %593 = vmatprep.subr.mxu0 0.0
  %594 = vmatpush1.msra.mxu0 0.0
  %595 = vmatprep.subr.mxu0 0.0
  %596 = vmatpush1.msra.mxu0 0.0
  %597 = vmatprep.subr.mxu0 0.0
  %598 = vmatpush1.msra.mxu0 0.0
  %599 = vmatprep.subr.mxu0 0.0
  %600 = vmatpush1.msra.mxu0 0.0
  %601 = vmatprep.subr.mxu0 0.0
  %602 = vmatpush1.msra.mxu0 0.0
  %603 = vmatprep.subr.mxu0 0.0
  %604 = vmatpush1.msra.mxu0 0.0
  %605 = vmatprep.subr.mxu0 0.0
  %606 = vmatpush1.msra.mxu0 0.0
  %607 = vmatprep.subr.mxu0 0.0
  %608 = vmatpush1.msra.mxu0 0.0
  %609 = vmatprep.subr.mxu0 0.0
  %610 = vmatpush1.msra.mxu0 0.0
  %611 = vmatprep.subr.mxu0 0.0
  %612 = vmatpush1.msra.mxu0 0.0
  %613 = vmatprep.subr.mxu0 0.0
  %614 = vmatpush1.msra.mxu0 0.0
  %615 = vmatprep.subr.mxu0 0.0
  %616 = vmatpush1.msra.mxu0 0.0
  %617 = vmatprep.subr.mxu0 0.0
  %618 = vmatpush1.msra.mxu0 0.0
  %619 = vmatprep.subr.mxu0 0.0
  %620 = vmatpush1.msra.mxu0 0.0
  %621 = vmatprep.subr.mxu0 0.0
  %622 = vmatpush1.msra.mxu0 0.0
  %623 = vmatprep.subr.mxu0 0.0
  %624 = vmatpush1.msra.mxu0 0.0
  %625 = vmatprep.subr.mxu0 0.0
  %626 = vmatpush1.msra.mxu0 0.0
  %627 = vmatprep.subr.mxu0 0.0
  %628 = vmatpush1.msra.mxu0 0.0
  %629 = vmatprep.subr.mxu0 0.0
  %630 = vmatpush1.msra.mxu0 0.0
  %631 = vmatprep.mubr.f32.mxu0 0.0
  %632 = vmatmul.mubr.f32.gmra.mrb[0].mxu0 %v559
  %v633 = vpop.f32.mrb[0].mxu0
  %v634 = vadd.f32 0.0, %v633
  %v635 = vpop.f32.mrb[0].mxu0
  %v636 = vadd.f32 0.0, %v635
  %637 = vdwg.mxu0
  %v638 = vadd.f32 %v532, %v634
  %v639 = vadd.f32 %v533, %v636
  %640 = vrot.lane.b32.xlu0 %v26, 113
  %v641 = vpop.permute.xlu0 %640
  %642 = vrot.lane.b32.xlu0 %v28, 113
  %v643 = vpop.permute.xlu0 %642
  %vm644 = vcmp.lt.s32.totalorder %v35, 113
  %v645 = vsel %vm644, %v641, %v643
  %v646 = vsel %vm644, %v643, %v641
  %s647 = scalar_lea.vmem %s0, 12
  %v648 = vld [vmem:[%s647] sm:$0x3]
  %v650 = vlaneseq
  %v651 = vshrl.u32 %v650, 7
  %v652 = vsub.s32 0, %v651
  %v653 = vrot.slane %v648, %v652
  %v654 = vlaneseq
  %v655 = vshrl.u32 %v654, 7
  %v656 = vsub.s32 1, %v655
  %v657 = vrot.slane %v648, %v656
  %v660 = vmul.f32 %v645, %v653
  %v661 = vmul.f32 %v646, %v657
  %s662 = scalar_lea.vmem %s1, 24
  %v663 = vld [vmem:[%s662] sm:$0xf]
  %v665 = vsel %vm78, %v663, 0
  %v668 = vsel %vm82, %v660, 0
  %v671 = vsel %vm82, %v661, 0
  %673 = vmatprep.subr.mxu0 %v671
  %674 = vmatpush1.msra.mxu0 %v668
  %675 = vmatprep.subr.mxu0 0.0
  %676 = vmatpush1.msra.mxu0 0.0
  %677 = vmatprep.subr.mxu0 0.0
  %678 = vmatpush1.msra.mxu0 0.0
  %679 = vmatprep.subr.mxu0 0.0
  %680 = vmatpush1.msra.mxu0 0.0
  %681 = vmatprep.subr.mxu0 0.0
  %682 = vmatpush1.msra.mxu0 0.0
  %683 = vmatprep.subr.mxu0 0.0
  %684 = vmatpush1.msra.mxu0 0.0
  %685 = vmatprep.subr.mxu0 0.0
  %686 = vmatpush1.msra.mxu0 0.0
  %687 = vmatprep.subr.mxu0 0.0
  %688 = vmatpush1.msra.mxu0 0.0
  %689 = vmatprep.subr.mxu0 0.0
  %690 = vmatpush1.msra.mxu0 0.0
  %691 = vmatprep.subr.mxu0 0.0
  %692 = vmatpush1.msra.mxu0 0.0
  %693 = vmatprep.subr.mxu0 0.0
  %694 = vmatpush1.msra.mxu0 0.0
  %695 = vmatprep.subr.mxu0 0.0
  %696 = vmatpush1.msra.mxu0 0.0
  %697 = vmatprep.subr.mxu0 0.0
  %698 = vmatpush1.msra.mxu0 0.0
  %699 = vmatprep.subr.mxu0 0.0
  %700 = vmatpush1.msra.mxu0 0.0
  %701 = vmatprep.subr.mxu0 0.0
  %702 = vmatpush1.msra.mxu0 0.0
  %703 = vmatprep.subr.mxu0 0.0
  %704 = vmatpush1.msra.mxu0 0.0
  %705 = vmatprep.subr.mxu0 0.0
  %706 = vmatpush1.msra.mxu0 0.0
  %707 = vmatprep.subr.mxu0 0.0
  %708 = vmatpush1.msra.mxu0 0.0
  %709 = vmatprep.subr.mxu0 0.0
  %710 = vmatpush1.msra.mxu0 0.0
  %711 = vmatprep.subr.mxu0 0.0
  %712 = vmatpush1.msra.mxu0 0.0
  %713 = vmatprep.subr.mxu0 0.0
  %714 = vmatpush1.msra.mxu0 0.0
  %715 = vmatprep.subr.mxu0 0.0
  %716 = vmatpush1.msra.mxu0 0.0
  %717 = vmatprep.subr.mxu0 0.0
  %718 = vmatpush1.msra.mxu0 0.0
  %719 = vmatprep.subr.mxu0 0.0
  %720 = vmatpush1.msra.mxu0 0.0
  %721 = vmatprep.subr.mxu0 0.0
  %722 = vmatpush1.msra.mxu0 0.0
  %723 = vmatprep.subr.mxu0 0.0
  %724 = vmatpush1.msra.mxu0 0.0
  %725 = vmatprep.subr.mxu0 0.0
  %726 = vmatpush1.msra.mxu0 0.0
  %727 = vmatprep.subr.mxu0 0.0
  %728 = vmatpush1.msra.mxu0 0.0
  %729 = vmatprep.subr.mxu0 0.0
  %730 = vmatpush1.msra.mxu0 0.0
  %731 = vmatprep.subr.mxu0 0.0
  %732 = vmatpush1.msra.mxu0 0.0
  %733 = vmatprep.subr.mxu0 0.0
  %734 = vmatpush1.msra.mxu0 0.0
  %735 = vmatprep.subr.mxu0 0.0
  %736 = vmatpush1.msra.mxu0 0.0
  %737 = vmatprep.mubr.f32.mxu0 0.0
  %738 = vmatmul.mubr.f32.gmra.mrb[0].mxu0 %v665
  %v739 = vpop.f32.mrb[0].mxu0
  %v740 = vadd.f32 0.0, %v739
  %v741 = vpop.f32.mrb[0].mxu0
  %v742 = vadd.f32 0.0, %v741
  %743 = vdwg.mxu0
  %v744 = vadd.f32 %v638, %v740
  %v745 = vadd.f32 %v639, %v742
  %746 = vrot.lane.b32.xlu0 %v26, 112
  %v747 = vpop.permute.xlu0 %746
  %748 = vrot.lane.b32.xlu0 %v28, 112
  %v749 = vpop.permute.xlu0 %748
  %vm750 = vcmp.lt.s32.totalorder %v35, 112
  %v751 = vsel %vm750, %v747, %v749
  %v752 = vsel %vm750, %v749, %v747
  %s753 = scalar_lea.vmem %s0, 14
  %v754 = vld [vmem:[%s753] sm:$0x3]
  %v756 = vlaneseq
  %v757 = vshrl.u32 %v756, 7
  %v758 = vsub.s32 0, %v757
  %v759 = vrot.slane %v754, %v758
  %v760 = vlaneseq
  %v761 = vshrl.u32 %v760, 7
  %v762 = vsub.s32 1, %v761
  %v763 = vrot.slane %v754, %v762
  %v766 = vmul.f32 %v751, %v759
  %v767 = vmul.f32 %v752, %v763
  %s768 = scalar_lea.vmem %s1, 28
  %v769 = vld [vmem:[%s768] sm:$0xf]
  %v771 = vsel %vm78, %v769, 0
  %v774 = vsel %vm82, %v766, 0
  %v777 = vsel %vm82, %v767, 0
  %779 = vmatprep.subr.mxu0 %v777
  %780 = vmatpush1.msra.mxu0 %v774
  %781 = vmatprep.subr.mxu0 0.0
  %782 = vmatpush1.msra.mxu0 0.0
  %783 = vmatprep.subr.mxu0 0.0
  %784 = vmatpush1.msra.mxu0 0.0
  %785 = vmatprep.subr.mxu0 0.0
  %786 = vmatpush1.msra.mxu0 0.0
  %787 = vmatprep.subr.mxu0 0.0
  %788 = vmatpush1.msra.mxu0 0.0
  %789 = vmatprep.subr.mxu0 0.0
  %790 = vmatpush1.msra.mxu0 0.0
  %791 = vmatprep.subr.mxu0 0.0
  %792 = vmatpush1.msra.mxu0 0.0
  %793 = vmatprep.subr.mxu0 0.0
  %794 = vmatpush1.msra.mxu0 0.0
  %795 = vmatprep.subr.mxu0 0.0
  %796 = vmatpush1.msra.mxu0 0.0
  %797 = vmatprep.subr.mxu0 0.0
  %798 = vmatpush1.msra.mxu0 0.0
  %799 = vmatprep.subr.mxu0 0.0
  %800 = vmatpush1.msra.mxu0 0.0
  %801 = vmatprep.subr.mxu0 0.0
  %802 = vmatpush1.msra.mxu0 0.0
  %803 = vmatprep.subr.mxu0 0.0
  %804 = vmatpush1.msra.mxu0 0.0
  %805 = vmatprep.subr.mxu0 0.0
  %806 = vmatpush1.msra.mxu0 0.0
  %807 = vmatprep.subr.mxu0 0.0
  %808 = vmatpush1.msra.mxu0 0.0
  %809 = vmatprep.subr.mxu0 0.0
  %810 = vmatpush1.msra.mxu0 0.0
  %811 = vmatprep.subr.mxu0 0.0
  %812 = vmatpush1.msra.mxu0 0.0
  %813 = vmatprep.subr.mxu0 0.0
  %814 = vmatpush1.msra.mxu0 0.0
  %815 = vmatprep.subr.mxu0 0.0
  %816 = vmatpush1.msra.mxu0 0.0
  %817 = vmatprep.subr.mxu0 0.0
  %818 = vmatpush1.msra.mxu0 0.0
  %819 = vmatprep.subr.mxu0 0.0
  %820 = vmatpush1.msra.mxu0 0.0
  %821 = vmatprep.subr.mxu0 0.0
  %822 = vmatpush1.msra.mxu0 0.0
  %823 = vmatprep.subr.mxu0 0.0
  %824 = vmatpush1.msra.mxu0 0.0
  %825 = vmatprep.subr.mxu0 0.0
  %826 = vmatpush1.msra.mxu0 0.0
  %827 = vmatprep.subr.mxu0 0.0
  %828 = vmatpush1.msra.mxu0 0.0
  %829 = vmatprep.subr.mxu0 0.0
  %830 = vmatpush1.msra.mxu0 0.0
  %831 = vmatprep.subr.mxu0 0.0
  %832 = vmatpush1.msra.mxu0 0.0
  %833 = vmatprep.subr.mxu0 0.0
  %834 = vmatpush1.msra.mxu0 0.0
  %835 = vmatprep.subr.mxu0 0.0
  %836 = vmatpush1.msra.mxu0 0.0
  %837 = vmatprep.subr.mxu0 0.0
  %838 = vmatpush1.msra.mxu0 0.0
  %839 = vmatprep.subr.mxu0 0.0
  %840 = vmatpush1.msra.mxu0 0.0
  %841 = vmatprep.subr.mxu0 0.0
  %842 = vmatpush1.msra.mxu0 0.0
  %843 = vmatprep.mubr.f32.mxu0 0.0
  %844 = vmatmul.mubr.f32.gmra.mrb[0].mxu0 %v771
  %v845 = vpop.f32.mrb[0].mxu0
  %v846 = vadd.f32 0.0, %v845
  %v847 = vpop.f32.mrb[0].mxu0
  %v848 = vadd.f32 0.0, %v847
  %849 = vdwg.mxu0
  %v850 = vadd.f32 %v744, %v846
  %v851 = vadd.f32 %v745, %v848
  %852 = vrot.lane.b32.xlu0 %v26, 111
  %v853 = vpop.permute.xlu0 %852
  %854 = vrot.lane.b32.xlu0 %v28, 111
  %v855 = vpop.permute.xlu0 %854
  %vm856 = vcmp.lt.s32.totalorder %v35, 111
  %v857 = vsel %vm856, %v853, %v855
  %v858 = vsel %vm856, %v855, %v853
  %s859 = scalar_lea.vmem %s0, 16
  %v860 = vld [vmem:[%s859] sm:$0x3]
  %v862 = vlaneseq
  %v863 = vshrl.u32 %v862, 7
  %v864 = vsub.s32 0, %v863
  %v865 = vrot.slane %v860, %v864
  %v866 = vlaneseq
  %v867 = vshrl.u32 %v866, 7
  %v868 = vsub.s32 1, %v867
  %v869 = vrot.slane %v860, %v868
  %v872 = vmul.f32 %v857, %v865
  %v873 = vmul.f32 %v858, %v869
  %s874 = scalar_lea.vmem %s1, 32
  %v875 = vld [vmem:[%s874] sm:$0xf]
  %v877 = vsel %vm78, %v875, 0
  %v880 = vsel %vm82, %v872, 0
  %v883 = vsel %vm82, %v873, 0
  %885 = vmatprep.subr.mxu0 %v883
  %886 = vmatpush1.msra.mxu0 %v880
  %887 = vmatprep.subr.mxu0 0.0
  %888 = vmatpush1.msra.mxu0 0.0
  %889 = vmatprep.subr.mxu0 0.0
  %890 = vmatpush1.msra.mxu0 0.0
  %891 = vmatprep.subr.mxu0 0.0
  %892 = vmatpush1.msra.mxu0 0.0
  %893 = vmatprep.subr.mxu0 0.0
  %894 = vmatpush1.msra.mxu0 0.0
  %895 = vmatprep.subr.mxu0 0.0
  %896 = vmatpush1.msra.mxu0 0.0
  %897 = vmatprep.subr.mxu0 0.0
  %898 = vmatpush1.msra.mxu0 0.0
  %899 = vmatprep.subr.mxu0 0.0
  %900 = vmatpush1.msra.mxu0 0.0
  %901 = vmatprep.subr.mxu0 0.0
  %902 = vmatpush1.msra.mxu0 0.0
  %903 = vmatprep.subr.mxu0 0.0
  %904 = vmatpush1.msra.mxu0 0.0
  %905 = vmatprep.subr.mxu0 0.0
  %906 = vmatpush1.msra.mxu0 0.0
  %907 = vmatprep.subr.mxu0 0.0
  %908 = vmatpush1.msra.mxu0 0.0
  %909 = vmatprep.subr.mxu0 0.0
  %910 = vmatpush1.msra.mxu0 0.0
  %911 = vmatprep.subr.mxu0 0.0
  %912 = vmatpush1.msra.mxu0 0.0
  %913 = vmatprep.subr.mxu0 0.0
  %914 = vmatpush1.msra.mxu0 0.0
  %915 = vmatprep.subr.mxu0 0.0
  %916 = vmatpush1.msra.mxu0 0.0
  %917 = vmatprep.subr.mxu0 0.0
  %918 = vmatpush1.msra.mxu0 0.0
  %919 = vmatprep.subr.mxu0 0.0
  %920 = vmatpush1.msra.mxu0 0.0
  %921 = vmatprep.subr.mxu0 0.0
  %922 = vmatpush1.msra.mxu0 0.0
  %923 = vmatprep.subr.mxu0 0.0
  %924 = vmatpush1.msra.mxu0 0.0
  %925 = vmatprep.subr.mxu0 0.0
  %926 = vmatpush1.msra.mxu0 0.0
  %927 = vmatprep.subr.mxu0 0.0
  %928 = vmatpush1.msra.mxu0 0.0
  %929 = vmatprep.subr.mxu0 0.0
  %930 = vmatpush1.msra.mxu0 0.0
  %931 = vmatprep.subr.mxu0 0.0
  %932 = vmatpush1.msra.mxu0 0.0
  %933 = vmatprep.subr.mxu0 0.0
  %934 = vmatpush1.msra.mxu0 0.0
  %935 = vmatprep.subr.mxu0 0.0
  %936 = vmatpush1.msra.mxu0 0.0
  %937 = vmatprep.subr.mxu0 0.0
  %938 = vmatpush1.msra.mxu0 0.0
  %939 = vmatprep.subr.mxu0 0.0
  %940 = vmatpush1.msra.mxu0 0.0
  %941 = vmatprep.subr.mxu0 0.0
  %942 = vmatpush1.msra.mxu0 0.0
  %943 = vmatprep.subr.mxu0 0.0
  %944 = vmatpush1.msra.mxu0 0.0
  %945 = vmatprep.subr.mxu0 0.0
  %946 = vmatpush1.msra.mxu0 0.0
  %947 = vmatprep.subr.mxu0 0.0
  %948 = vmatpush1.msra.mxu0 0.0
  %949 = vmatprep.mubr.f32.mxu0 0.0
  %950 = vmatmul.mubr.f32.gmra.mrb[0].mxu0 %v877
  %v951 = vpop.f32.mrb[0].mxu0
  %v952 = vadd.f32 0.0, %v951
  %v953 = vpop.f32.mrb[0].mxu0
  %v954 = vadd.f32 0.0, %v953
  %955 = vdwg.mxu0
  %v956 = vadd.f32 %v850, %v952
  %v957 = vadd.f32 %v851, %v954
  %959 = vset.pattern.permute.xlu0 0
  %960 = vperm.xlu0 %959, %v23
  %v961 = vpop.permute.xlu0 %960
  %v963 = vadd.f32 %v956, %v961
  %v964 = vadd.f32 %v957, %v961
  %v965 = vmax.f32 %v963, 0.0
  %v966 = vmax.f32 %v964, 0.0
  %968 = vset.pattern.permute.xlu0 0
  %969 = vperm.xlu0 %968, %v24
  %v970 = vpop.permute.xlu0 %969
  %v972 = vunpack.c.l.s4 839922192
  %v973 = vunpack.c.0.s8 %v972
  %v974 = vlaneseq
  %v975 = vshrl.u32 %v974, 7
  %v976 = vsub.s32 %v973, %v975
  %v977 = vrot.slane %v970, %v976
  %v979 = vadd.f32 %v25, %v977
  %980 = vrot.lane.b32.xlu0 %v965, 17
  %v981 = vpop.permute.xlu0 %980
  %982 = vrot.lane.b32.xlu0 %v966, 17
  %v983 = vpop.permute.xlu0 %982
  %v984 = vsel %vm36, %v981, %v983
  %v985 = vsel %vm36, %v983, %v981
  %v986 = vmul.f32 %v985, %v44
  %v987 = vmul.f32 %v984, %v48
  %v988 = vld [vmem:[%s2] sm:$0xf]
  %v990 = vsel %vm78, %v988, 0
  %v993 = vsel %vm82, %v986, 0
  %v996 = vsel %vm82, %v987, 0
  %998 = vmatprep.subr.mxu0 %v996
  %999 = vmatpush1.msra.mxu0 %v993
  %1000 = vmatprep.subr.mxu0 0.0
  %1001 = vmatpush1.msra.mxu0 0.0
  %1002 = vmatprep.subr.mxu0 0.0
  %1003 = vmatpush1.msra.mxu0 0.0
  %1004 = vmatprep.subr.mxu0 0.0
  %1005 = vmatpush1.msra.mxu0 0.0
  %1006 = vmatprep.subr.mxu0 0.0
  %1007 = vmatpush1.msra.mxu0 0.0
  %1008 = vmatprep.subr.mxu0 0.0
  %1009 = vmatpush1.msra.mxu0 0.0
  %1010 = vmatprep.subr.mxu0 0.0
  %1011 = vmatpush1.msra.mxu0 0.0
  %1012 = vmatprep.subr.mxu0 0.0
  %1013 = vmatpush1.msra.mxu0 0.0
  %1014 = vmatprep.subr.mxu0 0.0
  %1015 = vmatpush1.msra.mxu0 0.0
  %1016 = vmatprep.subr.mxu0 0.0
  %1017 = vmatpush1.msra.mxu0 0.0
  %1018 = vmatprep.subr.mxu0 0.0
  %1019 = vmatpush1.msra.mxu0 0.0
  %1020 = vmatprep.subr.mxu0 0.0
  %1021 = vmatpush1.msra.mxu0 0.0
  %1022 = vmatprep.subr.mxu0 0.0
  %1023 = vmatpush1.msra.mxu0 0.0
  %1024 = vmatprep.subr.mxu0 0.0
  %1025 = vmatpush1.msra.mxu0 0.0
  %1026 = vmatprep.subr.mxu0 0.0
  %1027 = vmatpush1.msra.mxu0 0.0
  %1028 = vmatprep.subr.mxu0 0.0
  %1029 = vmatpush1.msra.mxu0 0.0
  %1030 = vmatprep.subr.mxu0 0.0
  %1031 = vmatpush1.msra.mxu0 0.0
  %1032 = vmatprep.subr.mxu0 0.0
  %1033 = vmatpush1.msra.mxu0 0.0
  %1034 = vmatprep.subr.mxu0 0.0
  %1035 = vmatpush1.msra.mxu0 0.0
  %1036 = vmatprep.subr.mxu0 0.0
  %1037 = vmatpush1.msra.mxu0 0.0
  %1038 = vmatprep.subr.mxu0 0.0
  %1039 = vmatpush1.msra.mxu0 0.0
  %1040 = vmatprep.subr.mxu0 0.0
  %1041 = vmatpush1.msra.mxu0 0.0
  %1042 = vmatprep.subr.mxu0 0.0
  %1043 = vmatpush1.msra.mxu0 0.0
  %1044 = vmatprep.subr.mxu0 0.0
  %1045 = vmatpush1.msra.mxu0 0.0
  %1046 = vmatprep.subr.mxu0 0.0
  %1047 = vmatpush1.msra.mxu0 0.0
  %1048 = vmatprep.subr.mxu0 0.0
  %1049 = vmatpush1.msra.mxu0 0.0
  %1050 = vmatprep.subr.mxu0 0.0
  %1051 = vmatpush1.msra.mxu0 0.0
  %1052 = vmatprep.subr.mxu0 0.0
  %1053 = vmatpush1.msra.mxu0 0.0
  %1054 = vmatprep.subr.mxu0 0.0
  %1055 = vmatpush1.msra.mxu0 0.0
  %1056 = vmatprep.subr.mxu0 0.0
  %1057 = vmatpush1.msra.mxu0 0.0
  %1058 = vmatprep.subr.mxu0 0.0
  %1059 = vmatpush1.msra.mxu0 0.0
  %1060 = vmatprep.subr.mxu0 0.0
  %1061 = vmatpush1.msra.mxu0 0.0
  %1062 = vmatprep.mubr.f32.mxu0 0.0
  %1063 = vmatmul.mubr.f32.gmra.mrb[0].mxu0 %v990
  %v1064 = vpop.f32.mrb[0].mxu0
  %v1065 = vadd.f32 0.0, %v1064
  %v1066 = vpop.f32.mrb[0].mxu0
  %v1067 = vadd.f32 0.0, %v1066
  %1068 = vdwg.mxu0
  %v1071 = vcombine.low %v1065, %v1067
  %v1073 = vadd.f32 %v979, %v1071
  %1074 = vrot.lane.b32.xlu0 %v965, 16
  %v1075 = vpop.permute.xlu0 %1074
  %1076 = vrot.lane.b32.xlu0 %v966, 16
  %v1077 = vpop.permute.xlu0 %1076
  %v1078 = vsel %vm58, %v1075, %v1077
  %v1079 = vsel %vm58, %v1077, %v1075
  %v1080 = vmul.f32 %v1079, %v67
  %v1081 = vmul.f32 %v1078, %v71
  %s1082 = scalar_lea.vmem %s2, 4
  %v1083 = vld [vmem:[%s1082] sm:$0xf]
  %v1085 = vsel %vm78, %v1083, 0
  %v1088 = vsel %vm82, %v1080, 0
  %v1091 = vsel %vm82, %v1081, 0
  %1093 = vmatprep.subr.mxu0 %v1091
  %1094 = vmatpush1.msra.mxu0 %v1088
  %1095 = vmatprep.subr.mxu0 0.0
  %1096 = vmatpush1.msra.mxu0 0.0
  %1097 = vmatprep.subr.mxu0 0.0
  %1098 = vmatpush1.msra.mxu0 0.0
  %1099 = vmatprep.subr.mxu0 0.0
  %1100 = vmatpush1.msra.mxu0 0.0
  %1101 = vmatprep.subr.mxu0 0.0
  %1102 = vmatpush1.msra.mxu0 0.0
  %1103 = vmatprep.subr.mxu0 0.0
  %1104 = vmatpush1.msra.mxu0 0.0
  %1105 = vmatprep.subr.mxu0 0.0
  %1106 = vmatpush1.msra.mxu0 0.0
  %1107 = vmatprep.subr.mxu0 0.0
  %1108 = vmatpush1.msra.mxu0 0.0
  %1109 = vmatprep.subr.mxu0 0.0
  %1110 = vmatpush1.msra.mxu0 0.0
  %1111 = vmatprep.subr.mxu0 0.0
  %1112 = vmatpush1.msra.mxu0 0.0
  %1113 = vmatprep.subr.mxu0 0.0
  %1114 = vmatpush1.msra.mxu0 0.0
  %1115 = vmatprep.subr.mxu0 0.0
  %1116 = vmatpush1.msra.mxu0 0.0
  %1117 = vmatprep.subr.mxu0 0.0
  %1118 = vmatpush1.msra.mxu0 0.0
  %1119 = vmatprep.subr.mxu0 0.0
  %1120 = vmatpush1.msra.mxu0 0.0
  %1121 = vmatprep.subr.mxu0 0.0
  %1122 = vmatpush1.msra.mxu0 0.0
  %1123 = vmatprep.subr.mxu0 0.0
  %1124 = vmatpush1.msra.mxu0 0.0
  %1125 = vmatprep.subr.mxu0 0.0
  %1126 = vmatpush1.msra.mxu0 0.0
  %1127 = vmatprep.subr.mxu0 0.0
  %1128 = vmatpush1.msra.mxu0 0.0
  %1129 = vmatprep.subr.mxu0 0.0
  %1130 = vmatpush1.msra.mxu0 0.0
  %1131 = vmatprep.subr.mxu0 0.0
  %1132 = vmatpush1.msra.mxu0 0.0
  %1133 = vmatprep.subr.mxu0 0.0
  %1134 = vmatpush1.msra.mxu0 0.0
  %1135 = vmatprep.subr.mxu0 0.0
  %1136 = vmatpush1.msra.mxu0 0.0
  %1137 = vmatprep.subr.mxu0 0.0
  %1138 = vmatpush1.msra.mxu0 0.0
  %1139 = vmatprep.subr.mxu0 0.0
  %1140 = vmatpush1.msra.mxu0 0.0
  %1141 = vmatprep.subr.mxu0 0.0
  %1142 = vmatpush1.msra.mxu0 0.0
  %1143 = vmatprep.subr.mxu0 0.0
  %1144 = vmatpush1.msra.mxu0 0.0
  %1145 = vmatprep.subr.mxu0 0.0
  %1146 = vmatpush1.msra.mxu0 0.0
  %1147 = vmatprep.subr.mxu0 0.0
  %1148 = vmatpush1.msra.mxu0 0.0
  %1149 = vmatprep.subr.mxu0 0.0
  %1150 = vmatpush1.msra.mxu0 0.0
  %1151 = vmatprep.subr.mxu0 0.0
  %1152 = vmatpush1.msra.mxu0 0.0
  %1153 = vmatprep.subr.mxu0 0.0
  %1154 = vmatpush1.msra.mxu0 0.0
  %1155 = vmatprep.subr.mxu0 0.0
  %1156 = vmatpush1.msra.mxu0 0.0
  %1157 = vmatprep.mubr.f32.mxu0 0.0
  %1158 = vmatmul.mubr.f32.gmra.mrb[0].mxu0 %v1085
  %v1159 = vpop.f32.mrb[0].mxu0
  %v1160 = vadd.f32 0.0, %v1159
  %v1161 = vpop.f32.mrb[0].mxu0
  %v1162 = vadd.f32 0.0, %v1161
  %1163 = vdwg.mxu0
  %v1166 = vcombine.low %v1160, %v1162
  %v1168 = vadd.f32 %v1073, %v1166
  %1169 = vrot.lane.b32.xlu0 %v965, 15
  %v1170 = vpop.permute.xlu0 %1169
  %1171 = vrot.lane.b32.xlu0 %v966, 15
  %v1172 = vpop.permute.xlu0 %1171
  %v1173 = vsel %vm244, %v1170, %v1172
  %v1174 = vsel %vm244, %v1172, %v1170
  %v1175 = vmul.f32 %v1174, %v253
  %v1176 = vmul.f32 %v1173, %v257
  %s1177 = scalar_lea.vmem %s2, 8
  %v1178 = vld [vmem:[%s1177] sm:$0xf]
  %v1180 = vsel %vm78, %v1178, 0
  %v1183 = vsel %vm82, %v1175, 0
  %v1186 = vsel %vm82, %v1176, 0
  %1188 = vmatprep.subr.mxu0 %v1186
  %1189 = vmatpush1.msra.mxu0 %v1183
  %1190 = vmatprep.subr.mxu0 0.0
  %1191 = vmatpush1.msra.mxu0 0.0
  %1192 = vmatprep.subr.mxu0 0.0
  %1193 = vmatpush1.msra.mxu0 0.0
  %1194 = vmatprep.subr.mxu0 0.0
  %1195 = vmatpush1.msra.mxu0 0.0
  %1196 = vmatprep.subr.mxu0 0.0
  %1197 = vmatpush1.msra.mxu0 0.0
  %1198 = vmatprep.subr.mxu0 0.0
  %1199 = vmatpush1.msra.mxu0 0.0
  %1200 = vmatprep.subr.mxu0 0.0
  %1201 = vmatpush1.msra.mxu0 0.0
  %1202 = vmatprep.subr.mxu0 0.0
  %1203 = vmatpush1.msra.mxu0 0.0
  %1204 = vmatprep.subr.mxu0 0.0
  %1205 = vmatpush1.msra.mxu0 0.0
  %1206 = vmatprep.subr.mxu0 0.0
  %1207 = vmatpush1.msra.mxu0 0.0
  %1208 = vmatprep.subr.mxu0 0.0
  %1209 = vmatpush1.msra.mxu0 0.0
  %1210 = vmatprep.subr.mxu0 0.0
  %1211 = vmatpush1.msra.mxu0 0.0
  %1212 = vmatprep.subr.mxu0 0.0
  %1213 = vmatpush1.msra.mxu0 0.0
  %1214 = vmatprep.subr.mxu0 0.0
  %1215 = vmatpush1.msra.mxu0 0.0
  %1216 = vmatprep.subr.mxu0 0.0
  %1217 = vmatpush1.msra.mxu0 0.0
  %1218 = vmatprep.subr.mxu0 0.0
  %1219 = vmatpush1.msra.mxu0 0.0
  %1220 = vmatprep.subr.mxu0 0.0
  %1221 = vmatpush1.msra.mxu0 0.0
  %1222 = vmatprep.subr.mxu0 0.0
  %1223 = vmatpush1.msra.mxu0 0.0
  %1224 = vmatprep.subr.mxu0 0.0
  %1225 = vmatpush1.msra.mxu0 0.0
  %1226 = vmatprep.subr.mxu0 0.0
  %1227 = vmatpush1.msra.mxu0 0.0
  %1228 = vmatprep.subr.mxu0 0.0
  %1229 = vmatpush1.msra.mxu0 0.0
  %1230 = vmatprep.subr.mxu0 0.0
  %1231 = vmatpush1.msra.mxu0 0.0
  %1232 = vmatprep.subr.mxu0 0.0
  %1233 = vmatpush1.msra.mxu0 0.0
  %1234 = vmatprep.subr.mxu0 0.0
  %1235 = vmatpush1.msra.mxu0 0.0
  %1236 = vmatprep.subr.mxu0 0.0
  %1237 = vmatpush1.msra.mxu0 0.0
  %1238 = vmatprep.subr.mxu0 0.0
  %1239 = vmatpush1.msra.mxu0 0.0
  %1240 = vmatprep.subr.mxu0 0.0
  %1241 = vmatpush1.msra.mxu0 0.0
  %1242 = vmatprep.subr.mxu0 0.0
  %1243 = vmatpush1.msra.mxu0 0.0
  %1244 = vmatprep.subr.mxu0 0.0
  %1245 = vmatpush1.msra.mxu0 0.0
  %1246 = vmatprep.subr.mxu0 0.0
  %1247 = vmatpush1.msra.mxu0 0.0
  %1248 = vmatprep.subr.mxu0 0.0
  %1249 = vmatpush1.msra.mxu0 0.0
  %1250 = vmatprep.subr.mxu0 0.0
  %1251 = vmatpush1.msra.mxu0 0.0
  %1252 = vmatprep.mubr.f32.mxu0 0.0
  %1253 = vmatmul.mubr.f32.gmra.mrb[0].mxu0 %v1180
  %v1254 = vpop.f32.mrb[0].mxu0
  %v1255 = vadd.f32 0.0, %v1254
  %v1256 = vpop.f32.mrb[0].mxu0
  %v1257 = vadd.f32 0.0, %v1256
  %1258 = vdwg.mxu0
  %v1261 = vcombine.low %v1255, %v1257
  %v1263 = vadd.f32 %v1168, %v1261
  %1264 = vrot.lane.b32.xlu0 %v965, 1
  %v1265 = vpop.permute.xlu0 %1264
  %1266 = vrot.lane.b32.xlu0 %v966, 1
  %v1267 = vpop.permute.xlu0 %1266
  %v1268 = vsel %vm350, %v1265, %v1267
  %v1269 = vsel %vm350, %v1267, %v1265
  %v1270 = vmul.f32 %v1269, %v359
  %v1271 = vmul.f32 %v1268, %v363
  %s1272 = scalar_lea.vmem %s2, 12
  %v1273 = vld [vmem:[%s1272] sm:$0xf]
  %v1275 = vsel %vm78, %v1273, 0
  %v1278 = vsel %vm82, %v1270, 0
  %v1281 = vsel %vm82, %v1271, 0
  %1283 = vmatprep.subr.mxu0 %v1281
  %1284 = vmatpush1.msra.mxu0 %v1278
  %1285 = vmatprep.subr.mxu0 0.0
  %1286 = vmatpush1.msra.mxu0 0.0
  %1287 = vmatprep.subr.mxu0 0.0
  %1288 = vmatpush1.msra.mxu0 0.0
  %1289 = vmatprep.subr.mxu0 0.0
  %1290 = vmatpush1.msra.mxu0 0.0
  %1291 = vmatprep.subr.mxu0 0.0
  %1292 = vmatpush1.msra.mxu0 0.0
  %1293 = vmatprep.subr.mxu0 0.0
  %1294 = vmatpush1.msra.mxu0 0.0
  %1295 = vmatprep.subr.mxu0 0.0
  %1296 = vmatpush1.msra.mxu0 0.0
  %1297 = vmatprep.subr.mxu0 0.0
  %1298 = vmatpush1.msra.mxu0 0.0
  %1299 = vmatprep.subr.mxu0 0.0
  %1300 = vmatpush1.msra.mxu0 0.0
  %1301 = vmatprep.subr.mxu0 0.0
  %1302 = vmatpush1.msra.mxu0 0.0
  %1303 = vmatprep.subr.mxu0 0.0
  %1304 = vmatpush1.msra.mxu0 0.0
  %1305 = vmatprep.subr.mxu0 0.0
  %1306 = vmatpush1.msra.mxu0 0.0
  %1307 = vmatprep.subr.mxu0 0.0
  %1308 = vmatpush1.msra.mxu0 0.0
  %1309 = vmatprep.subr.mxu0 0.0
  %1310 = vmatpush1.msra.mxu0 0.0
  %1311 = vmatprep.subr.mxu0 0.0
  %1312 = vmatpush1.msra.mxu0 0.0
  %1313 = vmatprep.subr.mxu0 0.0
  %1314 = vmatpush1.msra.mxu0 0.0
  %1315 = vmatprep.subr.mxu0 0.0
  %1316 = vmatpush1.msra.mxu0 0.0
  %1317 = vmatprep.subr.mxu0 0.0
  %1318 = vmatpush1.msra.mxu0 0.0
  %1319 = vmatprep.subr.mxu0 0.0
  %1320 = vmatpush1.msra.mxu0 0.0
  %1321 = vmatprep.subr.mxu0 0.0
  %1322 = vmatpush1.msra.mxu0 0.0
  %1323 = vmatprep.subr.mxu0 0.0
  %1324 = vmatpush1.msra.mxu0 0.0
  %1325 = vmatprep.subr.mxu0 0.0
  %1326 = vmatpush1.msra.mxu0 0.0
  %1327 = vmatprep.subr.mxu0 0.0
  %1328 = vmatpush1.msra.mxu0 0.0
  %1329 = vmatprep.subr.mxu0 0.0
  %1330 = vmatpush1.msra.mxu0 0.0
  %1331 = vmatprep.subr.mxu0 0.0
  %1332 = vmatpush1.msra.mxu0 0.0
  %1333 = vmatprep.subr.mxu0 0.0
  %1334 = vmatpush1.msra.mxu0 0.0
  %1335 = vmatprep.subr.mxu0 0.0
  %1336 = vmatpush1.msra.mxu0 0.0
  %1337 = vmatprep.subr.mxu0 0.0
  %1338 = vmatpush1.msra.mxu0 0.0
  %1339 = vmatprep.subr.mxu0 0.0
  %1340 = vmatpush1.msra.mxu0 0.0
  %1341 = vmatprep.subr.mxu0 0.0
  %1342 = vmatpush1.msra.mxu0 0.0
  %1343 = vmatprep.subr.mxu0 0.0
  %1344 = vmatpush1.msra.mxu0 0.0
  %1345 = vmatprep.subr.mxu0 0.0
  %1346 = vmatpush1.msra.mxu0 0.0
  %1347 = vmatprep.mubr.f32.mxu0 0.0
  %1348 = vmatmul.mubr.f32.gmra.mrb[0].mxu0 %v1275
  %v1349 = vpop.f32.mrb[0].mxu0
  %v1350 = vadd.f32 0.0, %v1349
  %v1351 = vpop.f32.mrb[0].mxu0
  %v1352 = vadd.f32 0.0, %v1351
  %1353 = vdwg.mxu0
  %v1356 = vcombine.low %v1350, %v1352
  %v1358 = vadd.f32 %v1263, %v1356
  %s1359 = scalar_lea.vmem %s2, 16
  %v1360 = vld [vmem:[%s1359] sm:$0xf]
  %v1362 = vsel %vm78, %v1360, 0
  %v1365 = vsel %vm82, %v965, 0
  %v1368 = vsel %vm82, %v966, 0
  %1370 = vmatprep.subr.mxu0 %v1368
  %1371 = vmatpush1.msra.mxu0 %v1365
  %1372 = vmatprep.subr.mxu0 0.0
  %1373 = vmatpush1.msra.mxu0 0.0
  %1374 = vmatprep.subr.mxu0 0.0
  %1375 = vmatpush1.msra.mxu0 0.0
  %1376 = vmatprep.subr.mxu0 0.0
  %1377 = vmatpush1.msra.mxu0 0.0
  %1378 = vmatprep.subr.mxu0 0.0
  %1379 = vmatpush1.msra.mxu0 0.0
  %1380 = vmatprep.subr.mxu0 0.0
  %1381 = vmatpush1.msra.mxu0 0.0
  %1382 = vmatprep.subr.mxu0 0.0
  %1383 = vmatpush1.msra.mxu0 0.0
  %1384 = vmatprep.subr.mxu0 0.0
  %1385 = vmatpush1.msra.mxu0 0.0
  %1386 = vmatprep.subr.mxu0 0.0
  %1387 = vmatpush1.msra.mxu0 0.0
  %1388 = vmatprep.subr.mxu0 0.0
  %1389 = vmatpush1.msra.mxu0 0.0
  %1390 = vmatprep.subr.mxu0 0.0
  %1391 = vmatpush1.msra.mxu0 0.0
  %1392 = vmatprep.subr.mxu0 0.0
  %1393 = vmatpush1.msra.mxu0 0.0
  %1394 = vmatprep.subr.mxu0 0.0
  %1395 = vmatpush1.msra.mxu0 0.0
  %1396 = vmatprep.subr.mxu0 0.0
  %1397 = vmatpush1.msra.mxu0 0.0
  %1398 = vmatprep.subr.mxu0 0.0
  %1399 = vmatpush1.msra.mxu0 0.0
  %1400 = vmatprep.subr.mxu0 0.0
  %1401 = vmatpush1.msra.mxu0 0.0
  %1402 = vmatprep.subr.mxu0 0.0
  %1403 = vmatpush1.msra.mxu0 0.0
  %1404 = vmatprep.subr.mxu0 0.0
  %1405 = vmatpush1.msra.mxu0 0.0
  %1406 = vmatprep.subr.mxu0 0.0
  %1407 = vmatpush1.msra.mxu0 0.0
  %1408 = vmatprep.subr.mxu0 0.0
  %1409 = vmatpush1.msra.mxu0 0.0
  %1410 = vmatprep.subr.mxu0 0.0
  %1411 = vmatpush1.msra.mxu0 0.0
  %1412 = vmatprep.subr.mxu0 0.0
  %1413 = vmatpush1.msra.mxu0 0.0
  %1414 = vmatprep.subr.mxu0 0.0
  %1415 = vmatpush1.msra.mxu0 0.0
  %1416 = vmatprep.subr.mxu0 0.0
  %1417 = vmatpush1.msra.mxu0 0.0
  %1418 = vmatprep.subr.mxu0 0.0
  %1419 = vmatpush1.msra.mxu0 0.0
  %1420 = vmatprep.subr.mxu0 0.0
  %1421 = vmatpush1.msra.mxu0 0.0
  %1422 = vmatprep.subr.mxu0 0.0
  %1423 = vmatpush1.msra.mxu0 0.0
  %1424 = vmatprep.subr.mxu0 0.0
  %1425 = vmatpush1.msra.mxu0 0.0
  %1426 = vmatprep.subr.mxu0 0.0
  %1427 = vmatpush1.msra.mxu0 0.0
  %1428 = vmatprep.subr.mxu0 0.0
  %1429 = vmatpush1.msra.mxu0 0.0
  %1430 = vmatprep.subr.mxu0 0.0
  %1431 = vmatpush1.msra.mxu0 0.0
  %1432 = vmatprep.subr.mxu0 0.0
  %1433 = vmatpush1.msra.mxu0 0.0
  %1434 = vmatprep.mubr.f32.mxu0 0.0
  %1435 = vmatmul.mubr.f32.gmra.mrb[0].mxu0 %v1362
  %v1436 = vpop.f32.mrb[0].mxu0
  %v1437 = vadd.f32 0.0, %v1436
  %v1438 = vpop.f32.mrb[0].mxu0
  %v1439 = vadd.f32 0.0, %v1438
  %1440 = vdwg.mxu0
  %v1443 = vcombine.low %v1437, %v1439
  %v1445 = vadd.f32 %v1358, %v1443
  %1446 = vrot.lane.b32.xlu0 %v965, 127
  %v1447 = vpop.permute.xlu0 %1446
  %1448 = vrot.lane.b32.xlu0 %v966, 127
  %v1449 = vpop.permute.xlu0 %1448
  %v1450 = vsel %vm538, %v1447, %v1449
  %v1451 = vsel %vm538, %v1449, %v1447
  %v1452 = vmul.f32 %v1450, %v547
  %v1453 = vmul.f32 %v1451, %v551
  %s1454 = scalar_lea.vmem %s2, 20
  %v1455 = vld [vmem:[%s1454] sm:$0xf]
  %v1457 = vsel %vm78, %v1455, 0
  %v1460 = vsel %vm82, %v1452, 0
  %v1463 = vsel %vm82, %v1453, 0
  %1465 = vmatprep.subr.mxu0 %v1463
  %1466 = vmatpush1.msra.mxu0 %v1460
  %1467 = vmatprep.subr.mxu0 0.0
  %1468 = vmatpush1.msra.mxu0 0.0
  %1469 = vmatprep.subr.mxu0 0.0
  %1470 = vmatpush1.msra.mxu0 0.0
  %1471 = vmatprep.subr.mxu0 0.0
  %1472 = vmatpush1.msra.mxu0 0.0
  %1473 = vmatprep.subr.mxu0 0.0
  %1474 = vmatpush1.msra.mxu0 0.0
  %1475 = vmatprep.subr.mxu0 0.0
  %1476 = vmatpush1.msra.mxu0 0.0
  %1477 = vmatprep.subr.mxu0 0.0
  %1478 = vmatpush1.msra.mxu0 0.0
  %1479 = vmatprep.subr.mxu0 0.0
  %1480 = vmatpush1.msra.mxu0 0.0
  %1481 = vmatprep.subr.mxu0 0.0
  %1482 = vmatpush1.msra.mxu0 0.0
  %1483 = vmatprep.subr.mxu0 0.0
  %1484 = vmatpush1.msra.mxu0 0.0
  %1485 = vmatprep.subr.mxu0 0.0
  %1486 = vmatpush1.msra.mxu0 0.0
  %1487 = vmatprep.subr.mxu0 0.0
  %1488 = vmatpush1.msra.mxu0 0.0
  %1489 = vmatprep.subr.mxu0 0.0
  %1490 = vmatpush1.msra.mxu0 0.0
  %1491 = vmatprep.subr.mxu0 0.0
  %1492 = vmatpush1.msra.mxu0 0.0
  %1493 = vmatprep.subr.mxu0 0.0
  %1494 = vmatpush1.msra.mxu0 0.0
  %1495 = vmatprep.subr.mxu0 0.0
  %1496 = vmatpush1.msra.mxu0 0.0
  %1497 = vmatprep.subr.mxu0 0.0
  %1498 = vmatpush1.msra.mxu0 0.0
  %1499 = vmatprep.subr.mxu0 0.0
  %1500 = vmatpush1.msra.mxu0 0.0
  %1501 = vmatprep.subr.mxu0 0.0
  %1502 = vmatpush1.msra.mxu0 0.0
  %1503 = vmatprep.subr.mxu0 0.0
  %1504 = vmatpush1.msra.mxu0 0.0
  %1505 = vmatprep.subr.mxu0 0.0
  %1506 = vmatpush1.msra.mxu0 0.0
  %1507 = vmatprep.subr.mxu0 0.0
  %1508 = vmatpush1.msra.mxu0 0.0
  %1509 = vmatprep.subr.mxu0 0.0
  %1510 = vmatpush1.msra.mxu0 0.0
  %1511 = vmatprep.subr.mxu0 0.0
  %1512 = vmatpush1.msra.mxu0 0.0
  %1513 = vmatprep.subr.mxu0 0.0
  %1514 = vmatpush1.msra.mxu0 0.0
  %1515 = vmatprep.subr.mxu0 0.0
  %1516 = vmatpush1.msra.mxu0 0.0
  %1517 = vmatprep.subr.mxu0 0.0
  %1518 = vmatpush1.msra.mxu0 0.0
  %1519 = vmatprep.subr.mxu0 0.0
  %1520 = vmatpush1.msra.mxu0 0.0
  %1521 = vmatprep.subr.mxu0 0.0
  %1522 = vmatpush1.msra.mxu0 0.0
  %1523 = vmatprep.subr.mxu0 0.0
  %1524 = vmatpush1.msra.mxu0 0.0
  %1525 = vmatprep.subr.mxu0 0.0
  %1526 = vmatpush1.msra.mxu0 0.0
  %1527 = vmatprep.subr.mxu0 0.0
  %1528 = vmatpush1.msra.mxu0 0.0
  %1529 = vmatprep.mubr.f32.mxu0 0.0
  %1530 = vmatmul.mubr.f32.gmra.mrb[0].mxu0 %v1457
  %v1531 = vpop.f32.mrb[0].mxu0
  %v1532 = vadd.f32 0.0, %v1531
  %v1533 = vpop.f32.mrb[0].mxu0
  %v1534 = vadd.f32 0.0, %v1533
  %1535 = vdwg.mxu0
  %v1538 = vcombine.low %v1532, %v1534
  %v1540 = vadd.f32 %v1445, %v1538
  %1541 = vrot.lane.b32.xlu0 %v965, 113
  %v1542 = vpop.permute.xlu0 %1541
  %1543 = vrot.lane.b32.xlu0 %v966, 113
  %v1544 = vpop.permute.xlu0 %1543
  %v1545 = vsel %vm644, %v1542, %v1544
  %v1546 = vsel %vm644, %v1544, %v1542
  %v1547 = vmul.f32 %v1545, %v653
  %v1548 = vmul.f32 %v1546, %v657
  %s1549 = scalar_lea.vmem %s2, 24
  %v1550 = vld [vmem:[%s1549] sm:$0xf]
  %v1552 = vsel %vm78, %v1550, 0
  %v1555 = vsel %vm82, %v1547, 0
  %v1558 = vsel %vm82, %v1548, 0
  %1560 = vmatprep.subr.mxu0 %v1558
  %1561 = vmatpush1.msra.mxu0 %v1555
  %1562 = vmatprep.subr.mxu0 0.0
  %1563 = vmatpush1.msra.mxu0 0.0
  %1564 = vmatprep.subr.mxu0 0.0
  %1565 = vmatpush1.msra.mxu0 0.0
  %1566 = vmatprep.subr.mxu0 0.0
  %1567 = vmatpush1.msra.mxu0 0.0
  %1568 = vmatprep.subr.mxu0 0.0
  %1569 = vmatpush1.msra.mxu0 0.0
  %1570 = vmatprep.subr.mxu0 0.0
  %1571 = vmatpush1.msra.mxu0 0.0
  %1572 = vmatprep.subr.mxu0 0.0
  %1573 = vmatpush1.msra.mxu0 0.0
  %1574 = vmatprep.subr.mxu0 0.0
  %1575 = vmatpush1.msra.mxu0 0.0
  %1576 = vmatprep.subr.mxu0 0.0
  %1577 = vmatpush1.msra.mxu0 0.0
  %1578 = vmatprep.subr.mxu0 0.0
  %1579 = vmatpush1.msra.mxu0 0.0
  %1580 = vmatprep.subr.mxu0 0.0
  %1581 = vmatpush1.msra.mxu0 0.0
  %1582 = vmatprep.subr.mxu0 0.0
  %1583 = vmatpush1.msra.mxu0 0.0
  %1584 = vmatprep.subr.mxu0 0.0
  %1585 = vmatpush1.msra.mxu0 0.0
  %1586 = vmatprep.subr.mxu0 0.0
  %1587 = vmatpush1.msra.mxu0 0.0
  %1588 = vmatprep.subr.mxu0 0.0
  %1589 = vmatpush1.msra.mxu0 0.0
  %1590 = vmatprep.subr.mxu0 0.0
  %1591 = vmatpush1.msra.mxu0 0.0
  %1592 = vmatprep.subr.mxu0 0.0
  %1593 = vmatpush1.msra.mxu0 0.0
  %1594 = vmatprep.subr.mxu0 0.0
  %1595 = vmatpush1.msra.mxu0 0.0
  %1596 = vmatprep.subr.mxu0 0.0
  %1597 = vmatpush1.msra.mxu0 0.0
  %1598 = vmatprep.subr.mxu0 0.0
  %1599 = vmatpush1.msra.mxu0 0.0
  %1600 = vmatprep.subr.mxu0 0.0
  %1601 = vmatpush1.msra.mxu0 0.0
  %1602 = vmatprep.subr.mxu0 0.0
  %1603 = vmatpush1.msra.mxu0 0.0
  %1604 = vmatprep.subr.mxu0 0.0
  %1605 = vmatpush1.msra.mxu0 0.0
  %1606 = vmatprep.subr.mxu0 0.0
  %1607 = vmatpush1.msra.mxu0 0.0
  %1608 = vmatprep.subr.mxu0 0.0
  %1609 = vmatpush1.msra.mxu0 0.0
  %1610 = vmatprep.subr.mxu0 0.0
  %1611 = vmatpush1.msra.mxu0 0.0
  %1612 = vmatprep.subr.mxu0 0.0
  %1613 = vmatpush1.msra.mxu0 0.0
  %1614 = vmatprep.subr.mxu0 0.0
  %1615 = vmatpush1.msra.mxu0 0.0
  %1616 = vmatprep.subr.mxu0 0.0
  %1617 = vmatpush1.msra.mxu0 0.0
  %1618 = vmatprep.subr.mxu0 0.0
  %1619 = vmatpush1.msra.mxu0 0.0
  %1620 = vmatprep.subr.mxu0 0.0
  %1621 = vmatpush1.msra.mxu0 0.0
  %1622 = vmatprep.subr.mxu0 0.0
  %1623 = vmatpush1.msra.mxu0 0.0
  %1624 = vmatprep.mubr.f32.mxu0 0.0
  %1625 = vmatmul.mubr.f32.gmra.mrb[0].mxu0 %v1552
  %v1626 = vpop.f32.mrb[0].mxu0
  %v1627 = vadd.f32 0.0, %v1626
  %v1628 = vpop.f32.mrb[0].mxu0
  %v1629 = vadd.f32 0.0, %v1628
  %1630 = vdwg.mxu0
  %v1633 = vcombine.low %v1627, %v1629
  %v1635 = vadd.f32 %v1540, %v1633
  %1636 = vrot.lane.b32.xlu0 %v965, 112
  %v1637 = vpop.permute.xlu0 %1636
  %1638 = vrot.lane.b32.xlu0 %v966, 112
  %v1639 = vpop.permute.xlu0 %1638
  %v1640 = vsel %vm750, %v1637, %v1639
  %v1641 = vsel %vm750, %v1639, %v1637
  %v1642 = vmul.f32 %v1640, %v759
  %v1643 = vmul.f32 %v1641, %v763
  %s1644 = scalar_lea.vmem %s2, 28
  %v1645 = vld [vmem:[%s1644] sm:$0xf]
  %v1647 = vsel %vm78, %v1645, 0
  %v1650 = vsel %vm82, %v1642, 0
  %v1653 = vsel %vm82, %v1643, 0
  %1655 = vmatprep.subr.mxu0 %v1653
  %1656 = vmatpush1.msra.mxu0 %v1650
  %1657 = vmatprep.subr.mxu0 0.0
  %1658 = vmatpush1.msra.mxu0 0.0
  %1659 = vmatprep.subr.mxu0 0.0
  %1660 = vmatpush1.msra.mxu0 0.0
  %1661 = vmatprep.subr.mxu0 0.0
  %1662 = vmatpush1.msra.mxu0 0.0
  %1663 = vmatprep.subr.mxu0 0.0
  %1664 = vmatpush1.msra.mxu0 0.0
  %1665 = vmatprep.subr.mxu0 0.0
  %1666 = vmatpush1.msra.mxu0 0.0
  %1667 = vmatprep.subr.mxu0 0.0
  %1668 = vmatpush1.msra.mxu0 0.0
  %1669 = vmatprep.subr.mxu0 0.0
  %1670 = vmatpush1.msra.mxu0 0.0
  %1671 = vmatprep.subr.mxu0 0.0
  %1672 = vmatpush1.msra.mxu0 0.0
  %1673 = vmatprep.subr.mxu0 0.0
  %1674 = vmatpush1.msra.mxu0 0.0
  %1675 = vmatprep.subr.mxu0 0.0
  %1676 = vmatpush1.msra.mxu0 0.0
  %1677 = vmatprep.subr.mxu0 0.0
  %1678 = vmatpush1.msra.mxu0 0.0
  %1679 = vmatprep.subr.mxu0 0.0
  %1680 = vmatpush1.msra.mxu0 0.0
  %1681 = vmatprep.subr.mxu0 0.0
  %1682 = vmatpush1.msra.mxu0 0.0
  %1683 = vmatprep.subr.mxu0 0.0
  %1684 = vmatpush1.msra.mxu0 0.0
  %1685 = vmatprep.subr.mxu0 0.0
  %1686 = vmatpush1.msra.mxu0 0.0
  %1687 = vmatprep.subr.mxu0 0.0
  %1688 = vmatpush1.msra.mxu0 0.0
  %1689 = vmatprep.subr.mxu0 0.0
  %1690 = vmatpush1.msra.mxu0 0.0
  %1691 = vmatprep.subr.mxu0 0.0
  %1692 = vmatpush1.msra.mxu0 0.0
  %1693 = vmatprep.subr.mxu0 0.0
  %1694 = vmatpush1.msra.mxu0 0.0
  %1695 = vmatprep.subr.mxu0 0.0
  %1696 = vmatpush1.msra.mxu0 0.0
  %1697 = vmatprep.subr.mxu0 0.0
  %1698 = vmatpush1.msra.mxu0 0.0
  %1699 = vmatprep.subr.mxu0 0.0
  %1700 = vmatpush1.msra.mxu0 0.0
  %1701 = vmatprep.subr.mxu0 0.0
  %1702 = vmatpush1.msra.mxu0 0.0
  %1703 = vmatprep.subr.mxu0 0.0
  %1704 = vmatpush1.msra.mxu0 0.0
  %1705 = vmatprep.subr.mxu0 0.0
  %1706 = vmatpush1.msra.mxu0 0.0
  %1707 = vmatprep.subr.mxu0 0.0
  %1708 = vmatpush1.msra.mxu0 0.0
  %1709 = vmatprep.subr.mxu0 0.0
  %1710 = vmatpush1.msra.mxu0 0.0
  %1711 = vmatprep.subr.mxu0 0.0
  %1712 = vmatpush1.msra.mxu0 0.0
  %1713 = vmatprep.subr.mxu0 0.0
  %1714 = vmatpush1.msra.mxu0 0.0
  %1715 = vmatprep.subr.mxu0 0.0
  %1716 = vmatpush1.msra.mxu0 0.0
  %1717 = vmatprep.subr.mxu0 0.0
  %1718 = vmatpush1.msra.mxu0 0.0
  %1719 = vmatprep.mubr.f32.mxu0 0.0
  %1720 = vmatmul.mubr.f32.gmra.mrb[0].mxu0 %v1647
  %v1721 = vpop.f32.mrb[0].mxu0
  %v1722 = vadd.f32 0.0, %v1721
  %v1723 = vpop.f32.mrb[0].mxu0
  %v1724 = vadd.f32 0.0, %v1723
  %1725 = vdwg.mxu0
  %v1728 = vcombine.low %v1722, %v1724
  %v1730 = vadd.f32 %v1635, %v1728
  %1731 = vrot.lane.b32.xlu0 %v965, 111
  %v1732 = vpop.permute.xlu0 %1731
  %1733 = vrot.lane.b32.xlu0 %v966, 111
  %v1734 = vpop.permute.xlu0 %1733
  %v1735 = vsel %vm856, %v1732, %v1734
  %v1736 = vsel %vm856, %v1734, %v1732
  %v1737 = vmul.f32 %v1735, %v865
  %v1738 = vmul.f32 %v1736, %v869
  %s1739 = scalar_lea.vmem %s2, 32
  %v1740 = vld [vmem:[%s1739] sm:$0xf]
  %v1742 = vsel %vm78, %v1740, 0
  %v1745 = vsel %vm82, %v1737, 0
  %v1748 = vsel %vm82, %v1738, 0
  %1750 = vmatprep.subr.mxu0 %v1748
  %1751 = vmatpush1.msra.mxu0 %v1745
  %1752 = vmatprep.subr.mxu0 0.0
  %1753 = vmatpush1.msra.mxu0 0.0
  %1754 = vmatprep.subr.mxu0 0.0
  %1755 = vmatpush1.msra.mxu0 0.0
  %1756 = vmatprep.subr.mxu0 0.0
  %1757 = vmatpush1.msra.mxu0 0.0
  %1758 = vmatprep.subr.mxu0 0.0
  %1759 = vmatpush1.msra.mxu0 0.0
  %1760 = vmatprep.subr.mxu0 0.0
  %1761 = vmatpush1.msra.mxu0 0.0
  %1762 = vmatprep.subr.mxu0 0.0
  %1763 = vmatpush1.msra.mxu0 0.0
  %1764 = vmatprep.subr.mxu0 0.0
  %1765 = vmatpush1.msra.mxu0 0.0
  %1766 = vmatprep.subr.mxu0 0.0
  %1767 = vmatpush1.msra.mxu0 0.0
  %1768 = vmatprep.subr.mxu0 0.0
  %1769 = vmatpush1.msra.mxu0 0.0
  %1770 = vmatprep.subr.mxu0 0.0
  %1771 = vmatpush1.msra.mxu0 0.0
  %1772 = vmatprep.subr.mxu0 0.0
  %1773 = vmatpush1.msra.mxu0 0.0
  %1774 = vmatprep.subr.mxu0 0.0
  %1775 = vmatpush1.msra.mxu0 0.0
  %1776 = vmatprep.subr.mxu0 0.0
  %1777 = vmatpush1.msra.mxu0 0.0
  %1778 = vmatprep.subr.mxu0 0.0
  %1779 = vmatpush1.msra.mxu0 0.0
  %1780 = vmatprep.subr.mxu0 0.0
  %1781 = vmatpush1.msra.mxu0 0.0
  %1782 = vmatprep.subr.mxu0 0.0
  %1783 = vmatpush1.msra.mxu0 0.0
  %1784 = vmatprep.subr.mxu0 0.0
  %1785 = vmatpush1.msra.mxu0 0.0
  %1786 = vmatprep.subr.mxu0 0.0
  %1787 = vmatpush1.msra.mxu0 0.0
  %1788 = vmatprep.subr.mxu0 0.0
  %1789 = vmatpush1.msra.mxu0 0.0
  %1790 = vmatprep.subr.mxu0 0.0
  %1791 = vmatpush1.msra.mxu0 0.0
  %1792 = vmatprep.subr.mxu0 0.0
  %1793 = vmatpush1.msra.mxu0 0.0
  %1794 = vmatprep.subr.mxu0 0.0
  %1795 = vmatpush1.msra.mxu0 0.0
  %1796 = vmatprep.subr.mxu0 0.0
  %1797 = vmatpush1.msra.mxu0 0.0
  %1798 = vmatprep.subr.mxu0 0.0
  %1799 = vmatpush1.msra.mxu0 0.0
  %1800 = vmatprep.subr.mxu0 0.0
  %1801 = vmatpush1.msra.mxu0 0.0
  %1802 = vmatprep.subr.mxu0 0.0
  %1803 = vmatpush1.msra.mxu0 0.0
  %1804 = vmatprep.subr.mxu0 0.0
  %1805 = vmatpush1.msra.mxu0 0.0
  %1806 = vmatprep.subr.mxu0 0.0
  %1807 = vmatpush1.msra.mxu0 0.0
  %1808 = vmatprep.subr.mxu0 0.0
  %1809 = vmatpush1.msra.mxu0 0.0
  %1810 = vmatprep.subr.mxu0 0.0
  %1811 = vmatpush1.msra.mxu0 0.0
  %1812 = vmatprep.subr.mxu0 0.0
  %1813 = vmatpush1.msra.mxu0 0.0
  %1814 = vmatprep.mubr.f32.mxu0 0.0
  %1815 = vmatmul.mubr.f32.gmra.mrb[0].mxu0 %v1742
  %v1816 = vpop.f32.mrb[0].mxu0
  %v1817 = vadd.f32 0.0, %v1816
  %v1818 = vpop.f32.mrb[0].mxu0
  %v1819 = vadd.f32 0.0, %v1818
  %1820 = vdwg.mxu0
  %v1823 = vcombine.low %v1817, %v1819
  %v1825 = vadd.f32 %v1730, %v1823
  %1826 = vst [vmem:[%s6] sm:$0xff] %v1825
  %s1827 = scalar_lea.vmem %s5, 8
  %v1828 = vld [vmem:[%s1827] sm:$0xff]
  %v1829 = vmax.f32 %v1828, 0.0
  %v1831 = vcombine.high %v1829, %v1829
  %1833 = vrot.lane.b32.xlu0 %v1829, 17
  %v1834 = vpop.permute.xlu0 %1833
  %1835 = vrot.lane.b32.xlu0 %v1831, 17
  %v1836 = vpop.permute.xlu0 %1835
  %v1837 = vsel %vm36, %v1834, %v1836
  %v1838 = vsel %vm36, %v1836, %v1834
  %v1839 = vld [vmem:[%s0] sm:$0x3]
  %v1841 = vlaneseq
  %v1842 = vshrl.u32 %v1841, 7
  %v1843 = vsub.s32 0, %v1842
  %v1844 = vrot.slane %v1839, %v1843
  %v1845 = vlaneseq
  %v1846 = vshrl.u32 %v1845, 7
  %v1847 = vsub.s32 1, %v1846
  %v1848 = vrot.slane %v1839, %v1847
  %v1851 = vmul.f32 %v1838, %v1844
  %v1852 = vmul.f32 %v1837, %v1848
  %v1853 = vld [vmem:[%s1] sm:$0xf]
  %1854 = vrot.lane.b32.xlu0 %v1829, 16
  %v1855 = vpop.permute.xlu0 %1854
  %1856 = vrot.lane.b32.xlu0 %v1831, 16
  %v1857 = vpop.permute.xlu0 %1856
  %v1858 = vsel %vm58, %v1855, %v1857
  %v1859 = vsel %vm58, %v1857, %v1855
  %v1860 = vld [vmem:[%s61] sm:$0x3]
  %v1862 = vlaneseq
  %v1863 = vshrl.u32 %v1862, 7
  %v1864 = vsub.s32 0, %v1863
  %v1865 = vrot.slane %v1860, %v1864
  %v1866 = vlaneseq
  %v1867 = vshrl.u32 %v1866, 7
  %v1868 = vsub.s32 1, %v1867
  %v1869 = vrot.slane %v1860, %v1868
  %v1872 = vmul.f32 %v1859, %v1865
  %v1873 = vmul.f32 %v1858, %v1869
  %v1874 = vld [vmem:[%s76] sm:$0xf]
  %v1876 = vsel %vm78, %v1874, 0
  %v1879 = vsel %vm82, %v1872, 0
  %v1882 = vsel %vm82, %v1873, 0
  %1884 = vmatprep.subr.mxu0 %v1882
  %1885 = vmatpush1.msra.mxu0 %v1879
  %1886 = vmatprep.subr.mxu0 0.0
  %1887 = vmatpush1.msra.mxu0 0.0
  %1888 = vmatprep.subr.mxu0 0.0
  %1889 = vmatpush1.msra.mxu0 0.0
  %1890 = vmatprep.subr.mxu0 0.0
  %1891 = vmatpush1.msra.mxu0 0.0
  %1892 = vmatprep.subr.mxu0 0.0
  %1893 = vmatpush1.msra.mxu0 0.0
  %1894 = vmatprep.subr.mxu0 0.0
  %1895 = vmatpush1.msra.mxu0 0.0
  %1896 = vmatprep.subr.mxu0 0.0
  %1897 = vmatpush1.msra.mxu0 0.0
  %1898 = vmatprep.subr.mxu0 0.0
  %1899 = vmatpush1.msra.mxu0 0.0
  %1900 = vmatprep.subr.mxu0 0.0
  %1901 = vmatpush1.msra.mxu0 0.0
  %1902 = vmatprep.subr.mxu0 0.0
  %1903 = vmatpush1.msra.mxu0 0.0
  %1904 = vmatprep.subr.mxu0 0.0
  %1905 = vmatpush1.msra.mxu0 0.0
  %1906 = vmatprep.subr.mxu0 0.0
  %1907 = vmatpush1.msra.mxu0 0.0
  %1908 = vmatprep.subr.mxu0 0.0
  %1909 = vmatpush1.msra.mxu0 0.0
  %1910 = vmatprep.subr.mxu0 0.0
  %1911 = vmatpush1.msra.mxu0 0.0
  %1912 = vmatprep.subr.mxu0 0.0
  %1913 = vmatpush1.msra.mxu0 0.0
  %1914 = vmatprep.subr.mxu0 0.0
  %1915 = vmatpush1.msra.mxu0 0.0
  %1916 = vmatprep.subr.mxu0 0.0
  %1917 = vmatpush1.msra.mxu0 0.0
  %1918 = vmatprep.subr.mxu0 0.0
  %1919 = vmatpush1.msra.mxu0 0.0
  %1920 = vmatprep.subr.mxu0 0.0
  %1921 = vmatpush1.msra.mxu0 0.0
  %1922 = vmatprep.subr.mxu0 0.0
  %1923 = vmatpush1.msra.mxu0 0.0
  %1924 = vmatprep.subr.mxu0 0.0
  %1925 = vmatpush1.msra.mxu0 0.0
  %1926 = vmatprep.subr.mxu0 0.0
  %1927 = vmatpush1.msra.mxu0 0.0
  %1928 = vmatprep.subr.mxu0 0.0
  %1929 = vmatpush1.msra.mxu0 0.0
  %1930 = vmatprep.subr.mxu0 0.0
  %1931 = vmatpush1.msra.mxu0 0.0
  %1932 = vmatprep.subr.mxu0 0.0
  %1933 = vmatpush1.msra.mxu0 0.0
  %1934 = vmatprep.subr.mxu0 0.0
  %1935 = vmatpush1.msra.mxu0 0.0
  %1936 = vmatprep.subr.mxu0 0.0
  %1937 = vmatpush1.msra.mxu0 0.0
  %1938 = vmatprep.subr.mxu0 0.0
  %1939 = vmatpush1.msra.mxu0 0.0
  %1940 = vmatprep.subr.mxu0 0.0
  %1941 = vmatpush1.msra.mxu0 0.0
  %1942 = vmatprep.subr.mxu0 0.0
  %1943 = vmatpush1.msra.mxu0 0.0
  %1944 = vmatprep.subr.mxu0 0.0
  %1945 = vmatpush1.msra.mxu0 0.0
  %1946 = vmatprep.subr.mxu0 0.0
  %1947 = vmatpush1.msra.mxu0 0.0
  %1948 = vmatprep.mubr.f32.mxu0 0.0
  %1949 = vmatmul.mubr.f32.gmra.mrb[0].mxu0 %v1876
  %v1950 = vpop.f32.mrb[0].mxu0
  %v1951 = vadd.f32 0.0, %v1950
  %v1952 = vpop.f32.mrb[0].mxu0
  %v1953 = vadd.f32 0.0, %v1952
  %1954 = vdwg.mxu0
  %v1956 = vsel %vm78, %v1853, 0
  %v1959 = vsel %vm82, %v1851, 0
  %v1962 = vsel %vm82, %v1852, 0
  %1964 = vmatprep.subr.mxu0 %v1962
  %1965 = vmatpush1.msra.mxu0 %v1959
  %1966 = vmatprep.subr.mxu0 0.0
  %1967 = vmatpush1.msra.mxu0 0.0
  %1968 = vmatprep.subr.mxu0 0.0
  %1969 = vmatpush1.msra.mxu0 0.0
  %1970 = vmatprep.subr.mxu0 0.0
  %1971 = vmatpush1.msra.mxu0 0.0
  %1972 = vmatprep.subr.mxu0 0.0
  %1973 = vmatpush1.msra.mxu0 0.0
  %1974 = vmatprep.subr.mxu0 0.0
  %1975 = vmatpush1.msra.mxu0 0.0
  %1976 = vmatprep.subr.mxu0 0.0
  %1977 = vmatpush1.msra.mxu0 0.0
  %1978 = vmatprep.subr.mxu0 0.0
  %1979 = vmatpush1.msra.mxu0 0.0
  %1980 = vmatprep.subr.mxu0 0.0
  %1981 = vmatpush1.msra.mxu0 0.0
  %1982 = vmatprep.subr.mxu0 0.0
  %1983 = vmatpush1.msra.mxu0 0.0
  %1984 = vmatprep.subr.mxu0 0.0
  %1985 = vmatpush1.msra.mxu0 0.0
  %1986 = vmatprep.subr.mxu0 0.0
  %1987 = vmatpush1.msra.mxu0 0.0
  %1988 = vmatprep.subr.mxu0 0.0
  %1989 = vmatpush1.msra.mxu0 0.0
  %1990 = vmatprep.subr.mxu0 0.0
  %1991 = vmatpush1.msra.mxu0 0.0
  %1992 = vmatprep.subr.mxu0 0.0
  %1993 = vmatpush1.msra.mxu0 0.0
  %1994 = vmatprep.subr.mxu0 0.0
  %1995 = vmatpush1.msra.mxu0 0.0
  %1996 = vmatprep.subr.mxu0 0.0
  %1997 = vmatpush1.msra.mxu0 0.0
  %1998 = vmatprep.subr.mxu0 0.0
  %1999 = vmatpush1.msra.mxu0 0.0
  %2000 = vmatprep.subr.mxu0 0.0
  %2001 = vmatpush1.msra.mxu0 0.0
  %2002 = vmatprep.subr.mxu0 0.0
  %2003 = vmatpush1.msra.mxu0 0.0
  %2004 = vmatprep.subr.mxu0 0.0
  %2005 = vmatpush1.msra.mxu0 0.0
  %2006 = vmatprep.subr.mxu0 0.0
  %2007 = vmatpush1.msra.mxu0 0.0
  %2008 = vmatprep.subr.mxu0 0.0
  %2009 = vmatpush1.msra.mxu0 0.0
  %2010 = vmatprep.subr.mxu0 0.0
  %2011 = vmatpush1.msra.mxu0 0.0
  %2012 = vmatprep.subr.mxu0 0.0
  %2013 = vmatpush1.msra.mxu0 0.0
  %2014 = vmatprep.subr.mxu0 0.0
  %2015 = vmatpush1.msra.mxu0 0.0
  %2016 = vmatprep.subr.mxu0 0.0
  %2017 = vmatpush1.msra.mxu0 0.0
  %2018 = vmatprep.subr.mxu0 0.0
  %2019 = vmatpush1.msra.mxu0 0.0
  %2020 = vmatprep.subr.mxu0 0.0
  %2021 = vmatpush1.msra.mxu0 0.0
  %2022 = vmatprep.subr.mxu0 0.0
  %2023 = vmatpush1.msra.mxu0 0.0
  %2024 = vmatprep.subr.mxu0 0.0
  %2025 = vmatpush1.msra.mxu0 0.0
  %2026 = vmatprep.subr.mxu0 0.0
  %2027 = vmatpush1.msra.mxu0 0.0
  %2028 = vmatprep.mubr.f32.mxu0 0.0
  %2029 = vmatmul.mubr.f32.gmra.mrb[0].mxu0 %v1956
  %v2030 = vpop.f32.mrb[0].mxu0
  %v2031 = vadd.f32 %v1951, %v2030
  %v2032 = vpop.f32.mrb[0].mxu0
  %v2033 = vadd.f32 %v1953, %v2032
  %2034 = vdwg.mxu0
  %2035 = vrot.lane.b32.xlu0 %v1829, 15
  %v2036 = vpop.permute.xlu0 %2035
  %2037 = vrot.lane.b32.xlu0 %v1831, 15
  %v2038 = vpop.permute.xlu0 %2037
  %v2039 = vsel %vm244, %v2036, %v2038
  %v2040 = vsel %vm244, %v2038, %v2036
  %v2041 = vld [vmem:[%s247] sm:$0x3]
  %v2043 = vlaneseq
  %v2044 = vshrl.u32 %v2043, 7
  %v2045 = vsub.s32 0, %v2044
  %v2046 = vrot.slane %v2041, %v2045
  %v2047 = vlaneseq
  %v2048 = vshrl.u32 %v2047, 7
  %v2049 = vsub.s32 1, %v2048
  %v2050 = vrot.slane %v2041, %v2049
  %v2053 = vmul.f32 %v2040, %v2046
  %v2054 = vmul.f32 %v2039, %v2050
  %v2055 = vld [vmem:[%s262] sm:$0xf]
  %v2057 = vsel %vm78, %v2055, 0
  %v2060 = vsel %vm82, %v2053, 0
  %v2063 = vsel %vm82, %v2054, 0
  %2065 = vmatprep.subr.mxu0 %v2063
  %2066 = vmatpush1.msra.mxu0 %v2060
  %2067 = vmatprep.subr.mxu0 0.0
  %2068 = vmatpush1.msra.mxu0 0.0
  %2069 = vmatprep.subr.mxu0 0.0
  %2070 = vmatpush1.msra.mxu0 0.0
  %2071 = vmatprep.subr.mxu0 0.0
  %2072 = vmatpush1.msra.mxu0 0.0
  %2073 = vmatprep.subr.mxu0 0.0
  %2074 = vmatpush1.msra.mxu0 0.0
  %2075 = vmatprep.subr.mxu0 0.0
  %2076 = vmatpush1.msra.mxu0 0.0
  %2077 = vmatprep.subr.mxu0 0.0
  %2078 = vmatpush1.msra.mxu0 0.0
  %2079 = vmatprep.subr.mxu0 0.0
  %2080 = vmatpush1.msra.mxu0 0.0
  %2081 = vmatprep.subr.mxu0 0.0
  %2082 = vmatpush1.msra.mxu0 0.0
  %2083 = vmatprep.subr.mxu0 0.0
  %2084 = vmatpush1.msra.mxu0 0.0
  %2085 = vmatprep.subr.mxu0 0.0
  %2086 = vmatpush1.msra.mxu0 0.0
  %2087 = vmatprep.subr.mxu0 0.0
  %2088 = vmatpush1.msra.mxu0 0.0
  %2089 = vmatprep.subr.mxu0 0.0
  %2090 = vmatpush1.msra.mxu0 0.0
  %2091 = vmatprep.subr.mxu0 0.0
  %2092 = vmatpush1.msra.mxu0 0.0
  %2093 = vmatprep.subr.mxu0 0.0
  %2094 = vmatpush1.msra.mxu0 0.0
  %2095 = vmatprep.subr.mxu0 0.0
  %2096 = vmatpush1.msra.mxu0 0.0
  %2097 = vmatprep.subr.mxu0 0.0
  %2098 = vmatpush1.msra.mxu0 0.0
  %2099 = vmatprep.subr.mxu0 0.0
  %2100 = vmatpush1.msra.mxu0 0.0
  %2101 = vmatprep.subr.mxu0 0.0
  %2102 = vmatpush1.msra.mxu0 0.0
  %2103 = vmatprep.subr.mxu0 0.0
  %2104 = vmatpush1.msra.mxu0 0.0
  %2105 = vmatprep.subr.mxu0 0.0
  %2106 = vmatpush1.msra.mxu0 0.0
  %2107 = vmatprep.subr.mxu0 0.0
  %2108 = vmatpush1.msra.mxu0 0.0
  %2109 = vmatprep.subr.mxu0 0.0
  %2110 = vmatpush1.msra.mxu0 0.0
  %2111 = vmatprep.subr.mxu0 0.0
  %2112 = vmatpush1.msra.mxu0 0.0
  %2113 = vmatprep.subr.mxu0 0.0
  %2114 = vmatpush1.msra.mxu0 0.0
  %2115 = vmatprep.subr.mxu0 0.0
  %2116 = vmatpush1.msra.mxu0 0.0
  %2117 = vmatprep.subr.mxu0 0.0
  %2118 = vmatpush1.msra.mxu0 0.0
  %2119 = vmatprep.subr.mxu0 0.0
  %2120 = vmatpush1.msra.mxu0 0.0
  %2121 = vmatprep.subr.mxu0 0.0
  %2122 = vmatpush1.msra.mxu0 0.0
  %2123 = vmatprep.subr.mxu0 0.0
  %2124 = vmatpush1.msra.mxu0 0.0
  %2125 = vmatprep.subr.mxu0 0.0
  %2126 = vmatpush1.msra.mxu0 0.0
  %2127 = vmatprep.subr.mxu0 0.0
  %2128 = vmatpush1.msra.mxu0 0.0
  %2129 = vmatprep.mubr.f32.mxu0 0.0
  %2130 = vmatmul.mubr.f32.gmra.mrb[0].mxu0 %v2057
  %v2131 = vpop.f32.mrb[0].mxu0
  %v2132 = vadd.f32 0.0, %v2131
  %v2133 = vpop.f32.mrb[0].mxu0
  %v2134 = vadd.f32 0.0, %v2133
  %2135 = vdwg.mxu0
  %v2136 = vadd.f32 %v2031, %v2132
  %v2137 = vadd.f32 %v2033, %v2134
  %2138 = vrot.lane.b32.xlu0 %v1829, 1
  %v2139 = vpop.permute.xlu0 %2138
  %2140 = vrot.lane.b32.xlu0 %v1831, 1
  %v2141 = vpop.permute.xlu0 %2140
  %v2142 = vsel %vm350, %v2139, %v2141
  %v2143 = vsel %vm350, %v2141, %v2139
  %v2144 = vld [vmem:[%s353] sm:$0x3]
  %v2146 = vlaneseq
  %v2147 = vshrl.u32 %v2146, 7
  %v2148 = vsub.s32 0, %v2147
  %v2149 = vrot.slane %v2144, %v2148
  %v2150 = vlaneseq
  %v2151 = vshrl.u32 %v2150, 7
  %v2152 = vsub.s32 1, %v2151
  %v2153 = vrot.slane %v2144, %v2152
  %v2156 = vmul.f32 %v2143, %v2149
  %v2157 = vmul.f32 %v2142, %v2153
  %v2158 = vld [vmem:[%s368] sm:$0xf]
  %v2160 = vsel %vm78, %v2158, 0
  %v2163 = vsel %vm82, %v2156, 0
  %v2166 = vsel %vm82, %v2157, 0
  %2168 = vmatprep.subr.mxu0 %v2166
  %2169 = vmatpush1.msra.mxu0 %v2163
  %2170 = vmatprep.subr.mxu0 0.0
  %2171 = vmatpush1.msra.mxu0 0.0
  %2172 = vmatprep.subr.mxu0 0.0
  %2173 = vmatpush1.msra.mxu0 0.0
  %2174 = vmatprep.subr.mxu0 0.0
  %2175 = vmatpush1.msra.mxu0 0.0
  %2176 = vmatprep.subr.mxu0 0.0
  %2177 = vmatpush1.msra.mxu0 0.0
  %2178 = vmatprep.subr.mxu0 0.0
  %2179 = vmatpush1.msra.mxu0 0.0
  %2180 = vmatprep.subr.mxu0 0.0
  %2181 = vmatpush1.msra.mxu0 0.0
  %2182 = vmatprep.subr.mxu0 0.0
  %2183 = vmatpush1.msra.mxu0 0.0
  %2184 = vmatprep.subr.mxu0 0.0
  %2185 = vmatpush1.msra.mxu0 0.0
  %2186 = vmatprep.subr.mxu0 0.0
  %2187 = vmatpush1.msra.mxu0 0.0
  %2188 = vmatprep.subr.mxu0 0.0
  %2189 = vmatpush1.msra.mxu0 0.0
  %2190 = vmatprep.subr.mxu0 0.0
  %2191 = vmatpush1.msra.mxu0 0.0
  %2192 = vmatprep.subr.mxu0 0.0
  %2193 = vmatpush1.msra.mxu0 0.0
  %2194 = vmatprep.subr.mxu0 0.0
  %2195 = vmatpush1.msra.mxu0 0.0
  %2196 = vmatprep.subr.mxu0 0.0
  %2197 = vmatpush1.msra.mxu0 0.0
  %2198 = vmatprep.subr.mxu0 0.0
  %2199 = vmatpush1.msra.mxu0 0.0
  %2200 = vmatprep.subr.mxu0 0.0
  %2201 = vmatpush1.msra.mxu0 0.0
  %2202 = vmatprep.subr.mxu0 0.0
  %2203 = vmatpush1.msra.mxu0 0.0
  %2204 = vmatprep.subr.mxu0 0.0
  %2205 = vmatpush1.msra.mxu0 0.0
  %2206 = vmatprep.subr.mxu0 0.0
  %2207 = vmatpush1.msra.mxu0 0.0
  %2208 = vmatprep.subr.mxu0 0.0
  %2209 = vmatpush1.msra.mxu0 0.0
  %2210 = vmatprep.subr.mxu0 0.0
  %2211 = vmatpush1.msra.mxu0 0.0
  %2212 = vmatprep.subr.mxu0 0.0
  %2213 = vmatpush1.msra.mxu0 0.0
  %2214 = vmatprep.subr.mxu0 0.0
  %2215 = vmatpush1.msra.mxu0 0.0
  %2216 = vmatprep.subr.mxu0 0.0
  %2217 = vmatpush1.msra.mxu0 0.0
  %2218 = vmatprep.subr.mxu0 0.0
  %2219 = vmatpush1.msra.mxu0 0.0
  %2220 = vmatprep.subr.mxu0 0.0
  %2221 = vmatpush1.msra.mxu0 0.0
  %2222 = vmatprep.subr.mxu0 0.0
  %2223 = vmatpush1.msra.mxu0 0.0
  %2224 = vmatprep.subr.mxu0 0.0
  %2225 = vmatpush1.msra.mxu0 0.0
  %2226 = vmatprep.subr.mxu0 0.0
  %2227 = vmatpush1.msra.mxu0 0.0
  %2228 = vmatprep.subr.mxu0 0.0
  %2229 = vmatpush1.msra.mxu0 0.0
  %2230 = vmatprep.subr.mxu0 0.0
  %2231 = vmatpush1.msra.mxu0 0.0
  %2232 = vmatprep.mubr.f32.mxu0 0.0
  %2233 = vmatmul.mubr.f32.gmra.mrb[0].mxu0 %v2160
  %v2234 = vpop.f32.mrb[0].mxu0
  %v2235 = vadd.f32 0.0, %v2234
  %v2236 = vpop.f32.mrb[0].mxu0
  %v2237 = vadd.f32 0.0, %v2236
  %2238 = vdwg.mxu0
  %v2239 = vadd.f32 %v2136, %v2235
  %v2240 = vadd.f32 %v2137, %v2237
  %v2241 = vld [vmem:[%s452] sm:$0xf]
  %v2243 = vsel %vm78, %v2241, 0
  %v2245 = vsel %vm82, %v1829, 0
  %v2247 = vsel %vm82, %v1831, 0
  %2249 = vmatprep.subr.mxu0 %v2247
  %2250 = vmatpush1.msra.mxu0 %v2245
  %2251 = vmatprep.subr.mxu0 0.0
  %2252 = vmatpush1.msra.mxu0 0.0
  %2253 = vmatprep.subr.mxu0 0.0
  %2254 = vmatpush1.msra.mxu0 0.0
  %2255 = vmatprep.subr.mxu0 0.0
  %2256 = vmatpush1.msra.mxu0 0.0
  %2257 = vmatprep.subr.mxu0 0.0
  %2258 = vmatpush1.msra.mxu0 0.0
  %2259 = vmatprep.subr.mxu0 0.0
  %2260 = vmatpush1.msra.mxu0 0.0
  %2261 = vmatprep.subr.mxu0 0.0
  %2262 = vmatpush1.msra.mxu0 0.0
  %2263 = vmatprep.subr.mxu0 0.0
  %2264 = vmatpush1.msra.mxu0 0.0
  %2265 = vmatprep.subr.mxu0 0.0
  %2266 = vmatpush1.msra.mxu0 0.0
  %2267 = vmatprep.subr.mxu0 0.0
  %2268 = vmatpush1.msra.mxu0 0.0
  %2269 = vmatprep.subr.mxu0 0.0
  %2270 = vmatpush1.msra.mxu0 0.0
  %2271 = vmatprep.subr.mxu0 0.0
  %2272 = vmatpush1.msra.mxu0 0.0
  %2273 = vmatprep.subr.mxu0 0.0
  %2274 = vmatpush1.msra.mxu0 0.0
  %2275 = vmatprep.subr.mxu0 0.0
  %2276 = vmatpush1.msra.mxu0 0.0
  %2277 = vmatprep.subr.mxu0 0.0
  %2278 = vmatpush1.msra.mxu0 0.0
  %2279 = vmatprep.subr.mxu0 0.0
  %2280 = vmatpush1.msra.mxu0 0.0
  %2281 = vmatprep.subr.mxu0 0.0
  %2282 = vmatpush1.msra.mxu0 0.0
  %2283 = vmatprep.subr.mxu0 0.0
  %2284 = vmatpush1.msra.mxu0 0.0
  %2285 = vmatprep.subr.mxu0 0.0
  %2286 = vmatpush1.msra.mxu0 0.0
  %2287 = vmatprep.subr.mxu0 0.0
  %2288 = vmatpush1.msra.mxu0 0.0
  %2289 = vmatprep.subr.mxu0 0.0
  %2290 = vmatpush1.msra.mxu0 0.0
  %2291 = vmatprep.subr.mxu0 0.0
  %2292 = vmatpush1.msra.mxu0 0.0
  %2293 = vmatprep.subr.mxu0 0.0
  %2294 = vmatpush1.msra.mxu0 0.0
  %2295 = vmatprep.subr.mxu0 0.0
  %2296 = vmatpush1.msra.mxu0 0.0
  %2297 = vmatprep.subr.mxu0 0.0
  %2298 = vmatpush1.msra.mxu0 0.0
  %2299 = vmatprep.subr.mxu0 0.0
  %2300 = vmatpush1.msra.mxu0 0.0
  %2301 = vmatprep.subr.mxu0 0.0
  %2302 = vmatpush1.msra.mxu0 0.0
  %2303 = vmatprep.subr.mxu0 0.0
  %2304 = vmatpush1.msra.mxu0 0.0
  %2305 = vmatprep.subr.mxu0 0.0
  %2306 = vmatpush1.msra.mxu0 0.0
  %2307 = vmatprep.subr.mxu0 0.0
  %2308 = vmatpush1.msra.mxu0 0.0
  %2309 = vmatprep.subr.mxu0 0.0
  %2310 = vmatpush1.msra.mxu0 0.0
  %2311 = vmatprep.subr.mxu0 0.0
  %2312 = vmatpush1.msra.mxu0 0.0
  %2313 = vmatprep.mubr.f32.mxu0 0.0
  %2314 = vmatmul.mubr.f32.gmra.mrb[0].mxu0 %v2243
  %v2315 = vpop.f32.mrb[0].mxu0
  %v2316 = vadd.f32 0.0, %v2315
  %v2317 = vpop.f32.mrb[0].mxu0
  %v2318 = vadd.f32 0.0, %v2317
  %2319 = vdwg.mxu0
  %v2320 = vadd.f32 %v2239, %v2316
  %v2321 = vadd.f32 %v2240, %v2318
  %2322 = vrot.lane.b32.xlu0 %v1829, 127
  %v2323 = vpop.permute.xlu0 %2322
  %2324 = vrot.lane.b32.xlu0 %v1831, 127
  %v2325 = vpop.permute.xlu0 %2324
  %v2326 = vsel %vm538, %v2323, %v2325
  %v2327 = vsel %vm538, %v2325, %v2323
  %v2328 = vld [vmem:[%s541] sm:$0x3]
  %v2330 = vlaneseq
  %v2331 = vshrl.u32 %v2330, 7
  %v2332 = vsub.s32 0, %v2331
  %v2333 = vrot.slane %v2328, %v2332
  %v2334 = vlaneseq
  %v2335 = vshrl.u32 %v2334, 7
  %v2336 = vsub.s32 1, %v2335
  %v2337 = vrot.slane %v2328, %v2336
  %v2340 = vmul.f32 %v2326, %v2333
  %v2341 = vmul.f32 %v2327, %v2337
  %v2342 = vld [vmem:[%s556] sm:$0xf]
  %v2344 = vsel %vm78, %v2342, 0
  %v2347 = vsel %vm82, %v2340, 0
  %v2350 = vsel %vm82, %v2341, 0
  %2352 = vmatprep.subr.mxu0 %v2350
  %2353 = vmatpush1.msra.mxu0 %v2347
  %2354 = vmatprep.subr.mxu0 0.0
  %2355 = vmatpush1.msra.mxu0 0.0
  %2356 = vmatprep.subr.mxu0 0.0
  %2357 = vmatpush1.msra.mxu0 0.0
  %2358 = vmatprep.subr.mxu0 0.0
  %2359 = vmatpush1.msra.mxu0 0.0
  %2360 = vmatprep.subr.mxu0 0.0
  %2361 = vmatpush1.msra.mxu0 0.0
  %2362 = vmatprep.subr.mxu0 0.0
  %2363 = vmatpush1.msra.mxu0 0.0
  %2364 = vmatprep.subr.mxu0 0.0
  %2365 = vmatpush1.msra.mxu0 0.0
  %2366 = vmatprep.subr.mxu0 0.0
  %2367 = vmatpush1.msra.mxu0 0.0
  %2368 = vmatprep.subr.mxu0 0.0
  %2369 = vmatpush1.msra.mxu0 0.0
  %2370 = vmatprep.subr.mxu0 0.0
  %2371 = vmatpush1.msra.mxu0 0.0
  %2372 = vmatprep.subr.mxu0 0.0
  %2373 = vmatpush1.msra.mxu0 0.0
  %2374 = vmatprep.subr.mxu0 0.0
  %2375 = vmatpush1.msra.mxu0 0.0
  %2376 = vmatprep.subr.mxu0 0.0
  %2377 = vmatpush1.msra.mxu0 0.0
  %2378 = vmatprep.subr.mxu0 0.0
  %2379 = vmatpush1.msra.mxu0 0.0
  %2380 = vmatprep.subr.mxu0 0.0
  %2381 = vmatpush1.msra.mxu0 0.0
  %2382 = vmatprep.subr.mxu0 0.0
  %2383 = vmatpush1.msra.mxu0 0.0
  %2384 = vmatprep.subr.mxu0 0.0
  %2385 = vmatpush1.msra.mxu0 0.0
  %2386 = vmatprep.subr.mxu0 0.0
  %2387 = vmatpush1.msra.mxu0 0.0
  %2388 = vmatprep.subr.mxu0 0.0
  %2389 = vmatpush1.msra.mxu0 0.0
  %2390 = vmatprep.subr.mxu0 0.0
  %2391 = vmatpush1.msra.mxu0 0.0
  %2392 = vmatprep.subr.mxu0 0.0
  %2393 = vmatpush1.msra.mxu0 0.0
  %2394 = vmatprep.subr.mxu0 0.0
  %2395 = vmatpush1.msra.mxu0 0.0
  %2396 = vmatprep.subr.mxu0 0.0
  %2397 = vmatpush1.msra.mxu0 0.0
  %2398 = vmatprep.subr.mxu0 0.0
  %2399 = vmatpush1.msra.mxu0 0.0
  %2400 = vmatprep.subr.mxu0 0.0
  %2401 = vmatpush1.msra.mxu0 0.0
  %2402 = vmatprep.subr.mxu0 0.0
  %2403 = vmatpush1.msra.mxu0 0.0
  %2404 = vmatprep.subr.mxu0 0.0
  %2405 = vmatpush1.msra.mxu0 0.0
  %2406 = vmatprep.subr.mxu0 0.0
  %2407 = vmatpush1.msra.mxu0 0.0
  %2408 = vmatprep.subr.mxu0 0.0
  %2409 = vmatpush1.msra.mxu0 0.0
  %2410 = vmatprep.subr.mxu0 0.0
  %2411 = vmatpush1.msra.mxu0 0.0
  %2412 = vmatprep.subr.mxu0 0.0
  %2413 = vmatpush1.msra.mxu0 0.0
  %2414 = vmatprep.subr.mxu0 0.0
  %2415 = vmatpush1.msra.mxu0 0.0
  %2416 = vmatprep.mubr.f32.mxu0 0.0
  %2417 = vmatmul.mubr.f32.gmra.mrb[0].mxu0 %v2344
  %v2418 = vpop.f32.mrb[0].mxu0
  %v2419 = vadd.f32 0.0, %v2418
  %v2420 = vpop.f32.mrb[0].mxu0
  %v2421 = vadd.f32 0.0, %v2420
  %2422 = vdwg.mxu0
  %v2423 = vadd.f32 %v2320, %v2419
  %v2424 = vadd.f32 %v2321, %v2421
  %2425 = vrot.lane.b32.xlu0 %v1829, 113
  %v2426 = vpop.permute.xlu0 %2425
  %2427 = vrot.lane.b32.xlu0 %v1831, 113
  %v2428 = vpop.permute.xlu0 %2427
  %v2429 = vsel %vm644, %v2426, %v2428
  %v2430 = vsel %vm644, %v2428, %v2426
  %v2431 = vld [vmem:[%s647] sm:$0x3]
  %v2433 = vlaneseq
  %v2434 = vshrl.u32 %v2433, 7
  %v2435 = vsub.s32 0, %v2434
  %v2436 = vrot.slane %v2431, %v2435
  %v2437 = vlaneseq
  %v2438 = vshrl.u32 %v2437, 7
  %v2439 = vsub.s32 1, %v2438
  %v2440 = vrot.slane %v2431, %v2439
  %v2443 = vmul.f32 %v2429, %v2436
  %v2444 = vmul.f32 %v2430, %v2440
  %v2445 = vld [vmem:[%s662] sm:$0xf]
  %v2447 = vsel %vm78, %v2445, 0
  %v2450 = vsel %vm82, %v2443, 0
  %v2453 = vsel %vm82, %v2444, 0
  %2455 = vmatprep.subr.mxu0 %v2453
  %2456 = vmatpush1.msra.mxu0 %v2450
  %2457 = vmatprep.subr.mxu0 0.0
  %2458 = vmatpush1.msra.mxu0 0.0
  %2459 = vmatprep.subr.mxu0 0.0
  %2460 = vmatpush1.msra.mxu0 0.0
  %2461 = vmatprep.subr.mxu0 0.0
  %2462 = vmatpush1.msra.mxu0 0.0
  %2463 = vmatprep.subr.mxu0 0.0
  %2464 = vmatpush1.msra.mxu0 0.0
  %2465 = vmatprep.subr.mxu0 0.0
  %2466 = vmatpush1.msra.mxu0 0.0
  %2467 = vmatprep.subr.mxu0 0.0
  %2468 = vmatpush1.msra.mxu0 0.0
  %2469 = vmatprep.subr.mxu0 0.0
  %2470 = vmatpush1.msra.mxu0 0.0
  %2471 = vmatprep.subr.mxu0 0.0
  %2472 = vmatpush1.msra.mxu0 0.0
  %2473 = vmatprep.subr.mxu0 0.0
  %2474 = vmatpush1.msra.mxu0 0.0
  %2475 = vmatprep.subr.mxu0 0.0
  %2476 = vmatpush1.msra.mxu0 0.0
  %2477 = vmatprep.subr.mxu0 0.0
  %2478 = vmatpush1.msra.mxu0 0.0
  %2479 = vmatprep.subr.mxu0 0.0
  %2480 = vmatpush1.msra.mxu0 0.0
  %2481 = vmatprep.subr.mxu0 0.0
  %2482 = vmatpush1.msra.mxu0 0.0
  %2483 = vmatprep.subr.mxu0 0.0
  %2484 = vmatpush1.msra.mxu0 0.0
  %2485 = vmatprep.subr.mxu0 0.0
  %2486 = vmatpush1.msra.mxu0 0.0
  %2487 = vmatprep.subr.mxu0 0.0
  %2488 = vmatpush1.msra.mxu0 0.0
  %2489 = vmatprep.subr.mxu0 0.0
  %2490 = vmatpush1.msra.mxu0 0.0
  %2491 = vmatprep.subr.mxu0 0.0
  %2492 = vmatpush1.msra.mxu0 0.0
  %2493 = vmatprep.subr.mxu0 0.0
  %2494 = vmatpush1.msra.mxu0 0.0
  %2495 = vmatprep.subr.mxu0 0.0
  %2496 = vmatpush1.msra.mxu0 0.0
  %2497 = vmatprep.subr.mxu0 0.0
  %2498 = vmatpush1.msra.mxu0 0.0
  %2499 = vmatprep.subr.mxu0 0.0
  %2500 = vmatpush1.msra.mxu0 0.0
  %2501 = vmatprep.subr.mxu0 0.0
  %2502 = vmatpush1.msra.mxu0 0.0
  %2503 = vmatprep.subr.mxu0 0.0
  %2504 = vmatpush1.msra.mxu0 0.0
  %2505 = vmatprep.subr.mxu0 0.0
  %2506 = vmatpush1.msra.mxu0 0.0
  %2507 = vmatprep.subr.mxu0 0.0
  %2508 = vmatpush1.msra.mxu0 0.0
  %2509 = vmatprep.subr.mxu0 0.0
  %2510 = vmatpush1.msra.mxu0 0.0
  %2511 = vmatprep.subr.mxu0 0.0
  %2512 = vmatpush1.msra.mxu0 0.0
  %2513 = vmatprep.subr.mxu0 0.0
  %2514 = vmatpush1.msra.mxu0 0.0
  %2515 = vmatprep.subr.mxu0 0.0
  %2516 = vmatpush1.msra.mxu0 0.0
  %2517 = vmatprep.subr.mxu0 0.0
  %2518 = vmatpush1.msra.mxu0 0.0
  %2519 = vmatprep.mubr.f32.mxu0 0.0
  %2520 = vmatmul.mubr.f32.gmra.mrb[0].mxu0 %v2447
  %v2521 = vpop.f32.mrb[0].mxu0
  %v2522 = vadd.f32 0.0, %v2521
  %v2523 = vpop.f32.mrb[0].mxu0
  %v2524 = vadd.f32 0.0, %v2523
  %2525 = vdwg.mxu0
  %v2526 = vadd.f32 %v2423, %v2522
  %v2527 = vadd.f32 %v2424, %v2524
  %2528 = vrot.lane.b32.xlu0 %v1829, 112
  %v2529 = vpop.permute.xlu0 %2528
  %2530 = vrot.lane.b32.xlu0 %v1831, 112
  %v2531 = vpop.permute.xlu0 %2530
  %v2532 = vsel %vm750, %v2529, %v2531
  %v2533 = vsel %vm750, %v2531, %v2529
  %v2534 = vld [vmem:[%s753] sm:$0x3]
  %v2536 = vlaneseq
  %v2537 = vshrl.u32 %v2536, 7
  %v2538 = vsub.s32 0, %v2537
  %v2539 = vrot.slane %v2534, %v2538
  %v2540 = vlaneseq
  %v2541 = vshrl.u32 %v2540, 7
  %v2542 = vsub.s32 1, %v2541
  %v2543 = vrot.slane %v2534, %v2542
  %v2546 = vmul.f32 %v2532, %v2539
  %v2547 = vmul.f32 %v2533, %v2543
  %v2548 = vld [vmem:[%s768] sm:$0xf]
  %v2550 = vsel %vm78, %v2548, 0
  %v2553 = vsel %vm82, %v2546, 0
  %v2556 = vsel %vm82, %v2547, 0
  %2558 = vmatprep.subr.mxu0 %v2556
  %2559 = vmatpush1.msra.mxu0 %v2553
  %2560 = vmatprep.subr.mxu0 0.0
  %2561 = vmatpush1.msra.mxu0 0.0
  %2562 = vmatprep.subr.mxu0 0.0
  %2563 = vmatpush1.msra.mxu0 0.0
  %2564 = vmatprep.subr.mxu0 0.0
  %2565 = vmatpush1.msra.mxu0 0.0
  %2566 = vmatprep.subr.mxu0 0.0
  %2567 = vmatpush1.msra.mxu0 0.0
  %2568 = vmatprep.subr.mxu0 0.0
  %2569 = vmatpush1.msra.mxu0 0.0
  %2570 = vmatprep.subr.mxu0 0.0
  %2571 = vmatpush1.msra.mxu0 0.0
  %2572 = vmatprep.subr.mxu0 0.0
  %2573 = vmatpush1.msra.mxu0 0.0
  %2574 = vmatprep.subr.mxu0 0.0
  %2575 = vmatpush1.msra.mxu0 0.0
  %2576 = vmatprep.subr.mxu0 0.0
  %2577 = vmatpush1.msra.mxu0 0.0
  %2578 = vmatprep.subr.mxu0 0.0
  %2579 = vmatpush1.msra.mxu0 0.0
  %2580 = vmatprep.subr.mxu0 0.0
  %2581 = vmatpush1.msra.mxu0 0.0
  %2582 = vmatprep.subr.mxu0 0.0
  %2583 = vmatpush1.msra.mxu0 0.0
  %2584 = vmatprep.subr.mxu0 0.0
  %2585 = vmatpush1.msra.mxu0 0.0
  %2586 = vmatprep.subr.mxu0 0.0
  %2587 = vmatpush1.msra.mxu0 0.0
  %2588 = vmatprep.subr.mxu0 0.0
  %2589 = vmatpush1.msra.mxu0 0.0
  %2590 = vmatprep.subr.mxu0 0.0
  %2591 = vmatpush1.msra.mxu0 0.0
  %2592 = vmatprep.subr.mxu0 0.0
  %2593 = vmatpush1.msra.mxu0 0.0
  %2594 = vmatprep.subr.mxu0 0.0
  %2595 = vmatpush1.msra.mxu0 0.0
  %2596 = vmatprep.subr.mxu0 0.0
  %2597 = vmatpush1.msra.mxu0 0.0
  %2598 = vmatprep.subr.mxu0 0.0
  %2599 = vmatpush1.msra.mxu0 0.0
  %2600 = vmatprep.subr.mxu0 0.0
  %2601 = vmatpush1.msra.mxu0 0.0
  %2602 = vmatprep.subr.mxu0 0.0
  %2603 = vmatpush1.msra.mxu0 0.0
  %2604 = vmatprep.subr.mxu0 0.0
  %2605 = vmatpush1.msra.mxu0 0.0
  %2606 = vmatprep.subr.mxu0 0.0
  %2607 = vmatpush1.msra.mxu0 0.0
  %2608 = vmatprep.subr.mxu0 0.0
  %2609 = vmatpush1.msra.mxu0 0.0
  %2610 = vmatprep.subr.mxu0 0.0
  %2611 = vmatpush1.msra.mxu0 0.0
  %2612 = vmatprep.subr.mxu0 0.0
  %2613 = vmatpush1.msra.mxu0 0.0
  %2614 = vmatprep.subr.mxu0 0.0
  %2615 = vmatpush1.msra.mxu0 0.0
  %2616 = vmatprep.subr.mxu0 0.0
  %2617 = vmatpush1.msra.mxu0 0.0
  %2618 = vmatprep.subr.mxu0 0.0
  %2619 = vmatpush1.msra.mxu0 0.0
  %2620 = vmatprep.subr.mxu0 0.0
  %2621 = vmatpush1.msra.mxu0 0.0
  %2622 = vmatprep.mubr.f32.mxu0 0.0
  %2623 = vmatmul.mubr.f32.gmra.mrb[0].mxu0 %v2550
  %v2624 = vpop.f32.mrb[0].mxu0
  %v2625 = vadd.f32 0.0, %v2624
  %v2626 = vpop.f32.mrb[0].mxu0
  %v2627 = vadd.f32 0.0, %v2626
  %2628 = vdwg.mxu0
  %v2629 = vadd.f32 %v2526, %v2625
  %v2630 = vadd.f32 %v2527, %v2627
  %2631 = vrot.lane.b32.xlu0 %v1829, 111
  %v2632 = vpop.permute.xlu0 %2631
  %2633 = vrot.lane.b32.xlu0 %v1831, 111
  %v2634 = vpop.permute.xlu0 %2633
  %v2635 = vsel %vm856, %v2632, %v2634
  %v2636 = vsel %vm856, %v2634, %v2632
  %v2637 = vld [vmem:[%s859] sm:$0x3]
  %v2639 = vlaneseq
  %v2640 = vshrl.u32 %v2639, 7
  %v2641 = vsub.s32 0, %v2640
  %v2642 = vrot.slane %v2637, %v2641
  %v2643 = vlaneseq
  %v2644 = vshrl.u32 %v2643, 7
  %v2645 = vsub.s32 1, %v2644
  %v2646 = vrot.slane %v2637, %v2645
  %v2649 = vmul.f32 %v2635, %v2642
  %v2650 = vmul.f32 %v2636, %v2646
  %v2651 = vld [vmem:[%s874] sm:$0xf]
  %v2653 = vsel %vm78, %v2651, 0
  %v2656 = vsel %vm82, %v2649, 0
  %v2659 = vsel %vm82, %v2650, 0
  %2661 = vmatprep.subr.mxu0 %v2659
  %2662 = vmatpush1.msra.mxu0 %v2656
  %2663 = vmatprep.subr.mxu0 0.0
  %2664 = vmatpush1.msra.mxu0 0.0
  %2665 = vmatprep.subr.mxu0 0.0
  %2666 = vmatpush1.msra.mxu0 0.0
  %2667 = vmatprep.subr.mxu0 0.0
  %2668 = vmatpush1.msra.mxu0 0.0
  %2669 = vmatprep.subr.mxu0 0.0
  %2670 = vmatpush1.msra.mxu0 0.0
  %2671 = vmatprep.subr.mxu0 0.0
  %2672 = vmatpush1.msra.mxu0 0.0
  %2673 = vmatprep.subr.mxu0 0.0
  %2674 = vmatpush1.msra.mxu0 0.0
  %2675 = vmatprep.subr.mxu0 0.0
  %2676 = vmatpush1.msra.mxu0 0.0
  %2677 = vmatprep.subr.mxu0 0.0
  %2678 = vmatpush1.msra.mxu0 0.0
  %2679 = vmatprep.subr.mxu0 0.0
  %2680 = vmatpush1.msra.mxu0 0.0
  %2681 = vmatprep.subr.mxu0 0.0
  %2682 = vmatpush1.msra.mxu0 0.0
  %2683 = vmatprep.subr.mxu0 0.0
  %2684 = vmatpush1.msra.mxu0 0.0
  %2685 = vmatprep.subr.mxu0 0.0
  %2686 = vmatpush1.msra.mxu0 0.0
  %2687 = vmatprep.subr.mxu0 0.0
  %2688 = vmatpush1.msra.mxu0 0.0
  %2689 = vmatprep.subr.mxu0 0.0
  %2690 = vmatpush1.msra.mxu0 0.0
  %2691 = vmatprep.subr.mxu0 0.0
  %2692 = vmatpush1.msra.mxu0 0.0
  %2693 = vmatprep.subr.mxu0 0.0
  %2694 = vmatpush1.msra.mxu0 0.0
  %2695 = vmatprep.subr.mxu0 0.0
  %2696 = vmatpush1.msra.mxu0 0.0
  %2697 = vmatprep.subr.mxu0 0.0
  %2698 = vmatpush1.msra.mxu0 0.0
  %2699 = vmatprep.subr.mxu0 0.0
  %2700 = vmatpush1.msra.mxu0 0.0
  %2701 = vmatprep.subr.mxu0 0.0
  %2702 = vmatpush1.msra.mxu0 0.0
  %2703 = vmatprep.subr.mxu0 0.0
  %2704 = vmatpush1.msra.mxu0 0.0
  %2705 = vmatprep.subr.mxu0 0.0
  %2706 = vmatpush1.msra.mxu0 0.0
  %2707 = vmatprep.subr.mxu0 0.0
  %2708 = vmatpush1.msra.mxu0 0.0
  %2709 = vmatprep.subr.mxu0 0.0
  %2710 = vmatpush1.msra.mxu0 0.0
  %2711 = vmatprep.subr.mxu0 0.0
  %2712 = vmatpush1.msra.mxu0 0.0
  %2713 = vmatprep.subr.mxu0 0.0
  %2714 = vmatpush1.msra.mxu0 0.0
  %2715 = vmatprep.subr.mxu0 0.0
  %2716 = vmatpush1.msra.mxu0 0.0
  %2717 = vmatprep.subr.mxu0 0.0
  %2718 = vmatpush1.msra.mxu0 0.0
  %2719 = vmatprep.subr.mxu0 0.0
  %2720 = vmatpush1.msra.mxu0 0.0
  %2721 = vmatprep.subr.mxu0 0.0
  %2722 = vmatpush1.msra.mxu0 0.0
  %2723 = vmatprep.subr.mxu0 0.0
  %2724 = vmatpush1.msra.mxu0 0.0
  %2725 = vmatprep.mubr.f32.mxu0 0.0
  %2726 = vmatmul.mubr.f32.gmra.mrb[0].mxu0 %v2653
  %v2727 = vpop.f32.mrb[0].mxu0
  %v2728 = vadd.f32 0.0, %v2727
  %v2729 = vpop.f32.mrb[0].mxu0
  %v2730 = vadd.f32 0.0, %v2729
  %2731 = vdwg.mxu0
  %v2732 = vadd.f32 %v2629, %v2728
  %v2733 = vadd.f32 %v2630, %v2730
  %v2734 = vadd.f32 %v2732, %v961
  %v2735 = vadd.f32 %v2733, %v961
  %v2736 = vmax.f32 %v2734, 0.0
  %v2737 = vmax.f32 %v2735, 0.0
  %v2738 = vadd.f32 %v1828, %v977
  %2739 = vrot.lane.b32.xlu0 %v2736, 17
  %v2740 = vpop.permute.xlu0 %2739
  %2741 = vrot.lane.b32.xlu0 %v2737, 17
  %v2742 = vpop.permute.xlu0 %2741
  %v2743 = vsel %vm36, %v2740, %v2742
  %v2744 = vsel %vm36, %v2742, %v2740
  %v2745 = vmul.f32 %v2744, %v1844
  %v2746 = vmul.f32 %v2743, %v1848
  %v2747 = vld [vmem:[%s2] sm:$0xf]
  %v2749 = vsel %vm78, %v2747, 0
  %v2752 = vsel %vm82, %v2745, 0
  %v2755 = vsel %vm82, %v2746, 0
  %2757 = vmatprep.subr.mxu0 %v2755
  %2758 = vmatpush1.msra.mxu0 %v2752
  %2759 = vmatprep.subr.mxu0 0.0
  %2760 = vmatpush1.msra.mxu0 0.0
  %2761 = vmatprep.subr.mxu0 0.0
  %2762 = vmatpush1.msra.mxu0 0.0
  %2763 = vmatprep.subr.mxu0 0.0
  %2764 = vmatpush1.msra.mxu0 0.0
  %2765 = vmatprep.subr.mxu0 0.0
  %2766 = vmatpush1.msra.mxu0 0.0
  %2767 = vmatprep.subr.mxu0 0.0
  %2768 = vmatpush1.msra.mxu0 0.0
  %2769 = vmatprep.subr.mxu0 0.0
  %2770 = vmatpush1.msra.mxu0 0.0
  %2771 = vmatprep.subr.mxu0 0.0
  %2772 = vmatpush1.msra.mxu0 0.0
  %2773 = vmatprep.subr.mxu0 0.0
  %2774 = vmatpush1.msra.mxu0 0.0
  %2775 = vmatprep.subr.mxu0 0.0
  %2776 = vmatpush1.msra.mxu0 0.0
  %2777 = vmatprep.subr.mxu0 0.0
  %2778 = vmatpush1.msra.mxu0 0.0
  %2779 = vmatprep.subr.mxu0 0.0
  %2780 = vmatpush1.msra.mxu0 0.0
  %2781 = vmatprep.subr.mxu0 0.0
  %2782 = vmatpush1.msra.mxu0 0.0
  %2783 = vmatprep.subr.mxu0 0.0
  %2784 = vmatpush1.msra.mxu0 0.0
  %2785 = vmatprep.subr.mxu0 0.0
  %2786 = vmatpush1.msra.mxu0 0.0
  %2787 = vmatprep.subr.mxu0 0.0
  %2788 = vmatpush1.msra.mxu0 0.0
  %2789 = vmatprep.subr.mxu0 0.0
  %2790 = vmatpush1.msra.mxu0 0.0
  %2791 = vmatprep.subr.mxu0 0.0
  %2792 = vmatpush1.msra.mxu0 0.0
  %2793 = vmatprep.subr.mxu0 0.0
  %2794 = vmatpush1.msra.mxu0 0.0
  %2795 = vmatprep.subr.mxu0 0.0
  %2796 = vmatpush1.msra.mxu0 0.0
  %2797 = vmatprep.subr.mxu0 0.0
  %2798 = vmatpush1.msra.mxu0 0.0
  %2799 = vmatprep.subr.mxu0 0.0
  %2800 = vmatpush1.msra.mxu0 0.0
  %2801 = vmatprep.subr.mxu0 0.0
  %2802 = vmatpush1.msra.mxu0 0.0
  %2803 = vmatprep.subr.mxu0 0.0
  %2804 = vmatpush1.msra.mxu0 0.0
  %2805 = vmatprep.subr.mxu0 0.0
  %2806 = vmatpush1.msra.mxu0 0.0
  %2807 = vmatprep.subr.mxu0 0.0
  %2808 = vmatpush1.msra.mxu0 0.0
  %2809 = vmatprep.subr.mxu0 0.0
  %2810 = vmatpush1.msra.mxu0 0.0
  %2811 = vmatprep.subr.mxu0 0.0
  %2812 = vmatpush1.msra.mxu0 0.0
  %2813 = vmatprep.subr.mxu0 0.0
  %2814 = vmatpush1.msra.mxu0 0.0
  %2815 = vmatprep.subr.mxu0 0.0
  %2816 = vmatpush1.msra.mxu0 0.0
  %2817 = vmatprep.subr.mxu0 0.0
  %2818 = vmatpush1.msra.mxu0 0.0
  %2819 = vmatprep.subr.mxu0 0.0
  %2820 = vmatpush1.msra.mxu0 0.0
  %2821 = vmatprep.mubr.f32.mxu0 0.0
  %2822 = vmatmul.mubr.f32.gmra.mrb[0].mxu0 %v2749
  %v2823 = vpop.f32.mrb[0].mxu0
  %v2824 = vadd.f32 0.0, %v2823
  %v2825 = vpop.f32.mrb[0].mxu0
  %v2826 = vadd.f32 0.0, %v2825
  %2827 = vdwg.mxu0
  %v2830 = vcombine.low %v2824, %v2826
  %v2832 = vadd.f32 %v2738, %v2830
  %2833 = vrot.lane.b32.xlu0 %v2736, 16
  %v2834 = vpop.permute.xlu0 %2833
  %2835 = vrot.lane.b32.xlu0 %v2737, 16
  %v2836 = vpop.permute.xlu0 %2835
  %v2837 = vsel %vm58, %v2834, %v2836
  %v2838 = vsel %vm58, %v2836, %v2834
  %v2839 = vmul.f32 %v2838, %v1865
  %v2840 = vmul.f32 %v2837, %v1869
  %v2841 = vld [vmem:[%s1082] sm:$0xf]
  %v2843 = vsel %vm78, %v2841, 0
  %v2846 = vsel %vm82, %v2839, 0
  %v2849 = vsel %vm82, %v2840, 0
  %2851 = vmatprep.subr.mxu0 %v2849
  %2852 = vmatpush1.msra.mxu0 %v2846
  %2853 = vmatprep.subr.mxu0 0.0
  %2854 = vmatpush1.msra.mxu0 0.0
  %2855 = vmatprep.subr.mxu0 0.0
  %2856 = vmatpush1.msra.mxu0 0.0
  %2857 = vmatprep.subr.mxu0 0.0
  %2858 = vmatpush1.msra.mxu0 0.0
  %2859 = vmatprep.subr.mxu0 0.0
  %2860 = vmatpush1.msra.mxu0 0.0
  %2861 = vmatprep.subr.mxu0 0.0
  %2862 = vmatpush1.msra.mxu0 0.0
  %2863 = vmatprep.subr.mxu0 0.0
  %2864 = vmatpush1.msra.mxu0 0.0
  %2865 = vmatprep.subr.mxu0 0.0
  %2866 = vmatpush1.msra.mxu0 0.0
  %2867 = vmatprep.subr.mxu0 0.0
  %2868 = vmatpush1.msra.mxu0 0.0
  %2869 = vmatprep.subr.mxu0 0.0
  %2870 = vmatpush1.msra.mxu0 0.0
  %2871 = vmatprep.subr.mxu0 0.0
  %2872 = vmatpush1.msra.mxu0 0.0
  %2873 = vmatprep.subr.mxu0 0.0
  %2874 = vmatpush1.msra.mxu0 0.0
  %2875 = vmatprep.subr.mxu0 0.0
  %2876 = vmatpush1.msra.mxu0 0.0
  %2877 = vmatprep.subr.mxu0 0.0
  %2878 = vmatpush1.msra.mxu0 0.0
  %2879 = vmatprep.subr.mxu0 0.0
  %2880 = vmatpush1.msra.mxu0 0.0
  %2881 = vmatprep.subr.mxu0 0.0
  %2882 = vmatpush1.msra.mxu0 0.0
  %2883 = vmatprep.subr.mxu0 0.0
  %2884 = vmatpush1.msra.mxu0 0.0
  %2885 = vmatprep.subr.mxu0 0.0
  %2886 = vmatpush1.msra.mxu0 0.0
  %2887 = vmatprep.subr.mxu0 0.0
  %2888 = vmatpush1.msra.mxu0 0.0
  %2889 = vmatprep.subr.mxu0 0.0
  %2890 = vmatpush1.msra.mxu0 0.0
  %2891 = vmatprep.subr.mxu0 0.0
  %2892 = vmatpush1.msra.mxu0 0.0
  %2893 = vmatprep.subr.mxu0 0.0
  %2894 = vmatpush1.msra.mxu0 0.0
  %2895 = vmatprep.subr.mxu0 0.0
  %2896 = vmatpush1.msra.mxu0 0.0
  %2897 = vmatprep.subr.mxu0 0.0
  %2898 = vmatpush1.msra.mxu0 0.0
  %2899 = vmatprep.subr.mxu0 0.0
  %2900 = vmatpush1.msra.mxu0 0.0
  %2901 = vmatprep.subr.mxu0 0.0
  %2902 = vmatpush1.msra.mxu0 0.0
  %2903 = vmatprep.subr.mxu0 0.0
  %2904 = vmatpush1.msra.mxu0 0.0
  %2905 = vmatprep.subr.mxu0 0.0
  %2906 = vmatpush1.msra.mxu0 0.0
  %2907 = vmatprep.subr.mxu0 0.0
  %2908 = vmatpush1.msra.mxu0 0.0
  %2909 = vmatprep.subr.mxu0 0.0
  %2910 = vmatpush1.msra.mxu0 0.0
  %2911 = vmatprep.subr.mxu0 0.0
  %2912 = vmatpush1.msra.mxu0 0.0
  %2913 = vmatprep.subr.mxu0 0.0
  %2914 = vmatpush1.msra.mxu0 0.0
  %2915 = vmatprep.mubr.f32.mxu0 0.0
  %2916 = vmatmul.mubr.f32.gmra.mrb[0].mxu0 %v2843
  %v2917 = vpop.f32.mrb[0].mxu0
  %v2918 = vadd.f32 0.0, %v2917
  %v2919 = vpop.f32.mrb[0].mxu0
  %v2920 = vadd.f32 0.0, %v2919
  %2921 = vdwg.mxu0
  %v2924 = vcombine.low %v2918, %v2920
  %v2926 = vadd.f32 %v2832, %v2924
  %2927 = vrot.lane.b32.xlu0 %v2736, 15
  %v2928 = vpop.permute.xlu0 %2927
  %2929 = vrot.lane.b32.xlu0 %v2737, 15
  %v2930 = vpop.permute.xlu0 %2929
  %v2931 = vsel %vm244, %v2928, %v2930
  %v2932 = vsel %vm244, %v2930, %v2928
  %v2933 = vmul.f32 %v2932, %v2046
  %v2934 = vmul.f32 %v2931, %v2050
  %v2935 = vld [vmem:[%s1177] sm:$0xf]
  %v2937 = vsel %vm78, %v2935, 0
  %v2940 = vsel %vm82, %v2933, 0
  %v2943 = vsel %vm82, %v2934, 0
  %2945 = vmatprep.subr.mxu0 %v2943
  %2946 = vmatpush1.msra.mxu0 %v2940
  %2947 = vmatprep.subr.mxu0 0.0
  %2948 = vmatpush1.msra.mxu0 0.0
  %2949 = vmatprep.subr.mxu0 0.0
  %2950 = vmatpush1.msra.mxu0 0.0
  %2951 = vmatprep.subr.mxu0 0.0
  %2952 = vmatpush1.msra.mxu0 0.0
  %2953 = vmatprep.subr.mxu0 0.0
  %2954 = vmatpush1.msra.mxu0 0.0
  %2955 = vmatprep.subr.mxu0 0.0
  %2956 = vmatpush1.msra.mxu0 0.0
  %2957 = vmatprep.subr.mxu0 0.0
  %2958 = vmatpush1.msra.mxu0 0.0
  %2959 = vmatprep.subr.mxu0 0.0
  %2960 = vmatpush1.msra.mxu0 0.0
  %2961 = vmatprep.subr.mxu0 0.0
  %2962 = vmatpush1.msra.mxu0 0.0
  %2963 = vmatprep.subr.mxu0 0.0
  %2964 = vmatpush1.msra.mxu0 0.0
  %2965 = vmatprep.subr.mxu0 0.0
  %2966 = vmatpush1.msra.mxu0 0.0
  %2967 = vmatprep.subr.mxu0 0.0
  %2968 = vmatpush1.msra.mxu0 0.0
  %2969 = vmatprep.subr.mxu0 0.0
  %2970 = vmatpush1.msra.mxu0 0.0
  %2971 = vmatprep.subr.mxu0 0.0
  %2972 = vmatpush1.msra.mxu0 0.0
  %2973 = vmatprep.subr.mxu0 0.0
  %2974 = vmatpush1.msra.mxu0 0.0
  %2975 = vmatprep.subr.mxu0 0.0
  %2976 = vmatpush1.msra.mxu0 0.0
  %2977 = vmatprep.subr.mxu0 0.0
  %2978 = vmatpush1.msra.mxu0 0.0
  %2979 = vmatprep.subr.mxu0 0.0
  %2980 = vmatpush1.msra.mxu0 0.0
  %2981 = vmatprep.subr.mxu0 0.0
  %2982 = vmatpush1.msra.mxu0 0.0
  %2983 = vmatprep.subr.mxu0 0.0
  %2984 = vmatpush1.msra.mxu0 0.0
  %2985 = vmatprep.subr.mxu0 0.0
  %2986 = vmatpush1.msra.mxu0 0.0
  %2987 = vmatprep.subr.mxu0 0.0
  %2988 = vmatpush1.msra.mxu0 0.0
  %2989 = vmatprep.subr.mxu0 0.0
  %2990 = vmatpush1.msra.mxu0 0.0
  %2991 = vmatprep.subr.mxu0 0.0
  %2992 = vmatpush1.msra.mxu0 0.0
  %2993 = vmatprep.subr.mxu0 0.0
  %2994 = vmatpush1.msra.mxu0 0.0
  %2995 = vmatprep.subr.mxu0 0.0
  %2996 = vmatpush1.msra.mxu0 0.0
  %2997 = vmatprep.subr.mxu0 0.0
  %2998 = vmatpush1.msra.mxu0 0.0
  %2999 = vmatprep.subr.mxu0 0.0
  %3000 = vmatpush1.msra.mxu0 0.0
  %3001 = vmatprep.subr.mxu0 0.0
  %3002 = vmatpush1.msra.mxu0 0.0
  %3003 = vmatprep.subr.mxu0 0.0
  %3004 = vmatpush1.msra.mxu0 0.0
  %3005 = vmatprep.subr.mxu0 0.0
  %3006 = vmatpush1.msra.mxu0 0.0
  %3007 = vmatprep.subr.mxu0 0.0
  %3008 = vmatpush1.msra.mxu0 0.0
  %3009 = vmatprep.mubr.f32.mxu0 0.0
  %3010 = vmatmul.mubr.f32.gmra.mrb[0].mxu0 %v2937
  %v3011 = vpop.f32.mrb[0].mxu0
  %v3012 = vadd.f32 0.0, %v3011
  %v3013 = vpop.f32.mrb[0].mxu0
  %v3014 = vadd.f32 0.0, %v3013
  %3015 = vdwg.mxu0
  %v3018 = vcombine.low %v3012, %v3014
  %v3020 = vadd.f32 %v2926, %v3018
  %3021 = vrot.lane.b32.xlu0 %v2736, 1
  %v3022 = vpop.permute.xlu0 %3021
  %3023 = vrot.lane.b32.xlu0 %v2737, 1
  %v3024 = vpop.permute.xlu0 %3023
  %v3025 = vsel %vm350, %v3022, %v3024
  %v3026 = vsel %vm350, %v3024, %v3022
  %v3027 = vmul.f32 %v3026, %v2149
  %v3028 = vmul.f32 %v3025, %v2153
  %v3029 = vld [vmem:[%s1272] sm:$0xf]
  %v3031 = vsel %vm78, %v3029, 0
  %v3034 = vsel %vm82, %v3027, 0
  %v3037 = vsel %vm82, %v3028, 0
  %3039 = vmatprep.subr.mxu0 %v3037
  %3040 = vmatpush1.msra.mxu0 %v3034
  %3041 = vmatprep.subr.mxu0 0.0
  %3042 = vmatpush1.msra.mxu0 0.0
  %3043 = vmatprep.subr.mxu0 0.0
  %3044 = vmatpush1.msra.mxu0 0.0
  %3045 = vmatprep.subr.mxu0 0.0
  %3046 = vmatpush1.msra.mxu0 0.0
  %3047 = vmatprep.subr.mxu0 0.0
  %3048 = vmatpush1.msra.mxu0 0.0
  %3049 = vmatprep.subr.mxu0 0.0
  %3050 = vmatpush1.msra.mxu0 0.0
  %3051 = vmatprep.subr.mxu0 0.0
  %3052 = vmatpush1.msra.mxu0 0.0
  %3053 = vmatprep.subr.mxu0 0.0
  %3054 = vmatpush1.msra.mxu0 0.0
  %3055 = vmatprep.subr.mxu0 0.0
  %3056 = vmatpush1.msra.mxu0 0.0
  %3057 = vmatprep.subr.mxu0 0.0
  %3058 = vmatpush1.msra.mxu0 0.0
  %3059 = vmatprep.subr.mxu0 0.0
  %3060 = vmatpush1.msra.mxu0 0.0
  %3061 = vmatprep.subr.mxu0 0.0
  %3062 = vmatpush1.msra.mxu0 0.0
  %3063 = vmatprep.subr.mxu0 0.0
  %3064 = vmatpush1.msra.mxu0 0.0
  %3065 = vmatprep.subr.mxu0 0.0
  %3066 = vmatpush1.msra.mxu0 0.0
  %3067 = vmatprep.subr.mxu0 0.0
  %3068 = vmatpush1.msra.mxu0 0.0
  %3069 = vmatprep.subr.mxu0 0.0
  %3070 = vmatpush1.msra.mxu0 0.0
  %3071 = vmatprep.subr.mxu0 0.0
  %3072 = vmatpush1.msra.mxu0 0.0
  %3073 = vmatprep.subr.mxu0 0.0
  %3074 = vmatpush1.msra.mxu0 0.0
  %3075 = vmatprep.subr.mxu0 0.0
  %3076 = vmatpush1.msra.mxu0 0.0
  %3077 = vmatprep.subr.mxu0 0.0
  %3078 = vmatpush1.msra.mxu0 0.0
  %3079 = vmatprep.subr.mxu0 0.0
  %3080 = vmatpush1.msra.mxu0 0.0
  %3081 = vmatprep.subr.mxu0 0.0
  %3082 = vmatpush1.msra.mxu0 0.0
  %3083 = vmatprep.subr.mxu0 0.0
  %3084 = vmatpush1.msra.mxu0 0.0
  %3085 = vmatprep.subr.mxu0 0.0
  %3086 = vmatpush1.msra.mxu0 0.0
  %3087 = vmatprep.subr.mxu0 0.0
  %3088 = vmatpush1.msra.mxu0 0.0
  %3089 = vmatprep.subr.mxu0 0.0
  %3090 = vmatpush1.msra.mxu0 0.0
  %3091 = vmatprep.subr.mxu0 0.0
  %3092 = vmatpush1.msra.mxu0 0.0
  %3093 = vmatprep.subr.mxu0 0.0
  %3094 = vmatpush1.msra.mxu0 0.0
  %3095 = vmatprep.subr.mxu0 0.0
  %3096 = vmatpush1.msra.mxu0 0.0
  %3097 = vmatprep.subr.mxu0 0.0
  %3098 = vmatpush1.msra.mxu0 0.0
  %3099 = vmatprep.subr.mxu0 0.0
  %3100 = vmatpush1.msra.mxu0 0.0
  %3101 = vmatprep.subr.mxu0 0.0
  %3102 = vmatpush1.msra.mxu0 0.0
  %3103 = vmatprep.mubr.f32.mxu0 0.0
  %3104 = vmatmul.mubr.f32.gmra.mrb[0].mxu0 %v3031
  %v3105 = vpop.f32.mrb[0].mxu0
  %v3106 = vadd.f32 0.0, %v3105
  %v3107 = vpop.f32.mrb[0].mxu0
  %v3108 = vadd.f32 0.0, %v3107
  %3109 = vdwg.mxu0
  %v3112 = vcombine.low %v3106, %v3108
  %v3114 = vadd.f32 %v3020, %v3112
  %v3115 = vld [vmem:[%s1359] sm:$0xf]
  %v3117 = vsel %vm78, %v3115, 0
  %v3120 = vsel %vm82, %v2736, 0
  %v3123 = vsel %vm82, %v2737, 0
  %3125 = vmatprep.subr.mxu0 %v3123
  %3126 = vmatpush1.msra.mxu0 %v3120
  %3127 = vmatprep.subr.mxu0 0.0
  %3128 = vmatpush1.msra.mxu0 0.0
  %3129 = vmatprep.subr.mxu0 0.0
  %3130 = vmatpush1.msra.mxu0 0.0
  %3131 = vmatprep.subr.mxu0 0.0
  %3132 = vmatpush1.msra.mxu0 0.0
  %3133 = vmatprep.subr.mxu0 0.0
  %3134 = vmatpush1.msra.mxu0 0.0
  %3135 = vmatprep.subr.mxu0 0.0
  %3136 = vmatpush1.msra.mxu0 0.0
  %3137 = vmatprep.subr.mxu0 0.0
  %3138 = vmatpush1.msra.mxu0 0.0
  %3139 = vmatprep.subr.mxu0 0.0
  %3140 = vmatpush1.msra.mxu0 0.0
  %3141 = vmatprep.subr.mxu0 0.0
  %3142 = vmatpush1.msra.mxu0 0.0
  %3143 = vmatprep.subr.mxu0 0.0
  %3144 = vmatpush1.msra.mxu0 0.0
  %3145 = vmatprep.subr.mxu0 0.0
  %3146 = vmatpush1.msra.mxu0 0.0
  %3147 = vmatprep.subr.mxu0 0.0
  %3148 = vmatpush1.msra.mxu0 0.0
  %3149 = vmatprep.subr.mxu0 0.0
  %3150 = vmatpush1.msra.mxu0 0.0
  %3151 = vmatprep.subr.mxu0 0.0
  %3152 = vmatpush1.msra.mxu0 0.0
  %3153 = vmatprep.subr.mxu0 0.0
  %3154 = vmatpush1.msra.mxu0 0.0
  %3155 = vmatprep.subr.mxu0 0.0
  %3156 = vmatpush1.msra.mxu0 0.0
  %3157 = vmatprep.subr.mxu0 0.0
  %3158 = vmatpush1.msra.mxu0 0.0
  %3159 = vmatprep.subr.mxu0 0.0
  %3160 = vmatpush1.msra.mxu0 0.0
  %3161 = vmatprep.subr.mxu0 0.0
  %3162 = vmatpush1.msra.mxu0 0.0
  %3163 = vmatprep.subr.mxu0 0.0
  %3164 = vmatpush1.msra.mxu0 0.0
  %3165 = vmatprep.subr.mxu0 0.0
  %3166 = vmatpush1.msra.mxu0 0.0
  %3167 = vmatprep.subr.mxu0 0.0
  %3168 = vmatpush1.msra.mxu0 0.0
  %3169 = vmatprep.subr.mxu0 0.0
  %3170 = vmatpush1.msra.mxu0 0.0
  %3171 = vmatprep.subr.mxu0 0.0
  %3172 = vmatpush1.msra.mxu0 0.0
  %3173 = vmatprep.subr.mxu0 0.0
  %3174 = vmatpush1.msra.mxu0 0.0
  %3175 = vmatprep.subr.mxu0 0.0
  %3176 = vmatpush1.msra.mxu0 0.0
  %3177 = vmatprep.subr.mxu0 0.0
  %3178 = vmatpush1.msra.mxu0 0.0
  %3179 = vmatprep.subr.mxu0 0.0
  %3180 = vmatpush1.msra.mxu0 0.0
  %3181 = vmatprep.subr.mxu0 0.0
  %3182 = vmatpush1.msra.mxu0 0.0
  %3183 = vmatprep.subr.mxu0 0.0
  %3184 = vmatpush1.msra.mxu0 0.0
  %3185 = vmatprep.subr.mxu0 0.0
  %3186 = vmatpush1.msra.mxu0 0.0
  %3187 = vmatprep.subr.mxu0 0.0
  %3188 = vmatpush1.msra.mxu0 0.0
  %3189 = vmatprep.mubr.f32.mxu0 0.0
  %3190 = vmatmul.mubr.f32.gmra.mrb[0].mxu0 %v3117
  %v3191 = vpop.f32.mrb[0].mxu0
  %v3192 = vadd.f32 0.0, %v3191
  %v3193 = vpop.f32.mrb[0].mxu0
  %v3194 = vadd.f32 0.0, %v3193
  %3195 = vdwg.mxu0
  %v3198 = vcombine.low %v3192, %v3194
  %v3200 = vadd.f32 %v3114, %v3198
  %3201 = vrot.lane.b32.xlu0 %v2736, 127
  %v3202 = vpop.permute.xlu0 %3201
  %3203 = vrot.lane.b32.xlu0 %v2737, 127
  %v3204 = vpop.permute.xlu0 %3203
  %v3205 = vsel %vm538, %v3202, %v3204
  %v3206 = vsel %vm538, %v3204, %v3202
  %v3207 = vmul.f32 %v3205, %v2333
  %v3208 = vmul.f32 %v3206, %v2337
  %v3209 = vld [vmem:[%s1454] sm:$0xf]
  %v3211 = vsel %vm78, %v3209, 0
  %v3214 = vsel %vm82, %v3207, 0
  %v3217 = vsel %vm82, %v3208, 0
  %3219 = vmatprep.subr.mxu0 %v3217
  %3220 = vmatpush1.msra.mxu0 %v3214
  %3221 = vmatprep.subr.mxu0 0.0
  %3222 = vmatpush1.msra.mxu0 0.0
  %3223 = vmatprep.subr.mxu0 0.0
  %3224 = vmatpush1.msra.mxu0 0.0
  %3225 = vmatprep.subr.mxu0 0.0
  %3226 = vmatpush1.msra.mxu0 0.0
  %3227 = vmatprep.subr.mxu0 0.0
  %3228 = vmatpush1.msra.mxu0 0.0
  %3229 = vmatprep.subr.mxu0 0.0
  %3230 = vmatpush1.msra.mxu0 0.0
  %3231 = vmatprep.subr.mxu0 0.0
  %3232 = vmatpush1.msra.mxu0 0.0
  %3233 = vmatprep.subr.mxu0 0.0
  %3234 = vmatpush1.msra.mxu0 0.0
  %3235 = vmatprep.subr.mxu0 0.0
  %3236 = vmatpush1.msra.mxu0 0.0
  %3237 = vmatprep.subr.mxu0 0.0
  %3238 = vmatpush1.msra.mxu0 0.0
  %3239 = vmatprep.subr.mxu0 0.0
  %3240 = vmatpush1.msra.mxu0 0.0
  %3241 = vmatprep.subr.mxu0 0.0
  %3242 = vmatpush1.msra.mxu0 0.0
  %3243 = vmatprep.subr.mxu0 0.0
  %3244 = vmatpush1.msra.mxu0 0.0
  %3245 = vmatprep.subr.mxu0 0.0
  %3246 = vmatpush1.msra.mxu0 0.0
  %3247 = vmatprep.subr.mxu0 0.0
  %3248 = vmatpush1.msra.mxu0 0.0
  %3249 = vmatprep.subr.mxu0 0.0
  %3250 = vmatpush1.msra.mxu0 0.0
  %3251 = vmatprep.subr.mxu0 0.0
  %3252 = vmatpush1.msra.mxu0 0.0
  %3253 = vmatprep.subr.mxu0 0.0
  %3254 = vmatpush1.msra.mxu0 0.0
  %3255 = vmatprep.subr.mxu0 0.0
  %3256 = vmatpush1.msra.mxu0 0.0
  %3257 = vmatprep.subr.mxu0 0.0
  %3258 = vmatpush1.msra.mxu0 0.0
  %3259 = vmatprep.subr.mxu0 0.0
  %3260 = vmatpush1.msra.mxu0 0.0
  %3261 = vmatprep.subr.mxu0 0.0
  %3262 = vmatpush1.msra.mxu0 0.0
  %3263 = vmatprep.subr.mxu0 0.0
  %3264 = vmatpush1.msra.mxu0 0.0
  %3265 = vmatprep.subr.mxu0 0.0
  %3266 = vmatpush1.msra.mxu0 0.0
  %3267 = vmatprep.subr.mxu0 0.0
  %3268 = vmatpush1.msra.mxu0 0.0
  %3269 = vmatprep.subr.mxu0 0.0
  %3270 = vmatpush1.msra.mxu0 0.0
  %3271 = vmatprep.subr.mxu0 0.0
  %3272 = vmatpush1.msra.mxu0 0.0
  %3273 = vmatprep.subr.mxu0 0.0
  %3274 = vmatpush1.msra.mxu0 0.0
  %3275 = vmatprep.subr.mxu0 0.0
  %3276 = vmatpush1.msra.mxu0 0.0
  %3277 = vmatprep.subr.mxu0 0.0
  %3278 = vmatpush1.msra.mxu0 0.0
  %3279 = vmatprep.subr.mxu0 0.0
  %3280 = vmatpush1.msra.mxu0 0.0
  %3281 = vmatprep.subr.mxu0 0.0
  %3282 = vmatpush1.msra.mxu0 0.0
  %3283 = vmatprep.mubr.f32.mxu0 0.0
  %3284 = vmatmul.mubr.f32.gmra.mrb[0].mxu0 %v3211
  %v3285 = vpop.f32.mrb[0].mxu0
  %v3286 = vadd.f32 0.0, %v3285
  %v3287 = vpop.f32.mrb[0].mxu0
  %v3288 = vadd.f32 0.0, %v3287
  %3289 = vdwg.mxu0
  %v3292 = vcombine.low %v3286, %v3288
  %v3294 = vadd.f32 %v3200, %v3292
  %3295 = vrot.lane.b32.xlu0 %v2736, 113
  %v3296 = vpop.permute.xlu0 %3295
  %3297 = vrot.lane.b32.xlu0 %v2737, 113
  %v3298 = vpop.permute.xlu0 %3297
  %v3299 = vsel %vm644, %v3296, %v3298
  %v3300 = vsel %vm644, %v3298, %v3296
  %v3301 = vmul.f32 %v3299, %v2436
  %v3302 = vmul.f32 %v3300, %v2440
  %v3303 = vld [vmem:[%s1549] sm:$0xf]
  %v3305 = vsel %vm78, %v3303, 0
  %v3308 = vsel %vm82, %v3301, 0
  %v3311 = vsel %vm82, %v3302, 0
  %3313 = vmatprep.subr.mxu0 %v3311
  %3314 = vmatpush1.msra.mxu0 %v3308
  %3315 = vmatprep.subr.mxu0 0.0
  %3316 = vmatpush1.msra.mxu0 0.0
  %3317 = vmatprep.subr.mxu0 0.0
  %3318 = vmatpush1.msra.mxu0 0.0
  %3319 = vmatprep.subr.mxu0 0.0
  %3320 = vmatpush1.msra.mxu0 0.0
  %3321 = vmatprep.subr.mxu0 0.0
  %3322 = vmatpush1.msra.mxu0 0.0
  %3323 = vmatprep.subr.mxu0 0.0
  %3324 = vmatpush1.msra.mxu0 0.0
  %3325 = vmatprep.subr.mxu0 0.0
  %3326 = vmatpush1.msra.mxu0 0.0
  %3327 = vmatprep.subr.mxu0 0.0
  %3328 = vmatpush1.msra.mxu0 0.0
  %3329 = vmatprep.subr.mxu0 0.0
  %3330 = vmatpush1.msra.mxu0 0.0
  %3331 = vmatprep.subr.mxu0 0.0
  %3332 = vmatpush1.msra.mxu0 0.0
  %3333 = vmatprep.subr.mxu0 0.0
  %3334 = vmatpush1.msra.mxu0 0.0
  %3335 = vmatprep.subr.mxu0 0.0
  %3336 = vmatpush1.msra.mxu0 0.0
  %3337 = vmatprep.subr.mxu0 0.0
  %3338 = vmatpush1.msra.mxu0 0.0
  %3339 = vmatprep.subr.mxu0 0.0
  %3340 = vmatpush1.msra.mxu0 0.0
  %3341 = vmatprep.subr.mxu0 0.0
  %3342 = vmatpush1.msra.mxu0 0.0
  %3343 = vmatprep.subr.mxu0 0.0
  %3344 = vmatpush1.msra.mxu0 0.0
  %3345 = vmatprep.subr.mxu0 0.0
  %3346 = vmatpush1.msra.mxu0 0.0
  %3347 = vmatprep.subr.mxu0 0.0
  %3348 = vmatpush1.msra.mxu0 0.0
  %3349 = vmatprep.subr.mxu0 0.0
  %3350 = vmatpush1.msra.mxu0 0.0
  %3351 = vmatprep.subr.mxu0 0.0
  %3352 = vmatpush1.msra.mxu0 0.0
  %3353 = vmatprep.subr.mxu0 0.0
  %3354 = vmatpush1.msra.mxu0 0.0
  %3355 = vmatprep.subr.mxu0 0.0
  %3356 = vmatpush1.msra.mxu0 0.0
  %3357 = vmatprep.subr.mxu0 0.0
  %3358 = vmatpush1.msra.mxu0 0.0
  %3359 = vmatprep.subr.mxu0 0.0
  %3360 = vmatpush1.msra.mxu0 0.0
  %3361 = vmatprep.subr.mxu0 0.0
  %3362 = vmatpush1.msra.mxu0 0.0
  %3363 = vmatprep.subr.mxu0 0.0
  %3364 = vmatpush1.msra.mxu0 0.0
  %3365 = vmatprep.subr.mxu0 0.0
  %3366 = vmatpush1.msra.mxu0 0.0
  %3367 = vmatprep.subr.mxu0 0.0
  %3368 = vmatpush1.msra.mxu0 0.0
  %3369 = vmatprep.subr.mxu0 0.0
  %3370 = vmatpush1.msra.mxu0 0.0
  %3371 = vmatprep.subr.mxu0 0.0
  %3372 = vmatpush1.msra.mxu0 0.0
  %3373 = vmatprep.subr.mxu0 0.0
  %3374 = vmatpush1.msra.mxu0 0.0
  %3375 = vmatprep.subr.mxu0 0.0
  %3376 = vmatpush1.msra.mxu0 0.0
  %3377 = vmatprep.mubr.f32.mxu0 0.0
  %3378 = vmatmul.mubr.f32.gmra.mrb[0].mxu0 %v3305
  %v3379 = vpop.f32.mrb[0].mxu0
  %v3380 = vadd.f32 0.0, %v3379
  %v3381 = vpop.f32.mrb[0].mxu0
  %v3382 = vadd.f32 0.0, %v3381
  %3383 = vdwg.mxu0
  %v3386 = vcombine.low %v3380, %v3382
  %v3388 = vadd.f32 %v3294, %v3386
  %3389 = vrot.lane.b32.xlu0 %v2736, 112
  %v3390 = vpop.permute.xlu0 %3389
  %3391 = vrot.lane.b32.xlu0 %v2737, 112
  %v3392 = vpop.permute.xlu0 %3391
  %v3393 = vsel %vm750, %v3390, %v3392
  %v3394 = vsel %vm750, %v3392, %v3390
  %v3395 = vmul.f32 %v3393, %v2539
  %v3396 = vmul.f32 %v3394, %v2543
  %v3397 = vld [vmem:[%s1644] sm:$0xf]
  %v3399 = vsel %vm78, %v3397, 0
  %v3402 = vsel %vm82, %v3395, 0
  %v3405 = vsel %vm82, %v3396, 0
  %3407 = vmatprep.subr.mxu0 %v3405
  %3408 = vmatpush1.msra.mxu0 %v3402
  %3409 = vmatprep.subr.mxu0 0.0
  %3410 = vmatpush1.msra.mxu0 0.0
  %3411 = vmatprep.subr.mxu0 0.0
  %3412 = vmatpush1.msra.mxu0 0.0
  %3413 = vmatprep.subr.mxu0 0.0
  %3414 = vmatpush1.msra.mxu0 0.0
  %3415 = vmatprep.subr.mxu0 0.0
  %3416 = vmatpush1.msra.mxu0 0.0
  %3417 = vmatprep.subr.mxu0 0.0
  %3418 = vmatpush1.msra.mxu0 0.0
  %3419 = vmatprep.subr.mxu0 0.0
  %3420 = vmatpush1.msra.mxu0 0.0
  %3421 = vmatprep.subr.mxu0 0.0
  %3422 = vmatpush1.msra.mxu0 0.0
  %3423 = vmatprep.subr.mxu0 0.0
  %3424 = vmatpush1.msra.mxu0 0.0
  %3425 = vmatprep.subr.mxu0 0.0
  %3426 = vmatpush1.msra.mxu0 0.0
  %3427 = vmatprep.subr.mxu0 0.0
  %3428 = vmatpush1.msra.mxu0 0.0
  %3429 = vmatprep.subr.mxu0 0.0
  %3430 = vmatpush1.msra.mxu0 0.0
  %3431 = vmatprep.subr.mxu0 0.0
  %3432 = vmatpush1.msra.mxu0 0.0
  %3433 = vmatprep.subr.mxu0 0.0
  %3434 = vmatpush1.msra.mxu0 0.0
  %3435 = vmatprep.subr.mxu0 0.0
  %3436 = vmatpush1.msra.mxu0 0.0
  %3437 = vmatprep.subr.mxu0 0.0
  %3438 = vmatpush1.msra.mxu0 0.0
  %3439 = vmatprep.subr.mxu0 0.0
  %3440 = vmatpush1.msra.mxu0 0.0
  %3441 = vmatprep.subr.mxu0 0.0
  %3442 = vmatpush1.msra.mxu0 0.0
  %3443 = vmatprep.subr.mxu0 0.0
  %3444 = vmatpush1.msra.mxu0 0.0
  %3445 = vmatprep.subr.mxu0 0.0
  %3446 = vmatpush1.msra.mxu0 0.0
  %3447 = vmatprep.subr.mxu0 0.0
  %3448 = vmatpush1.msra.mxu0 0.0
  %3449 = vmatprep.subr.mxu0 0.0
  %3450 = vmatpush1.msra.mxu0 0.0
  %3451 = vmatprep.subr.mxu0 0.0
  %3452 = vmatpush1.msra.mxu0 0.0
  %3453 = vmatprep.subr.mxu0 0.0
  %3454 = vmatpush1.msra.mxu0 0.0
  %3455 = vmatprep.subr.mxu0 0.0
  %3456 = vmatpush1.msra.mxu0 0.0
  %3457 = vmatprep.subr.mxu0 0.0
  %3458 = vmatpush1.msra.mxu0 0.0
  %3459 = vmatprep.subr.mxu0 0.0
  %3460 = vmatpush1.msra.mxu0 0.0
  %3461 = vmatprep.subr.mxu0 0.0
  %3462 = vmatpush1.msra.mxu0 0.0
  %3463 = vmatprep.subr.mxu0 0.0
  %3464 = vmatpush1.msra.mxu0 0.0
  %3465 = vmatprep.subr.mxu0 0.0
  %3466 = vmatpush1.msra.mxu0 0.0
  %3467 = vmatprep.subr.mxu0 0.0
  %3468 = vmatpush1.msra.mxu0 0.0
  %3469 = vmatprep.subr.mxu0 0.0
  %3470 = vmatpush1.msra.mxu0 0.0
  %3471 = vmatprep.mubr.f32.mxu0 0.0
  %3472 = vmatmul.mubr.f32.gmra.mrb[0].mxu0 %v3399
  %v3473 = vpop.f32.mrb[0].mxu0
  %v3474 = vadd.f32 0.0, %v3473
  %v3475 = vpop.f32.mrb[0].mxu0
  %v3476 = vadd.f32 0.0, %v3475
  %3477 = vdwg.mxu0
  %v3480 = vcombine.low %v3474, %v3476
  %v3482 = vadd.f32 %v3388, %v3480
  %3483 = vrot.lane.b32.xlu0 %v2736, 111
  %v3484 = vpop.permute.xlu0 %3483
  %3485 = vrot.lane.b32.xlu0 %v2737, 111
  %v3486 = vpop.permute.xlu0 %3485
  %v3487 = vsel %vm856, %v3484, %v3486
  %v3488 = vsel %vm856, %v3486, %v3484
  %v3489 = vmul.f32 %v3487, %v2642
  %v3490 = vmul.f32 %v3488, %v2646
  %v3491 = vld [vmem:[%s1739] sm:$0xf]
  %v3493 = vsel %vm78, %v3491, 0
  %v3496 = vsel %vm82, %v3489, 0
  %v3499 = vsel %vm82, %v3490, 0
  %3501 = vmatprep.subr.mxu0 %v3499
  %3502 = vmatpush1.msra.mxu0 %v3496
  %3503 = vmatprep.subr.mxu0 0.0
  %3504 = vmatpush1.msra.mxu0 0.0
  %3505 = vmatprep.subr.mxu0 0.0
  %3506 = vmatpush1.msra.mxu0 0.0
  %3507 = vmatprep.subr.mxu0 0.0
  %3508 = vmatpush1.msra.mxu0 0.0
  %3509 = vmatprep.subr.mxu0 0.0
  %3510 = vmatpush1.msra.mxu0 0.0
  %3511 = vmatprep.subr.mxu0 0.0
  %3512 = vmatpush1.msra.mxu0 0.0
  %3513 = vmatprep.subr.mxu0 0.0
  %3514 = vmatpush1.msra.mxu0 0.0
  %3515 = vmatprep.subr.mxu0 0.0
  %3516 = vmatpush1.msra.mxu0 0.0
  %3517 = vmatprep.subr.mxu0 0.0
  %3518 = vmatpush1.msra.mxu0 0.0
  %3519 = vmatprep.subr.mxu0 0.0
  %3520 = vmatpush1.msra.mxu0 0.0
  %3521 = vmatprep.subr.mxu0 0.0
  %3522 = vmatpush1.msra.mxu0 0.0
  %3523 = vmatprep.subr.mxu0 0.0
  %3524 = vmatpush1.msra.mxu0 0.0
  %3525 = vmatprep.subr.mxu0 0.0
  %3526 = vmatpush1.msra.mxu0 0.0
  %3527 = vmatprep.subr.mxu0 0.0
  %3528 = vmatpush1.msra.mxu0 0.0
  %3529 = vmatprep.subr.mxu0 0.0
  %3530 = vmatpush1.msra.mxu0 0.0
  %3531 = vmatprep.subr.mxu0 0.0
  %3532 = vmatpush1.msra.mxu0 0.0
  %3533 = vmatprep.subr.mxu0 0.0
  %3534 = vmatpush1.msra.mxu0 0.0
  %3535 = vmatprep.subr.mxu0 0.0
  %3536 = vmatpush1.msra.mxu0 0.0
  %3537 = vmatprep.subr.mxu0 0.0
  %3538 = vmatpush1.msra.mxu0 0.0
  %3539 = vmatprep.subr.mxu0 0.0
  %3540 = vmatpush1.msra.mxu0 0.0
  %3541 = vmatprep.subr.mxu0 0.0
  %3542 = vmatpush1.msra.mxu0 0.0
  %3543 = vmatprep.subr.mxu0 0.0
  %3544 = vmatpush1.msra.mxu0 0.0
  %3545 = vmatprep.subr.mxu0 0.0
  %3546 = vmatpush1.msra.mxu0 0.0
  %3547 = vmatprep.subr.mxu0 0.0
  %3548 = vmatpush1.msra.mxu0 0.0
  %3549 = vmatprep.subr.mxu0 0.0
  %3550 = vmatpush1.msra.mxu0 0.0
  %3551 = vmatprep.subr.mxu0 0.0
  %3552 = vmatpush1.msra.mxu0 0.0
  %3553 = vmatprep.subr.mxu0 0.0
  %3554 = vmatpush1.msra.mxu0 0.0
  %3555 = vmatprep.subr.mxu0 0.0
  %3556 = vmatpush1.msra.mxu0 0.0
  %3557 = vmatprep.subr.mxu0 0.0
  %3558 = vmatpush1.msra.mxu0 0.0
  %3559 = vmatprep.subr.mxu0 0.0
  %3560 = vmatpush1.msra.mxu0 0.0
  %3561 = vmatprep.subr.mxu0 0.0
  %3562 = vmatpush1.msra.mxu0 0.0
  %3563 = vmatprep.subr.mxu0 0.0
  %3564 = vmatpush1.msra.mxu0 0.0
  %3565 = vmatprep.mubr.f32.mxu0 0.0
  %3566 = vmatmul.mubr.f32.gmra.mrb[0].mxu0 %v3493
  %v3567 = vpop.f32.mrb[0].mxu0
  %v3568 = vadd.f32 0.0, %v3567
  %v3569 = vpop.f32.mrb[0].mxu0
  %v3570 = vadd.f32 0.0, %v3569
  %3571 = vdwg.mxu0
  %v3574 = vcombine.low %v3568, %v3570
  %v3576 = vadd.f32 %v3482, %v3574
  %s3577 = scalar_lea.vmem %s6, 8
  %3578 = vst [vmem:[%s3577] sm:$0xff] %v3576
  // Predicated region
  $region26: #{residual_block.1} parent=0 // pred_check
    _
  $region27: #{residual_block.1} parent=0 // pred_check_branch
    %3580 = sbr.rel (0) target = $region29
  $region28: #{residual_block.1} parent=0 // pred_region
    _
  $region29: #{residual_block.1} parent=0 // pred_fallthru
    _
  // Predicated region
  $region30: #{residual_block.1} parent=0 // pred_check
    _
  $region31: #{residual_block.1} parent=0 // pred_check_branch
    %3582 = sbr.rel (0) target = $region33
  $region32: #{residual_block.1} parent=0 // pred_region
    _
  $region33: #{residual_block.1} parent=0 // pred_fallthru
    _

</llo_original>
